<compile_context>
chip_gen: v7x
topology: tpu7x:2x2x1
jax: 0.10.0
libtpu: 0.0.40
codegen_flags: <defaults>
</compile_context>

<pallas_src>
import functools

import jax
import jax.numpy as jnp
from jax.experimental import pallas as pl
from jax.experimental.pallas import tpu as pltpu

LANE = 128
SUBLANE = 8

# Conv layers with real Cin <= this use the packed-K path (one matmul with
# K = round_up(9*Cin, 128)); larger layers use the in-kernel dx-fold path.
_PACKED_CIN_MAX = 32

# Row tile for the packed conv / pool grids.  8 rows x W x 128 lanes keeps the
# per-step block a few hundred KiB even at 224-wide images (well under the
# 16 MiB v5e scoped-VMEM default) while giving >=1792 MXU rows per step at
# real VGG widths, and yields multiple parallel grid points per image.
_CONV_ROW_TILE = 8


def _round_up(x, m):
    return (x + m - 1) // m * m


def _divisor_tile(dim, max_tile):
    """Largest divisor of `dim` that is <= max_tile."""
    t = min(dim, max_tile)
    while dim % t:
        t -= 1
    return t


def _pick_tile_128(dim_p, max_tile):
    """Largest multiple of 128 dividing dim_p (itself a 128-multiple), <= max_tile."""
    t = max(LANE, (min(dim_p, max_tile) // LANE) * LANE)
    while dim_p % t:
        t -= LANE
    return t


# --------------------------------------------------------------------------
# Tiled matmul + bias (+ReLU) kernel  (FC head)
# --------------------------------------------------------------------------
def _matmul_bias_kernel(x_ref, w_ref, b_ref, o_ref, acc_ref, *, relu):
    k = pl.program_id(2)
    prod = jnp.dot(x_ref[...], w_ref[...], preferred_element_type=jnp.float32)

    @pl.when(k == 0)
    def _init():                       # first k-step writes (no zero-fill RMW)
        acc_ref[...] = prod

    @pl.when(k > 0)
    def _accumulate():
        acc_ref[...] += prod

    @pl.when(k == pl.num_programs(2) - 1)
    def _finalize():
        out = acc_ref[...] + b_ref[...]        # (tm,tn) + (1,tn) broadcast
        if relu:
            out = jnp.maximum(out, 0.0)
        o_ref[...] = out.astype(o_ref.dtype)


def matmul_bias(x, w_p, b_p, *, n_real, relu, out_dtype=jnp.float32):
    """o = relu?(x @ w + b) with pre-padded weights (Kp, Np) and bias (1, Np)."""
    M, K = x.shape
    Kp, Np = w_p.shape
    assert K <= Kp and n_real <= Np

    tm = _round_up(min(M, 256), SUBLANE)
    # Big weight-streaming tiles: the FC head at small batch is weight-BW bound.
    tk = _pick_tile_128(Kp, 1024)
    tn = _pick_tile_128(Np, 512)
    Mp = _round_up(M, tm)

    xb = x.astype(jnp.bfloat16)
    if (Mp, Kp) != (M, K):
        xb = jnp.zeros((Mp, Kp), jnp.bfloat16).at[:M, :K].set(xb)

    grid = (Mp // tm, Np // tn, Kp // tk)
    out = pl.pallas_call(
        functools.partial(_matmul_bias_kernel, relu=relu),
        out_shape=jax.ShapeDtypeStruct((Mp, Np), out_dtype),
        grid_spec=pltpu.PrefetchScalarGridSpec(
            num_scalar_prefetch=0,
            grid=grid,
            in_specs=[
                pl.BlockSpec((tm, tk), lambda i, j, k: (i, k)),
                pl.BlockSpec((tk, tn), lambda i, j, k: (k, j)),
                pl.BlockSpec((1, tn), lambda i, j, k: (0, j)),
            ],
            out_specs=pl.BlockSpec((tm, tn), lambda i, j, k: (i, j)),
            scratch_shapes=[pltpu.VMEM((tm, tn), jnp.float32)],
        ),
        compiler_params=pltpu.CompilerParams(
            dimension_semantics=("parallel", "parallel", "arbitrary")),
        cost_estimate=pl.CostEstimate(
            flops=2 * Mp * Np * Kp,
            transcendentals=0,
            bytes_accessed=(Mp * Kp + Kp * Np) * 2 + Np * 4 + Mp * Np * 4),
    )(xb, w_p, b_p)
    return out[:M, :n_real]


# --------------------------------------------------------------------------
# Conv 3x3 + bias + ReLU
# --------------------------------------------------------------------------
def _conv_packed_kernel(p_ref, w_ref, b_ref, o_ref):
    # p_ref : (1, th, W, Kp)      bf16  im2col patch, K = packed REAL taps
    # w_ref : (Kp, Cout_p)        bf16
    # b_ref : (1, Cout_p)         f32
    # o_ref : (1, th, W, Cout_p)  bf16
    _, th, W, Kp = p_ref.shape
    Co = o_ref.shape[-1]
    rows = th * W
    acc = jnp.dot(p_ref[0].reshape(rows, Kp), w_ref[...],
                  preferred_element_type=jnp.float32)     # single MXU pass
    out = jnp.maximum(acc + b_ref[...], 0.0)
    o_ref[0] = out.reshape(th, W, Co).astype(o_ref.dtype)


def _conv_fold_kernel(x_ref, w_ref, b_ref, o_ref):
    # x_ref : (1, H+2, W+2, Cin_p)  bf16  spatially padded input
    # w_ref : (3, 3*Cin_p, Cout_p)  bf16  (dy major; dx,cin folded into K)
    # b_ref : (1, Cout_p)           f32
    # o_ref : (1, H, W, Cout_p)     bf16
    _, Hp2, Wp2, Cin_p = x_ref.shape
    H, W = Hp2 - 2, Wp2 - 2
    Co = o_ref.shape[-1]
    acc = None
    for dy in range(3):
        rows = x_ref[0, dy:dy + H, :, :]                      # (H, W+2, Cin_p)
        patch = jnp.concatenate(                               # lane-aligned concat
            [rows[:, 0:W, :], rows[:, 1:W + 1, :], rows[:, 2:W + 2, :]],
            axis=-1).reshape(H * W, 3 * Cin_p)
        d = jnp.dot(patch, w_ref[dy], preferred_element_type=jnp.float32)
        acc = d if acc is None else acc + d                    # register acc
    out = jnp.maximum(acc + b_ref[...], 0.0)
    o_ref[0] = out.reshape(H, W, Co).astype(o_ref.dtype)


def conv3x3_relu(x, w_p, b_p, *, cin, cout):
    """3x3 conv, padding=1, stride=1, + bias + ReLU.  Output channels padded
    to a multiple of 128 (lane-dense stores); padded channels are exact zeros."""
    N, H, W, Cs = x.shape
    cout_p = w_p.shape[-1]

    if cin <= _PACKED_CIN_MAX:
        # ---- packed-K path: K = round_up(9*cin, 128); no zero-channel MXU work.
        # The patch build is a handful of fused XLA slices on a tiny tensor and
        # is <= the size of the 128-channel padded copy the old code wrote.
        kp = w_p.shape[0]
        xr = x[..., :cin]
        xpad = jnp.pad(xr, ((0, 0), (1, 1), (1, 1), (0, 0)))
        taps = [xpad[:, dy:dy + H, dx:dx + W, :]
                for dy in range(3) for dx in range(3)]
        patch = jnp.concatenate(taps, axis=-1)              # (N, H, W, 9*cin)
        if kp > 9 * cin:
            patch = jnp.pad(patch, ((0, 0), (0, 0), (0, 0), (0, kp - 9 * cin)))
        patch = patch.astype(jnp.bfloat16)

        th = _divisor_tile(H, _CONV_ROW_TILE)
        grid = (N, H // th)
        return pl.pallas_call(
            _conv_packed_kernel,
            out_shape=jax.ShapeDtypeStruct((N, H, W, cout_p), jnp.bfloat16),
            grid_spec=pltpu.PrefetchScalarGridSpec(
                num_scalar_prefetch=0,
                grid=grid,
                in_specs=[
                    pl.BlockSpec((1, th, W, kp), lambda n, r: (n, r, 0, 0)),
                    pl.BlockSpec((kp, cout_p), lambda n, r: (0, 0)),
                    pl.BlockSpec((1, cout_p), lambda n, r: (0, 0)),
                ],
                out_specs=pl.BlockSpec((1, th, W, cout_p),
                                       lambda n, r: (n, r, 0, 0)),
            ),
            compiler_params=pltpu.CompilerParams(
                dimension_semantics=("parallel", "parallel")),
            cost_estimate=pl.CostEstimate(
                flops=2 * N * H * W * kp * cout_p,
                transcendentals=0,
                bytes_accessed=(N * H * W * (kp + cout_p) * 2
                                + kp * cout_p * 2 + cout_p * 4)),
        )(patch, w_p, b_p)

    # ---- dx-fold path (Cin >= 128-ish): no HBM im2col; 3 matmuls, K = 3*Cin_p.
    cin_p = w_p.shape[1] // 3
    if Cs < cin_p:
        x = jnp.pad(x, ((0, 0), (0, 0), (0, 0), (0, cin_p - Cs)))
    elif Cs > cin_p:
        x = x[..., :cin_p]
    xpad = jnp.pad(x, ((0, 0), (1, 1), (1, 1), (0, 0))).astype(jnp.bfloat16)
    # TODO(synk): row-tile this path with a manual halo DMA (and raise
    # vmem_limit_bytes per generation) for real 224x224-class inputs.
    return pl.pallas_call(
        _conv_fold_kernel,
        out_shape=jax.ShapeDtypeStruct((N, H, W, cout_p), jnp.bfloat16),
        grid_spec=pltpu.PrefetchScalarGridSpec(
            num_scalar_prefetch=0,
            grid=(N,),
            in_specs=[
                pl.BlockSpec((1, H + 2, W + 2, cin_p), lambda n: (n, 0, 0, 0)),
                pl.BlockSpec((3, 3 * cin_p, cout_p), lambda n: (0, 0, 0)),
                pl.BlockSpec((1, cout_p), lambda n: (0, 0)),
            ],
            out_specs=pl.BlockSpec((1, H, W, cout_p), lambda n: (n, 0, 0, 0)),
        ),
        compiler_params=pltpu.CompilerParams(dimension_semantics=("parallel",)),
        cost_estimate=pl.CostEstimate(
            flops=2 * N * H * W * 9 * cin_p * cout_p,
            transcendentals=0,
            bytes_accessed=(N * (H + 2) * (W + 2) * cin_p * 2
                            + 9 * cin_p * cout_p * 2 + N * H * W * cout_p * 2)),
    )(xpad, w_p, b_p)


# --------------------------------------------------------------------------
# Lane-dense 2x2 max-pool kernel (stride 2)
# --------------------------------------------------------------------------
def _maxpool2x2_kernel(x_ref, o_ref):
    # x_ref : (1, tho, 2, Wo, 2*C) — dim 2 picks top/bottom row of the window,
    #                                lanes [0:C]/[C:2C] pick left/right column.
    # o_ref : (1, tho, Wo, C)
    C = o_ref.shape[-1]
    v = jnp.maximum(x_ref[0, :, 0, :, :], x_ref[0, :, 1, :, :])
    o_ref[0] = jnp.maximum(v[..., 0:C], v[..., C:2 * C])


def maxpool2x2(x):
    N, H, W, C = x.shape
    assert H % 2 == 0 and W % 2 == 0
    Ho, Wo = H // 2, W // 2
    xr = x.reshape(N, Ho, 2, Wo, 2 * C)          # free row-major HBM reshape
    tho = _divisor_tile(Ho, _CONV_ROW_TILE)
    grid = (N, Ho // tho)
    return pl.pallas_call(
        _maxpool2x2_kernel,
        out_shape=jax.ShapeDtypeStruct((N, Ho, Wo, C), x.dtype),
        grid_spec=pltpu.PrefetchScalarGridSpec(
            num_scalar_prefetch=0,
            grid=grid,
            in_specs=[pl.BlockSpec((1, tho, 2, Wo, 2 * C),
                                   lambda n, r: (n, r, 0, 0, 0))],
            out_specs=pl.BlockSpec((1, tho, Wo, C), lambda n, r: (n, r, 0, 0)),
        ),
        compiler_params=pltpu.CompilerParams(
            dimension_semantics=("parallel", "parallel")),
    )(xr)


# --------------------------------------------------------------------------
# VGG parameters: raw init + one-time packing
# --------------------------------------------------------------------------
def init_vgg_params(key, vgg_blocks, image_shape, fc_hidden_units):
    """Raw parameters matching the PyTorch module's shapes (f32)."""
    params = {"conv": [], "fc": []}
    keys = iter(jax.random.split(key, 64))

    for (num, in_c, out_c) in vgg_blocks:
        for i in range(num):
            cin = in_c if i == 0 else out_c
            w = jax.random.normal(next(keys), (3, 3, cin, out_c),
                                  jnp.float32) * 0.1
            b = jax.random.normal(next(keys), (out_c,), jnp.float32) * 0.01
            params["conv"].append((w, b))

    n_blocks = len(vgg_blocks)
    last_c = vgg_blocks[-1][2]
    hf = image_shape[0] // (2 ** n_blocks)
    wf = image_shape[1] // (2 ** n_blocks)
    feature_num = hf * wf * last_c

    dims = [(feature_num, fc_hidden_units),
            (fc_hidden_units, fc_hidden_units),
            (fc_hidden_units, 10)]
    for (din, dout) in dims:
        w = jax.random.normal(next(keys), (din, dout), jnp.float32) * 0.05
        b = jax.random.normal(next(keys), (dout,), jnp.float32) * 0.01
        params["fc"].append((w, b))
    return params


def pack_vgg_params(params, vgg_blocks, image_shape):
    """One-time padding / layout packing of all parameters.  Run OUTSIDE the
    jitted forward, so no per-step weight re-padding ops (review item)."""
    packed = {"conv": [], "fc": []}

    conv_idx = 0
    for (num, in_c, out_c) in vgg_blocks:
        for i in range(num):
            cin = in_c if i == 0 else out_c
            w, b = params["conv"][conv_idx]
            conv_idx += 1
            cout = out_c
            cout_p = _round_up(cout, LANE)
            if cin <= _PACKED_CIN_MAX:
                # Packed-K layout: rows ordered (dy, dx, cin) — matches the
                # XLA-built im2col patch exactly.
                kp = _round_up(9 * cin, LANE)
                wp = jnp.zeros((kp, cout_p), jnp.bfloat16)
                wp = wp.at[:9 * cin, :cout].set(
                    w.reshape(9 * cin, cout).astype(jnp.bfloat16))
            else:
                # dx-fold layout: (3 dy, 3*Cin_p, Cout_p).
                cin_p = _round_up(cin, LANE)
                w4 = jnp.zeros((3, 3, cin_p, cout_p), jnp.bfloat16)
                w4 = w4.at[:, :, :cin, :cout].set(w.astype(jnp.bfloat16))
                wp = w4.reshape(3, 3 * cin_p, cout_p)
            bp = jnp.zeros((1, cout_p), jnp.float32).at[0, :cout].set(b)
            packed["conv"].append((wp, bp))

    # FC1 rows are permuted from PyTorch NCHW-flatten order to the trunk's
    # NHWC (channel-padded) flatten order so the trunk output feeds FC1 with
    # no transpose and no channel slice.  Padded channels get zero rows.
    n_blocks = len(vgg_blocks)
    last_c = vgg_blocks[-1][2]
    c_p = _round_up(last_c, LANE)
    hf = image_shape[0] // (2 ** n_blocks)
    wf = image_shape[1] // (2 ** n_blocks)

    for li, (w, b) in enumerate(params["fc"]):
        din, dout = w.shape
        if li == 0:
            w = w.reshape(last_c, hf, wf, dout).transpose(1, 2, 0, 3)
            w = jnp.zeros((hf, wf, c_p, dout),
                          jnp.float32).at[:, :, :last_c, :].set(w)
            w = w.reshape(hf * wf * c_p, dout)
            din = hf * wf * c_p
        kp = _round_up(din, LANE)
        np_ = _round_up(dout, LANE)
        wp = jnp.zeros((kp, np_), jnp.bfloat16).at[:din, :dout].set(
            w.astype(jnp.bfloat16))
        bp = jnp.zeros((1, np_), jnp.float32).at[0, :dout].set(b)
        packed["fc"].append((wp, bp))
    return packed


# --------------------------------------------------------------------------
# Forward pass
# --------------------------------------------------------------------------
def vgg_forward(x_nchw, packed, vgg_blocks, fc_hidden_units):
    N = x_nchw.shape[0]
    x = jnp.transpose(x_nchw, (0, 2, 3, 1))      # NCHW -> NHWC for conv trunk

    conv_idx = 0
    for (num, in_c, out_c) in vgg_blocks:
        for i in range(num):
            cin = in_c if i == 0 else out_c
            wp, bp = packed["conv"][conv_idx]
            conv_idx += 1
            x = conv3x3_relu(x, wp, bp, cin=cin, cout=out_c)
        x = maxpool2x2(x)

    # Flatten in (h, w, padded-channel) order; padded channels hit zero rows
    # of the pre-permuted FC1 weight, so no slice / transpose is needed here.
    x = x.reshape(N, -1)

    w1, b1 = packed["fc"][0]
    x = matmul_bias(x, w1, b1, n_real=fc_hidden_units, relu=True,
                    out_dtype=jnp.bfloat16)
    # TODO(synk): Dropout(0.5) is identity (eval-mode semantics).
    w2, b2 = packed["fc"][1]
    x = matmul_bias(x, w2, b2, n_real=fc_hidden_units, relu=True,
                    out_dtype=jnp.bfloat16)
    w3, b3 = packed["fc"][2]
    x = matmul_bias(x, w3, b3, n_real=10, relu=False, out_dtype=jnp.float32)
    return x


# --------------------------------------------------------------------------
# Main
# --------------------------------------------------------------------------
if __name__ == "__main__":
    # Small VGG config: two blocks, 16x16 images, 4 input channels.
    vgg_blocks = [(1, 4, 8), (2, 8, 16)]   # (num_convs, in_ch, out_ch)
    image_shape = (16, 16)
    fc_hidden_units = 32
    batch = 2

    key = jax.random.PRNGKey(0)
    pkey, xkey = jax.random.split(key)
    params = init_vgg_params(pkey, vgg_blocks, image_shape, fc_hidden_units)
    packed = pack_vgg_params(params, vgg_blocks, image_shape)

    x = jax.random.normal(
        xkey, (batch, vgg_blocks[0][1], image_shape[0], image_shape[1]),
        dtype=jnp.float32)

    fwd = jax.jit(functools.partial(vgg_forward, vgg_blocks=vgg_blocks,
                                    fc_hidden_units=fc_hidden_units))
    out = fwd(x, packed)
    out = jax.block_until_ready(out)
    assert out.shape == (batch, 10), out.shape
    print("KERNEL_OK")
</pallas_src>

<mosaic_0001>
module attributes {stable_mosaic.version = 11 : i64} {
  func.func @_conv_packed_kernel(%arg0: i32, %arg1: i32, %arg2: memref<1x8x16x128xbf16, #tpu.memory_space<vmem>>, %arg3: memref<128x128xbf16, #tpu.memory_space<vmem>>, %arg4: memref<1x128xf32, #tpu.memory_space<vmem>>, %arg5: memref<1x8x16x128xbf16, #tpu.memory_space<vmem>>) attributes {dimension_semantics = [#tpu.dimension_semantics<parallel>, #tpu.dimension_semantics<parallel>], iteration_bounds = array<i64: 2, 2>, scalar_prefetch = 0 : i64, scratch_operands = 0 : i64, tpu.core_type = #tpu.core_type<tc>, window_params = [{transform_indices = @transform_0, window_bounds = array<i64: 1, 8, 16, 128>}, {pipeline_mode = #tpu.pipeline_mode<synchronous>, transform_indices = @transform_1, window_bounds = array<i64: 128, 128>}, {pipeline_mode = #tpu.pipeline_mode<synchronous>, transform_indices = @transform_2, window_bounds = array<i64: 1, 128>}, {transform_indices = @transform_3, window_bounds = array<i64: 1, 8, 16, 128>}]} {
    %c0 = arith.constant 0 : index
    %c0_0 = arith.constant 0 : index
    %c0_1 = arith.constant 0 : index
    %c0_2 = arith.constant 0 : index
    %0 = vector.load %arg2[%c0, %c0_0, %c0_1, %c0_2] : memref<1x8x16x128xbf16, #tpu.memory_space<vmem>>, vector<1x8x16x128xbf16>
    %1 = vector.shape_cast %0 : vector<1x8x16x128xbf16> to vector<8x16x128xbf16>
    %2 = vector.shape_cast %1 : vector<8x16x128xbf16> to vector<128x128xbf16>
    %c0_3 = arith.constant 0 : index
    %c0_4 = arith.constant 0 : index
    %3 = vector.load %arg3[%c0_3, %c0_4] : memref<128x128xbf16, #tpu.memory_space<vmem>>, vector<128x128xbf16>
    %cst = arith.constant dense<0.000000e+00> : vector<128x128xf32>
    %4 = tpu.matmul %2, %3, %cst {dimension_numbers = #tpu.dot_dimension_numbers<[1], [0], [0], [1], [0, 0, 1, 1], [], []>} : vector<128x128xbf16>, vector<128x128xbf16>, vector<128x128xf32> -> vector<128x128xf32>
    %c0_5 = arith.constant 0 : index
    %c0_6 = arith.constant 0 : index
    %5 = vector.load %arg4[%c0_5, %c0_6] : memref<1x128xf32, #tpu.memory_space<vmem>>, vector<1x128xf32>
    %6 = vector.broadcast %5 : vector<1x128xf32> to vector<128x128xf32>
    %7 = arith.addf %4, %6 : vector<128x128xf32>
    %cst_7 = arith.constant 0.000000e+00 : f32
    %8 = vector.broadcast %cst_7 : f32 to vector<128x128xf32>
    %9 = arith.maximumf %7, %8 : vector<128x128xf32>
    %10 = vector.shape_cast %9 : vector<128x128xf32> to vector<8x16x128xf32>
    %11 = arith.truncf %10 : vector<8x16x128xf32> to vector<8x16x128xbf16>
    %c0_8 = arith.constant 0 : index
    %c0_9 = arith.constant 0 : index
    %c0_10 = arith.constant 0 : index
    %c0_11 = arith.constant 0 : index
    %12 = vector.load %arg5[%c0_8, %c0_9, %c0_10, %c0_11] : memref<1x8x16x128xbf16, #tpu.memory_space<vmem>>, vector<1x8x16x128xbf16>
    %13 = vector.shape_cast %12 : vector<1x8x16x128xbf16> to vector<8x16x128xbf16>
    %14 = vector.shape_cast %11 : vector<8x16x128xbf16> to vector<1x8x16x128xbf16>
    tpu.vector_store %arg5[%c0_8, %c0_9, %c0_10, %c0_11], %14 {strides = array<i32>} : memref<1x8x16x128xbf16, #tpu.memory_space<vmem>>, vector<1x8x16x128xbf16>,
    return
  }
  func.func @transform_0(%arg0: i32, %arg1: i32) -> (i32, i32, i32, i32) {
    %c0_i32 = arith.constant 0 : i32
    %c0_i32_0 = arith.constant 0 : i32
    %c0_i32_1 = arith.constant 0 : i32
    return %arg0, %arg1, %c0_i32, %c0_i32_0 : i32, i32, i32, i32
  }
  func.func @transform_1(%arg0: i32, %arg1: i32) -> (i32, i32) {
    %c0_i32 = arith.constant 0 : i32
    %c0_i32_0 = arith.constant 0 : i32
    %c0_i32_1 = arith.constant 0 : i32
    return %c0_i32, %c0_i32_0 : i32, i32
  }
  func.func @transform_2(%arg0: i32, %arg1: i32) -> (i32, i32) {
    %c0_i32 = arith.constant 0 : i32
    %c0_i32_0 = arith.constant 0 : i32
    %c0_i32_1 = arith.constant 0 : i32
    return %c0_i32, %c0_i32_0 : i32, i32
  }
  func.func @transform_3(%arg0: i32, %arg1: i32) -> (i32, i32, i32, i32) {
    %c0_i32 = arith.constant 0 : i32
    %c0_i32_0 = arith.constant 0 : i32
    %c0_i32_1 = arith.constant 0 : i32
    return %arg0, %arg1, %c0_i32, %c0_i32_0 : i32, i32, i32, i32
  }
}

module attributes {stable_mosaic.version = 11 : i64} {
  func.func @_maxpool2x2_kernel(%arg0: i32, %arg1: i32, %arg2: memref<1x8x2x8x256xbf16, #tpu.memory_space<vmem>>, %arg3: memref<1x8x8x128xbf16, #tpu.memory_space<vmem>>) attributes {dimension_semantics = [#tpu.dimension_semantics<parallel>, #tpu.dimension_semantics<parallel>], iteration_bounds = array<i64: 2, 1>, scalar_prefetch = 0 : i64, scratch_operands = 0 : i64, tpu.core_type = #tpu.core_type<tc>, window_params = [{transform_indices = @transform_0, window_bounds = array<i64: 1, 8, 2, 8, 256>}, {transform_indices = @transform_1, window_bounds = array<i64: 1, 8, 8, 128>}]} {
    %c0 = arith.constant 0 : index
    %c0_0 = arith.constant 0 : index
    %c0_1 = arith.constant 0 : index
    %c0_2 = arith.constant 0 : index
    %c0_3 = arith.constant 0 : index
    %0 = vector.load %arg2[%c0, %c0_0, %c0_1, %c0_2, %c0_3] : memref<1x8x2x8x256xbf16, #tpu.memory_space<vmem>>, vector<1x8x1x8x256xbf16>
    %1 = vector.shape_cast %0 : vector<1x8x1x8x256xbf16> to vector<8x8x256xbf16>
    %c0_4 = arith.constant 0 : index
    %c0_5 = arith.constant 0 : index
    %c1 = arith.constant 1 : index
    %c0_6 = arith.constant 0 : index
    %c0_7 = arith.constant 0 : index
    %2 = vector.load %arg2[%c0_4, %c0_5, %c1, %c0_6, %c0_7] : memref<1x8x2x8x256xbf16, #tpu.memory_space<vmem>>, vector<1x8x1x8x256xbf16>
    %3 = vector.shape_cast %2 : vector<1x8x1x8x256xbf16> to vector<8x8x256xbf16>
    %4 = arith.maximumf %1, %3 : vector<8x8x256xbf16>
    %5 = vector.extract_strided_slice %4 {offsets = [0, 0, 0], sizes = [8, 8, 128], strides = [1, 1, 1]} : vector<8x8x256xbf16> to vector<8x8x128xbf16>
    %6 = vector.extract_strided_slice %4 {offsets = [0, 0, 128], sizes = [8, 8, 128], strides = [1, 1, 1]} : vector<8x8x256xbf16> to vector<8x8x128xbf16>
    %7 = arith.maximumf %5, %6 : vector<8x8x128xbf16>
    %c0_8 = arith.constant 0 : index
    %c0_9 = arith.constant 0 : index
    %c0_10 = arith.constant 0 : index
    %c0_11 = arith.constant 0 : index
    %8 = vector.load %arg3[%c0_8, %c0_9, %c0_10, %c0_11] : memref<1x8x8x128xbf16, #tpu.memory_space<vmem>>, vector<1x8x8x128xbf16>
    %9 = vector.shape_cast %8 : vector<1x8x8x128xbf16> to vector<8x8x128xbf16>
    %10 = vector.shape_cast %7 : vector<8x8x128xbf16> to vector<1x8x8x128xbf16>
    tpu.vector_store %arg3[%c0_8, %c0_9, %c0_10, %c0_11], %10 {strides = array<i32>} : memref<1x8x8x128xbf16, #tpu.memory_space<vmem>>, vector<1x8x8x128xbf16>,
    return
  }
  func.func @transform_0(%arg0: i32, %arg1: i32) -> (i32, i32, i32, i32, i32) {
    %c0_i32 = arith.constant 0 : i32
    %c0_i32_0 = arith.constant 0 : i32
    %c0_i32_1 = arith.constant 0 : i32
    %c0_i32_2 = arith.constant 0 : i32
    return %arg0, %arg1, %c0_i32, %c0_i32_0, %c0_i32_1 : i32, i32, i32, i32, i32
  }
  func.func @transform_1(%arg0: i32, %arg1: i32) -> (i32, i32, i32, i32) {
    %c0_i32 = arith.constant 0 : i32
    %c0_i32_0 = arith.constant 0 : i32
    %c0_i32_1 = arith.constant 0 : i32
    return %arg0, %arg1, %c0_i32, %c0_i32_0 : i32, i32, i32, i32
  }
}

module attributes {stable_mosaic.version = 11 : i64} {
  func.func @_conv_packed_kernel(%arg0: i32, %arg1: i32, %arg2: memref<1x8x8x128xbf16, #tpu.memory_space<vmem>>, %arg3: memref<128x128xbf16, #tpu.memory_space<vmem>>, %arg4: memref<1x128xf32, #tpu.memory_space<vmem>>, %arg5: memref<1x8x8x128xbf16, #tpu.memory_space<vmem>>) attributes {dimension_semantics = [#tpu.dimension_semantics<parallel>, #tpu.dimension_semantics<parallel>], iteration_bounds = array<i64: 2, 1>, scalar_prefetch = 0 : i64, scratch_operands = 0 : i64, tpu.core_type = #tpu.core_type<tc>, window_params = [{transform_indices = @transform_0, window_bounds = array<i64: 1, 8, 8, 128>}, {pipeline_mode = #tpu.pipeline_mode<synchronous>, transform_indices = @transform_1, window_bounds = array<i64: 128, 128>}, {pipeline_mode = #tpu.pipeline_mode<synchronous>, transform_indices = @transform_2, window_bounds = array<i64: 1, 128>}, {transform_indices = @transform_3, window_bounds = array<i64: 1, 8, 8, 128>}]} {
    %c0 = arith.constant 0 : index
    %c0_0 = arith.constant 0 : index
    %c0_1 = arith.constant 0 : index
    %c0_2 = arith.constant 0 : index
    %0 = vector.load %arg2[%c0, %c0_0, %c0_1, %c0_2] : memref<1x8x8x128xbf16, #tpu.memory_space<vmem>>, vector<1x8x8x128xbf16>
    %1 = vector.shape_cast %0 : vector<1x8x8x128xbf16> to vector<8x8x128xbf16>
    %2 = vector.shape_cast %1 : vector<8x8x128xbf16> to vector<64x128xbf16>
    %c0_3 = arith.constant 0 : index
    %c0_4 = arith.constant 0 : index
    %3 = vector.load %arg3[%c0_3, %c0_4] : memref<128x128xbf16, #tpu.memory_space<vmem>>, vector<128x128xbf16>
    %cst = arith.constant dense<0.000000e+00> : vector<64x128xf32>
    %4 = tpu.matmul %2, %3, %cst {dimension_numbers = #tpu.dot_dimension_numbers<[1], [0], [0], [1], [0, 0, 1, 1], [], []>} : vector<64x128xbf16>, vector<128x128xbf16>, vector<64x128xf32> -> vector<64x128xf32>
    %c0_5 = arith.constant 0 : index
    %c0_6 = arith.constant 0 : index
    %5 = vector.load %arg4[%c0_5, %c0_6] : memref<1x128xf32, #tpu.memory_space<vmem>>, vector<1x128xf32>
    %6 = vector.broadcast %5 : vector<1x128xf32> to vector<64x128xf32>
    %7 = arith.addf %4, %6 : vector<64x128xf32>
    %cst_7 = arith.constant 0.000000e+00 : f32
    %8 = vector.broadcast %cst_7 : f32 to vector<64x128xf32>
    %9 = arith.maximumf %7, %8 : vector<64x128xf32>
    %10 = vector.shape_cast %9 : vector<64x128xf32> to vector<8x8x128xf32>
    %11 = arith.truncf %10 : vector<8x8x128xf32> to vector<8x8x128xbf16>
    %c0_8 = arith.constant 0 : index
    %c0_9 = arith.constant 0 : index
    %c0_10 = arith.constant 0 : index
    %c0_11 = arith.constant 0 : index
    %12 = vector.load %arg5[%c0_8, %c0_9, %c0_10, %c0_11] : memref<1x8x8x128xbf16, #tpu.memory_space<vmem>>, vector<1x8x8x128xbf16>
    %13 = vector.shape_cast %12 : vector<1x8x8x128xbf16> to vector<8x8x128xbf16>
    %14 = vector.shape_cast %11 : vector<8x8x128xbf16> to vector<1x8x8x128xbf16>
    tpu.vector_store %arg5[%c0_8, %c0_9, %c0_10, %c0_11], %14 {strides = array<i32>} : memref<1x8x8x128xbf16, #tpu.memory_space<vmem>>, vector<1x8x8x128xbf16>,
    return
  }
  func.func @transform_0(%arg0: i32, %arg1: i32) -> (i32, i32, i32, i32) {
    %c0_i32 = arith.constant 0 : i32
    %c0_i32_0 = arith.constant 0 : i32
    %c0_i32_1 = arith.constant 0 : i32
    return %arg0, %arg1, %c0_i32, %c0_i32_0 : i32, i32, i32, i32
  }
  func.func @transform_1(%arg0: i32, %arg1: i32) -> (i32, i32) {
    %c0_i32 = arith.constant 0 : i32
    %c0_i32_0 = arith.constant 0 : i32
    %c0_i32_1 = arith.constant 0 : i32
    return %c0_i32, %c0_i32_0 : i32, i32
  }
  func.func @transform_2(%arg0: i32, %arg1: i32) -> (i32, i32) {
    %c0_i32 = arith.constant 0 : i32
    %c0_i32_0 = arith.constant 0 : i32
    %c0_i32_1 = arith.constant 0 : i32
    return %c0_i32, %c0_i32_0 : i32, i32
  }
  func.func @transform_3(%arg0: i32, %arg1: i32) -> (i32, i32, i32, i32) {
    %c0_i32 = arith.constant 0 : i32
    %c0_i32_0 = arith.constant 0 : i32
    %c0_i32_1 = arith.constant 0 : i32
    return %arg0, %arg1, %c0_i32, %c0_i32_0 : i32, i32, i32, i32
  }
}

module attributes {stable_mosaic.version = 11 : i64} {
  func.func @_conv_packed_kernel(%arg0: i32, %arg1: i32, %arg2: memref<1x8x8x256xbf16, #tpu.memory_space<vmem>>, %arg3: memref<256x128xbf16, #tpu.memory_space<vmem>>, %arg4: memref<1x128xf32, #tpu.memory_space<vmem>>, %arg5: memref<1x8x8x128xbf16, #tpu.memory_space<vmem>>) attributes {dimension_semantics = [#tpu.dimension_semantics<parallel>, #tpu.dimension_semantics<parallel>], iteration_bounds = array<i64: 2, 1>, scalar_prefetch = 0 : i64, scratch_operands = 0 : i64, tpu.core_type = #tpu.core_type<tc>, window_params = [{transform_indices = @transform_0, window_bounds = array<i64: 1, 8, 8, 256>}, {pipeline_mode = #tpu.pipeline_mode<synchronous>, transform_indices = @transform_1, window_bounds = array<i64: 256, 128>}, {pipeline_mode = #tpu.pipeline_mode<synchronous>, transform_indices = @transform_2, window_bounds = array<i64: 1, 128>}, {transform_indices = @transform_3, window_bounds = array<i64: 1, 8, 8, 128>}]} {
    %c0 = arith.constant 0 : index
    %c0_0 = arith.constant 0 : index
    %c0_1 = arith.constant 0 : index
    %c0_2 = arith.constant 0 : index
    %0 = vector.load %arg2[%c0, %c0_0, %c0_1, %c0_2] : memref<1x8x8x256xbf16, #tpu.memory_space<vmem>>, vector<1x8x8x256xbf16>
    %1 = vector.shape_cast %0 : vector<1x8x8x256xbf16> to vector<8x8x256xbf16>
    %2 = vector.shape_cast %1 : vector<8x8x256xbf16> to vector<64x256xbf16>
    %c0_3 = arith.constant 0 : index
    %c0_4 = arith.constant 0 : index
    %3 = vector.load %arg3[%c0_3, %c0_4] : memref<256x128xbf16, #tpu.memory_space<vmem>>, vector<256x128xbf16>
    %cst = arith.constant dense<0.000000e+00> : vector<64x128xf32>
    %4 = tpu.matmul %2, %3, %cst {dimension_numbers = #tpu.dot_dimension_numbers<[1], [0], [0], [1], [0, 0, 1, 1], [], []>} : vector<64x256xbf16>, vector<256x128xbf16>, vector<64x128xf32> -> vector<64x128xf32>
    %c0_5 = arith.constant 0 : index
    %c0_6 = arith.constant 0 : index
    %5 = vector.load %arg4[%c0_5, %c0_6] : memref<1x128xf32, #tpu.memory_space<vmem>>, vector<1x128xf32>
    %6 = vector.broadcast %5 : vector<1x128xf32> to vector<64x128xf32>
    %7 = arith.addf %4, %6 : vector<64x128xf32>
    %cst_7 = arith.constant 0.000000e+00 : f32
    %8 = vector.broadcast %cst_7 : f32 to vector<64x128xf32>
    %9 = arith.maximumf %7, %8 : vector<64x128xf32>
    %10 = vector.shape_cast %9 : vector<64x128xf32> to vector<8x8x128xf32>
    %11 = arith.truncf %10 : vector<8x8x128xf32> to vector<8x8x128xbf16>
    %c0_8 = arith.constant 0 : index
    %c0_9 = arith.constant 0 : index
    %c0_10 = arith.constant 0 : index
    %c0_11 = arith.constant 0 : index
    %12 = vector.load %arg5[%c0_8, %c0_9, %c0_10, %c0_11] : memref<1x8x8x128xbf16, #tpu.memory_space<vmem>>, vector<1x8x8x128xbf16>
    %13 = vector.shape_cast %12 : vector<1x8x8x128xbf16> to vector<8x8x128xbf16>
    %14 = vector.shape_cast %11 : vector<8x8x128xbf16> to vector<1x8x8x128xbf16>
    tpu.vector_store %arg5[%c0_8, %c0_9, %c0_10, %c0_11], %14 {strides = array<i32>} : memref<1x8x8x128xbf16, #tpu.memory_space<vmem>>, vector<1x8x8x128xbf16>,
    return
  }
  func.func @transform_0(%arg0: i32, %arg1: i32) -> (i32, i32, i32, i32) {
    %c0_i32 = arith.constant 0 : i32
    %c0_i32_0 = arith.constant 0 : i32
    %c0_i32_1 = arith.constant 0 : i32
    return %arg0, %arg1, %c0_i32, %c0_i32_0 : i32, i32, i32, i32
  }
  func.func @transform_1(%arg0: i32, %arg1: i32) -> (i32, i32) {
    %c0_i32 = arith.constant 0 : i32
    %c0_i32_0 = arith.constant 0 : i32
    %c0_i32_1 = arith.constant 0 : i32
    return %c0_i32, %c0_i32_0 : i32, i32
  }
  func.func @transform_2(%arg0: i32, %arg1: i32) -> (i32, i32) {
    %c0_i32 = arith.constant 0 : i32
    %c0_i32_0 = arith.constant 0 : i32
    %c0_i32_1 = arith.constant 0 : i32
    return %c0_i32, %c0_i32_0 : i32, i32
  }
  func.func @transform_3(%arg0: i32, %arg1: i32) -> (i32, i32, i32, i32) {
    %c0_i32 = arith.constant 0 : i32
    %c0_i32_0 = arith.constant 0 : i32
    %c0_i32_1 = arith.constant 0 : i32
    return %arg0, %arg1, %c0_i32, %c0_i32_0 : i32, i32, i32, i32
  }
}

module attributes {stable_mosaic.version = 11 : i64} {
  func.func @_maxpool2x2_kernel(%arg0: i32, %arg1: i32, %arg2: memref<1x4x2x4x256xbf16, #tpu.memory_space<vmem>>, %arg3: memref<1x4x4x128xbf16, #tpu.memory_space<vmem>>) attributes {dimension_semantics = [#tpu.dimension_semantics<parallel>, #tpu.dimension_semantics<parallel>], iteration_bounds = array<i64: 2, 1>, scalar_prefetch = 0 : i64, scratch_operands = 0 : i64, tpu.core_type = #tpu.core_type<tc>, window_params = [{transform_indices = @transform_0, window_bounds = array<i64: 1, 4, 2, 4, 256>}, {transform_indices = @transform_1, window_bounds = array<i64: 1, 4, 4, 128>}]} {
    %c0 = arith.constant 0 : index
    %c0_0 = arith.constant 0 : index
    %c0_1 = arith.constant 0 : index
    %c0_2 = arith.constant 0 : index
    %c0_3 = arith.constant 0 : index
    %0 = vector.load %arg2[%c0, %c0_0, %c0_1, %c0_2, %c0_3] : memref<1x4x2x4x256xbf16, #tpu.memory_space<vmem>>, vector<1x4x1x4x256xbf16>
    %1 = vector.shape_cast %0 : vector<1x4x1x4x256xbf16> to vector<4x4x256xbf16>
    %c0_4 = arith.constant 0 : index
    %c0_5 = arith.constant 0 : index
    %c1 = arith.constant 1 : index
    %c0_6 = arith.constant 0 : index
    %c0_7 = arith.constant 0 : index
    %2 = vector.load %arg2[%c0_4, %c0_5, %c1, %c0_6, %c0_7] : memref<1x4x2x4x256xbf16, #tpu.memory_space<vmem>>, vector<1x4x1x4x256xbf16>
    %3 = vector.shape_cast %2 : vector<1x4x1x4x256xbf16> to vector<4x4x256xbf16>
    %4 = arith.maximumf %1, %3 : vector<4x4x256xbf16>
    %5 = vector.extract_strided_slice %4 {offsets = [0, 0, 0], sizes = [4, 4, 128], strides = [1, 1, 1]} : vector<4x4x256xbf16> to vector<4x4x128xbf16>
    %6 = vector.extract_strided_slice %4 {offsets = [0, 0, 128], sizes = [4, 4, 128], strides = [1, 1, 1]} : vector<4x4x256xbf16> to vector<4x4x128xbf16>
    %7 = arith.maximumf %5, %6 : vector<4x4x128xbf16>
    %c0_8 = arith.constant 0 : index
    %c0_9 = arith.constant 0 : index
    %c0_10 = arith.constant 0 : index
    %c0_11 = arith.constant 0 : index
    %8 = vector.load %arg3[%c0_8, %c0_9, %c0_10, %c0_11] : memref<1x4x4x128xbf16, #tpu.memory_space<vmem>>, vector<1x4x4x128xbf16>
    %9 = vector.shape_cast %8 : vector<1x4x4x128xbf16> to vector<4x4x128xbf16>
    %10 = vector.shape_cast %7 : vector<4x4x128xbf16> to vector<1x4x4x128xbf16>
    tpu.vector_store %arg3[%c0_8, %c0_9, %c0_10, %c0_11], %10 {strides = array<i32>} : memref<1x4x4x128xbf16, #tpu.memory_space<vmem>>, vector<1x4x4x128xbf16>,
    return
  }
  func.func @transform_0(%arg0: i32, %arg1: i32) -> (i32, i32, i32, i32, i32) {
    %c0_i32 = arith.constant 0 : i32
    %c0_i32_0 = arith.constant 0 : i32
    %c0_i32_1 = arith.constant 0 : i32
    %c0_i32_2 = arith.constant 0 : i32
    return %arg0, %arg1, %c0_i32, %c0_i32_0, %c0_i32_1 : i32, i32, i32, i32, i32
  }
  func.func @transform_1(%arg0: i32, %arg1: i32) -> (i32, i32, i32, i32) {
    %c0_i32 = arith.constant 0 : i32
    %c0_i32_0 = arith.constant 0 : i32
    %c0_i32_1 = arith.constant 0 : i32
    return %arg0, %arg1, %c0_i32, %c0_i32_0 : i32, i32, i32, i32
  }
}

module attributes {stable_mosaic.version = 11 : i64} {
  func.func @_matmul_bias_kernel(%arg0: i32, %arg1: i32, %arg2: i32, %arg3: memref<8x1024xbf16, #tpu.memory_space<vmem>>, %arg4: memref<1024x128xbf16, #tpu.memory_space<vmem>>, %arg5: memref<1x128xf32, #tpu.memory_space<vmem>>, %arg6: memref<8x128xbf16, #tpu.memory_space<vmem>>, %arg7: memref<8x128xf32, #tpu.memory_space<vmem>>) attributes {dimension_semantics = [#tpu.dimension_semantics<parallel>, #tpu.dimension_semantics<parallel>, #tpu.dimension_semantics<arbitrary>], iteration_bounds = array<i64: 1, 1, 2>, scalar_prefetch = 0 : i64, scratch_operands = 1 : i64, tpu.core_type = #tpu.core_type<tc>, window_params = [{transform_indices = @transform_0, window_bounds = array<i64: 8, 1024>}, {transform_indices = @transform_1, window_bounds = array<i64: 1024, 128>}, {transform_indices = @transform_2, window_bounds = array<i64: 1, 128>}, {transform_indices = @transform_3, window_bounds = array<i64: 8, 128>}]} {
    %c0 = arith.constant 0 : index
    %c0_0 = arith.constant 0 : index
    %0 = vector.load %arg3[%c0, %c0_0] : memref<8x1024xbf16, #tpu.memory_space<vmem>>, vector<8x1024xbf16>
    %c0_1 = arith.constant 0 : index
    %c0_2 = arith.constant 0 : index
    %1 = vector.load %arg4[%c0_1, %c0_2] : memref<1024x128xbf16, #tpu.memory_space<vmem>>, vector<1024x128xbf16>
    %cst = arith.constant dense<0.000000e+00> : vector<8x128xf32>
    %2 = tpu.matmul %0, %1, %cst {dimension_numbers = #tpu.dot_dimension_numbers<[1], [0], [0], [1], [0, 0, 1, 1], [], []>} : vector<8x1024xbf16>, vector<1024x128xbf16>, vector<8x128xf32> -> vector<8x128xf32>
    %c0_i32 = arith.constant 0 : i32
    %3 = arith.cmpi eq, %arg2, %c0_i32 : i32
    %4 = arith.extui %3 : i1 to i32
    %c0_i32_3 = arith.constant 0 : i32
    %5 = arith.cmpi ne, %4, %c0_i32_3 : i32
    scf.if %5 {
      %c0_7 = arith.constant 0 : index
      %c0_8 = arith.constant 0 : index
      %12 = vector.load %arg7[%c0_7, %c0_8] : memref<8x128xf32, #tpu.memory_space<vmem>>, vector<8x128xf32>
      tpu.vector_store %arg7[%c0_7, %c0_8], %2 {strides = array<i32>} : memref<8x128xf32, #tpu.memory_space<vmem>>, vector<8x128xf32>,
    } else {
    }
    %c0_i32_4 = arith.constant 0 : i32
    %6 = arith.cmpi sgt, %arg2, %c0_i32_4 : i32
    %7 = arith.extui %6 : i1 to i32
    %c0_i32_5 = arith.constant 0 : i32
    %8 = arith.cmpi ne, %7, %c0_i32_5 : i32
    scf.if %8 {
      %c0_7 = arith.constant 0 : index
      %c0_8 = arith.constant 0 : index
      %12 = vector.load %arg7[%c0_7, %c0_8] : memref<8x128xf32, #tpu.memory_space<vmem>>, vector<8x128xf32>
      %13 = arith.addf %12, %2 : vector<8x128xf32>
      %c0_9 = arith.constant 0 : index
      %c0_10 = arith.constant 0 : index
      %14 = vector.load %arg7[%c0_9, %c0_10] : memref<8x128xf32, #tpu.memory_space<vmem>>, vector<8x128xf32>
      tpu.vector_store %arg7[%c0_9, %c0_10], %13 {strides = array<i32>} : memref<8x128xf32, #tpu.memory_space<vmem>>, vector<8x128xf32>,
    } else {
    }
    %c1_i32 = arith.constant 1 : i32
    %9 = arith.cmpi eq, %arg2, %c1_i32 : i32
    %10 = arith.extui %9 : i1 to i32
    %c0_i32_6 = arith.constant 0 : i32
    %11 = arith.cmpi ne, %10, %c0_i32_6 : i32
    scf.if %11 {
      %c0_7 = arith.constant 0 : index
      %c0_8 = arith.constant 0 : index
      %12 = vector.load %arg7[%c0_7, %c0_8] : memref<8x128xf32, #tpu.memory_space<vmem>>, vector<8x128xf32>
      %c0_9 = arith.constant 0 : index
      %c0_10 = arith.constant 0 : index
      %13 = vector.load %arg5[%c0_9, %c0_10] : memref<1x128xf32, #tpu.memory_space<vmem>>, vector<1x128xf32>
      %14 = vector.broadcast %13 : vector<1x128xf32> to vector<8x128xf32>
      %15 = arith.addf %12, %14 : vector<8x128xf32>
      %cst_11 = arith.constant 0.000000e+00 : f32
      %16 = vector.broadcast %cst_11 : f32 to vector<8x128xf32>
      %17 = arith.maximumf %15, %16 : vector<8x128xf32>
      %18 = arith.truncf %17 : vector<8x128xf32> to vector<8x128xbf16>
      %c0_12 = arith.constant 0 : index
      %c0_13 = arith.constant 0 : index
      %19 = vector.load %arg6[%c0_12, %c0_13] : memref<8x128xbf16, #tpu.memory_space<vmem>>, vector<8x128xbf16>
      tpu.vector_store %arg6[%c0_12, %c0_13], %18 {strides = array<i32>} : memref<8x128xbf16, #tpu.memory_space<vmem>>, vector<8x128xbf16>,
    } else {
    }
    return
  }
  func.func @transform_0(%arg0: i32, %arg1: i32, %arg2: i32) -> (i32, i32) {
    %c0_i32 = arith.constant 0 : i32
    return %arg0, %arg2 : i32, i32
  }
  func.func @transform_1(%arg0: i32, %arg1: i32, %arg2: i32) -> (i32, i32) {
    %c0_i32 = arith.constant 0 : i32
    return %arg2, %arg1 : i32, i32
  }
  func.func @transform_2(%arg0: i32, %arg1: i32, %arg2: i32) -> (i32, i32) {
    %c0_i32 = arith.constant 0 : i32
    %c0_i32_0 = arith.constant 0 : i32
    return %c0_i32, %arg1 : i32, i32
  }
  func.func @transform_3(%arg0: i32, %arg1: i32, %arg2: i32) -> (i32, i32) {
    %c0_i32 = arith.constant 0 : i32
    return %arg0, %arg1 : i32, i32
  }
}

module attributes {stable_mosaic.version = 11 : i64} {
  func.func @_matmul_bias_kernel(%arg0: i32, %arg1: i32, %arg2: i32, %arg3: memref<8x128xbf16, #tpu.memory_space<vmem>>, %arg4: memref<128x128xbf16, #tpu.memory_space<vmem>>, %arg5: memref<1x128xf32, #tpu.memory_space<vmem>>, %arg6: memref<8x128xbf16, #tpu.memory_space<vmem>>, %arg7: memref<8x128xf32, #tpu.memory_space<vmem>>) attributes {dimension_semantics = [#tpu.dimension_semantics<parallel>, #tpu.dimension_semantics<parallel>, #tpu.dimension_semantics<arbitrary>], iteration_bounds = array<i64: 1, 1, 1>, scalar_prefetch = 0 : i64, scratch_operands = 1 : i64, tpu.core_type = #tpu.core_type<tc>, window_params = [{transform_indices = @transform_0, window_bounds = array<i64: 8, 128>}, {transform_indices = @transform_1, window_bounds = array<i64: 128, 128>}, {transform_indices = @transform_2, window_bounds = array<i64: 1, 128>}, {transform_indices = @transform_3, window_bounds = array<i64: 8, 128>}]} {
    %c0 = arith.constant 0 : index
    %c0_0 = arith.constant 0 : index
    %0 = vector.load %arg3[%c0, %c0_0] : memref<8x128xbf16, #tpu.memory_space<vmem>>, vector<8x128xbf16>
    %c0_1 = arith.constant 0 : index
    %c0_2 = arith.constant 0 : index
    %1 = vector.load %arg4[%c0_1, %c0_2] : memref<128x128xbf16, #tpu.memory_space<vmem>>, vector<128x128xbf16>
    %cst = arith.constant dense<0.000000e+00> : vector<8x128xf32>
    %2 = tpu.matmul %0, %1, %cst {dimension_numbers = #tpu.dot_dimension_numbers<[1], [0], [0], [1], [0, 0, 1, 1], [], []>} : vector<8x128xbf16>, vector<128x128xbf16>, vector<8x128xf32> -> vector<8x128xf32>
    %c0_i32 = arith.constant 0 : i32
    %3 = arith.cmpi eq, %arg2, %c0_i32 : i32
    %4 = arith.extui %3 : i1 to i32
    %c0_i32_3 = arith.constant 0 : i32
    %5 = arith.cmpi ne, %4, %c0_i32_3 : i32
    scf.if %5 {
      %c0_8 = arith.constant 0 : index
      %c0_9 = arith.constant 0 : index
      %12 = vector.load %arg7[%c0_8, %c0_9] : memref<8x128xf32, #tpu.memory_space<vmem>>, vector<8x128xf32>
      tpu.vector_store %arg7[%c0_8, %c0_9], %2 {strides = array<i32>} : memref<8x128xf32, #tpu.memory_space<vmem>>, vector<8x128xf32>,
    } else {
    }
    %c0_i32_4 = arith.constant 0 : i32
    %6 = arith.cmpi sgt, %arg2, %c0_i32_4 : i32
    %7 = arith.extui %6 : i1 to i32
    %c0_i32_5 = arith.constant 0 : i32
    %8 = arith.cmpi ne, %7, %c0_i32_5 : i32
    scf.if %8 {
      %c0_8 = arith.constant 0 : index
      %c0_9 = arith.constant 0 : index
      %12 = vector.load %arg7[%c0_8, %c0_9] : memref<8x128xf32, #tpu.memory_space<vmem>>, vector<8x128xf32>
      %13 = arith.addf %12, %2 : vector<8x128xf32>
      %c0_10 = arith.constant 0 : index
      %c0_11 = arith.constant 0 : index
      %14 = vector.load %arg7[%c0_10, %c0_11] : memref<8x128xf32, #tpu.memory_space<vmem>>, vector<8x128xf32>
      tpu.vector_store %arg7[%c0_10, %c0_11], %13 {strides = array<i32>} : memref<8x128xf32, #tpu.memory_space<vmem>>, vector<8x128xf32>,
    } else {
    }
    %c0_i32_6 = arith.constant 0 : i32
    %9 = arith.cmpi eq, %arg2, %c0_i32_6 : i32
    %10 = arith.extui %9 : i1 to i32
    %c0_i32_7 = arith.constant 0 : i32
    %11 = arith.cmpi ne, %10, %c0_i32_7 : i32
    scf.if %11 {
      %c0_8 = arith.constant 0 : index
      %c0_9 = arith.constant 0 : index
      %12 = vector.load %arg7[%c0_8, %c0_9] : memref<8x128xf32, #tpu.memory_space<vmem>>, vector<8x128xf32>
      %c0_10 = arith.constant 0 : index
      %c0_11 = arith.constant 0 : index
      %13 = vector.load %arg5[%c0_10, %c0_11] : memref<1x128xf32, #tpu.memory_space<vmem>>, vector<1x128xf32>
      %14 = vector.broadcast %13 : vector<1x128xf32> to vector<8x128xf32>
      %15 = arith.addf %12, %14 : vector<8x128xf32>
      %cst_12 = arith.constant 0.000000e+00 : f32
      %16 = vector.broadcast %cst_12 : f32 to vector<8x128xf32>
      %17 = arith.maximumf %15, %16 : vector<8x128xf32>
      %18 = arith.truncf %17 : vector<8x128xf32> to vector<8x128xbf16>
      %c0_13 = arith.constant 0 : index
      %c0_14 = arith.constant 0 : index
      %19 = vector.load %arg6[%c0_13, %c0_14] : memref<8x128xbf16, #tpu.memory_space<vmem>>, vector<8x128xbf16>
      tpu.vector_store %arg6[%c0_13, %c0_14], %18 {strides = array<i32>} : memref<8x128xbf16, #tpu.memory_space<vmem>>, vector<8x128xbf16>,
    } else {
    }
    return
  }
  func.func @transform_0(%arg0: i32, %arg1: i32, %arg2: i32) -> (i32, i32) {
    %c0_i32 = arith.constant 0 : i32
    return %arg0, %arg2 : i32, i32
  }
  func.func @transform_1(%arg0: i32, %arg1: i32, %arg2: i32) -> (i32, i32) {
    %c0_i32 = arith.constant 0 : i32
    return %arg2, %arg1 : i32, i32
  }
  func.func @transform_2(%arg0: i32, %arg1: i32, %arg2: i32) -> (i32, i32) {
    %c0_i32 = arith.constant 0 : i32
    %c0_i32_0 = arith.constant 0 : i32
    return %c0_i32, %arg1 : i32, i32
  }
  func.func @transform_3(%arg0: i32, %arg1: i32, %arg2: i32) -> (i32, i32) {
    %c0_i32 = arith.constant 0 : i32
    return %arg0, %arg1 : i32, i32
  }
}

module attributes {stable_mosaic.version = 11 : i64} {
  func.func @_matmul_bias_kernel(%arg0: i32, %arg1: i32, %arg2: i32, %arg3: memref<8x128xbf16, #tpu.memory_space<vmem>>, %arg4: memref<128x128xbf16, #tpu.memory_space<vmem>>, %arg5: memref<1x128xf32, #tpu.memory_space<vmem>>, %arg6: memref<8x128xf32, #tpu.memory_space<vmem>>, %arg7: memref<8x128xf32, #tpu.memory_space<vmem>>) attributes {dimension_semantics = [#tpu.dimension_semantics<parallel>, #tpu.dimension_semantics<parallel>, #tpu.dimension_semantics<arbitrary>], iteration_bounds = array<i64: 1, 1, 1>, scalar_prefetch = 0 : i64, scratch_operands = 1 : i64, tpu.core_type = #tpu.core_type<tc>, window_params = [{transform_indices = @transform_0, window_bounds = array<i64: 8, 128>}, {transform_indices = @transform_1, window_bounds = array<i64: 128, 128>}, {transform_indices = @transform_2, window_bounds = array<i64: 1, 128>}, {transform_indices = @transform_3, window_bounds = array<i64: 8, 128>}]} {
    %c0 = arith.constant 0 : index
    %c0_0 = arith.constant 0 : index
    %0 = vector.load %arg3[%c0, %c0_0] : memref<8x128xbf16, #tpu.memory_space<vmem>>, vector<8x128xbf16>
    %c0_1 = arith.constant 0 : index
    %c0_2 = arith.constant 0 : index
    %1 = vector.load %arg4[%c0_1, %c0_2] : memref<128x128xbf16, #tpu.memory_space<vmem>>, vector<128x128xbf16>
    %cst = arith.constant dense<0.000000e+00> : vector<8x128xf32>
    %2 = tpu.matmul %0, %1, %cst {dimension_numbers = #tpu.dot_dimension_numbers<[1], [0], [0], [1], [0, 0, 1, 1], [], []>} : vector<8x128xbf16>, vector<128x128xbf16>, vector<8x128xf32> -> vector<8x128xf32>
    %c0_i32 = arith.constant 0 : i32
    %3 = arith.cmpi eq, %arg2, %c0_i32 : i32
    %4 = arith.extui %3 : i1 to i32
    %c0_i32_3 = arith.constant 0 : i32
    %5 = arith.cmpi ne, %4, %c0_i32_3 : i32
    scf.if %5 {
      %c0_8 = arith.constant 0 : index
      %c0_9 = arith.constant 0 : index
      %12 = vector.load %arg7[%c0_8, %c0_9] : memref<8x128xf32, #tpu.memory_space<vmem>>, vector<8x128xf32>
      tpu.vector_store %arg7[%c0_8, %c0_9], %2 {strides = array<i32>} : memref<8x128xf32, #tpu.memory_space<vmem>>, vector<8x128xf32>,
    } else {
    }
    %c0_i32_4 = arith.constant 0 : i32
    %6 = arith.cmpi sgt, %arg2, %c0_i32_4 : i32
    %7 = arith.extui %6 : i1 to i32
    %c0_i32_5 = arith.constant 0 : i32
    %8 = arith.cmpi ne, %7, %c0_i32_5 : i32
    scf.if %8 {
      %c0_8 = arith.constant 0 : index
      %c0_9 = arith.constant 0 : index
      %12 = vector.load %arg7[%c0_8, %c0_9] : memref<8x128xf32, #tpu.memory_space<vmem>>, vector<8x128xf32>
      %13 = arith.addf %12, %2 : vector<8x128xf32>
      %c0_10 = arith.constant 0 : index
      %c0_11 = arith.constant 0 : index
      %14 = vector.load %arg7[%c0_10, %c0_11] : memref<8x128xf32, #tpu.memory_space<vmem>>, vector<8x128xf32>
      tpu.vector_store %arg7[%c0_10, %c0_11], %13 {strides = array<i32>} : memref<8x128xf32, #tpu.memory_space<vmem>>, vector<8x128xf32>,
    } else {
    }
    %c0_i32_6 = arith.constant 0 : i32
    %9 = arith.cmpi eq, %arg2, %c0_i32_6 : i32
    %10 = arith.extui %9 : i1 to i32
    %c0_i32_7 = arith.constant 0 : i32
    %11 = arith.cmpi ne, %10, %c0_i32_7 : i32
    scf.if %11 {
      %c0_8 = arith.constant 0 : index
      %c0_9 = arith.constant 0 : index
      %12 = vector.load %arg7[%c0_8, %c0_9] : memref<8x128xf32, #tpu.memory_space<vmem>>, vector<8x128xf32>
      %c0_10 = arith.constant 0 : index
      %c0_11 = arith.constant 0 : index
      %13 = vector.load %arg5[%c0_10, %c0_11] : memref<1x128xf32, #tpu.memory_space<vmem>>, vector<1x128xf32>
      %14 = vector.broadcast %13 : vector<1x128xf32> to vector<8x128xf32>
      %15 = arith.addf %12, %14 : vector<8x128xf32>
      %c0_12 = arith.constant 0 : index
      %c0_13 = arith.constant 0 : index
      %16 = vector.load %arg6[%c0_12, %c0_13] : memref<8x128xf32, #tpu.memory_space<vmem>>, vector<8x128xf32>
      tpu.vector_store %arg6[%c0_12, %c0_13], %15 {strides = array<i32>} : memref<8x128xf32, #tpu.memory_space<vmem>>, vector<8x128xf32>,
    } else {
    }
    return
  }
  func.func @transform_0(%arg0: i32, %arg1: i32, %arg2: i32) -> (i32, i32) {
    %c0_i32 = arith.constant 0 : i32
    return %arg0, %arg2 : i32, i32
  }
  func.func @transform_1(%arg0: i32, %arg1: i32, %arg2: i32) -> (i32, i32) {
    %c0_i32 = arith.constant 0 : i32
    return %arg2, %arg1 : i32, i32
  }
  func.func @transform_2(%arg0: i32, %arg1: i32, %arg2: i32) -> (i32, i32) {
    %c0_i32 = arith.constant 0 : i32
    %c0_i32_0 = arith.constant 0 : i32
    return %c0_i32, %arg1 : i32, i32
  }
  func.func @transform_3(%arg0: i32, %arg1: i32, %arg2: i32) -> (i32, i32) {
    %c0_i32 = arith.constant 0 : i32
    return %arg0, %arg1 : i32, i32
  }
}

</mosaic_0001>

<llo_original>
// kernel: vgg_forward.8
$region0: #{vgg_forward.8}
  #allocation0 [shape = 'u32[]', space=smem, size = 0x4, offset = 0x4, fixed_abs, tag = 'smem constant byte address 0x4 - core index']
  #allocation1 [shape = 'u32[144,128]{1,0:T(1,128)}', space=vmem, size = 0x12000, scoped, tag = 'internal scratch']
  %s0 = inlined_call_operand.vmem [shape: bf16[2,16,16,128], index: 0, kind: input, shape index: {}]
  %s1 = inlined_call_operand.vmem [shape: bf16[128,128], index: 1, kind: input, shape index: {}]
  %s2 = inlined_call_operand.vmem [shape: f32[1,128], index: 2, kind: input, shape index: {}]
  %s3 = inlined_call_operand.vmem [shape: bf16[2,16,16,128], index: 3, kind: output, shape index: {}]
  %s4 = sld [smem:[#allocation0]]
  $region45: #{vgg_forward.8} parent=0
    _
  %s6 = ssub.s32 1, %s4
  %s7 = scalar_select 0, %s6, %s4
  loop: start=0, step=1, limit=6
  $region2: #{vgg_forward.8} parent=0 // loop_pre_header
    _
  $region3: #{vgg_forward.8} parent=0 // loop_header
    %s9 = sphi 0, %s13
    %p10 = scmp.ge.s32.totalorder %s9, 6
    %s16 = sphi 0, %s28
    %s17 = sphi 0, %s24
    %s18 = sphi 0, %s16
    %s19 = sphi 0, %s17
    %s20 = sphi 0, %s18
    %s21 = sphi 0, %s19
    %s33 = sphi 0, %s35
    %s36 = sphi 0, %s33
    %s37 = sphi 0, %s36
    %s53 = sphi 0, %s37
    %s57 = sphi 0, %s57
    %s59 = sphi 0, %s57
    %s60 = sphi 0, %s59
    %s74 = sphi 0, %s60
    %s78 = sphi 0, %s78
    %s80 = sphi 0, %s78
    %s81 = sphi 0, %s80
    %s95 = sphi 0, %s81
    %s103 = sphi 0, %s105
    %s106 = sphi 0, %s103
    %s107 = sphi 0, %s106
    %s123 = sphi 0, %s107
  $region4: #{vgg_forward.8} parent=0 // loop_header_branch
    %12 = sbr.rel (%p10) target = $region8
  $region5: #{vgg_forward.8} parent=0 // loop_body
    %s14 = ssub.s32 %s9, 1
    %s15 = ssub.s32 %s9, 2
    %s22 = sadd.s32 1, %s17
    %p23 = scmp.ge.s32.totalorder %s22, 2
    %s24 = scalar_select %p23, 0, %s22
    %s25 = sadd.s32 1, %s16
    %s26 = scalar_select %p23, %s25, %s16
    %p27 = scmp.ge.s32.totalorder %s26, 2
    %s28 = scalar_select %p27, 0, %s26
    %s29 = ssub.s32 %s16, %s28
    %s30 = ssub.s32 %s17, %s24
    %s31 = sor.u32 %s29, %s30
    %p32 = scmp.eq.s32.totalorder %s31, 0
    %s34 = sadd.s32 %s33, 1
    %s35 = scalar_select %p32, %s33, %s34
    %p38 = pneg %p32
    %p39 = scmp.eq.s32.totalorder %s9, 3
    %p40 = por %p38, %p39
    %p41 = scmp.ne.s32.totalorder %s33, %s36
    %p42 = scmp.eq.s32.totalorder %s9, 0
    %p43 = por %p41, %p42
    %p44 = scmp.ne.s32.totalorder %s33, %s36
    %p45 = scmp.eq.s32.totalorder %s14, 3
    %p46 = por %p44, %p45
    %p47 = scmp.ne.s32.totalorder %s36, %s37
    %p48 = scmp.eq.s32.totalorder %s14, 0
    %p49 = por %p47, %p48
    %p50 = scmp.ne.s32.totalorder %s36, %s37
    %p51 = scmp.eq.s32.totalorder %s15, 3
    %p52 = por %p50, %p51
    %p54 = scmp.ne.s32.totalorder %s37, %s53
    %p55 = scmp.eq.s32.totalorder %s15, 0
    %p56 = por %p54, %p55
    %s58 = sadd.s32 %s57, 1
    %p61 = scmp.eq.s32.totalorder %s9, 3
    %p62 = scmp.ne.s32.totalorder %s57, %s59
    %p63 = scmp.eq.s32.totalorder %s9, 0
    %p64 = por %p62, %p63
    %p65 = scmp.ne.s32.totalorder %s57, %s59
    %p66 = scmp.eq.s32.totalorder %s14, 3
    %p67 = por %p65, %p66
    %p68 = scmp.ne.s32.totalorder %s59, %s60
    %p69 = scmp.eq.s32.totalorder %s14, 0
    %p70 = por %p68, %p69
    %p71 = scmp.ne.s32.totalorder %s59, %s60
    %p72 = scmp.eq.s32.totalorder %s15, 3
    %p73 = por %p71, %p72
    %p75 = scmp.ne.s32.totalorder %s60, %s74
    %p76 = scmp.eq.s32.totalorder %s15, 0
    %p77 = por %p75, %p76
    %s79 = sadd.s32 %s78, 1
    %p82 = scmp.eq.s32.totalorder %s9, 3
    %p83 = scmp.ne.s32.totalorder %s78, %s80
    %p84 = scmp.eq.s32.totalorder %s9, 0
    %p85 = por %p83, %p84
    %p86 = scmp.ne.s32.totalorder %s78, %s80
    %p87 = scmp.eq.s32.totalorder %s14, 3
    %p88 = por %p86, %p87
    %p89 = scmp.ne.s32.totalorder %s80, %s81
    %p90 = scmp.eq.s32.totalorder %s14, 0
    %p91 = por %p89, %p90
    %p92 = scmp.ne.s32.totalorder %s80, %s81
    %p93 = scmp.eq.s32.totalorder %s15, 3
    %p94 = por %p92, %p93
    %p96 = scmp.ne.s32.totalorder %s81, %s95
    %p97 = scmp.eq.s32.totalorder %s15, 0
    %p98 = por %p96, %p97
    %s99 = ssub.s32 %s16, %s28
    %s100 = ssub.s32 %s17, %s24
    %s101 = sor.u32 %s99, %s100
    %p102 = scmp.eq.s32.totalorder %s101, 0
    %s104 = sadd.s32 %s103, 1
    %s105 = scalar_select %p102, %s103, %s104
    %p108 = pneg %p102
    %p109 = scmp.eq.s32.totalorder %s9, 3
    %p110 = por %p108, %p109
    %p111 = scmp.ne.s32.totalorder %s103, %s106
    %p112 = scmp.eq.s32.totalorder %s9, 0
    %p113 = por %p111, %p112
    %p114 = scmp.ne.s32.totalorder %s103, %s106
    %p115 = scmp.eq.s32.totalorder %s14, 3
    %p116 = por %p114, %p115
    %p117 = scmp.ne.s32.totalorder %s106, %s107
    %p118 = scmp.eq.s32.totalorder %s14, 0
    %p119 = por %p117, %p118
    %p120 = scmp.ne.s32.totalorder %s106, %s107
    %p121 = scmp.eq.s32.totalorder %s15, 3
    %p122 = por %p120, %p121
    %p124 = scmp.ne.s32.totalorder %s107, %s123
    %p125 = scmp.eq.s32.totalorder %s15, 0
    %p126 = por %p124, %p125
    %p127 = scmp.le.s32.totalorder 1, %s9
    %p128 = scmp.lt.s32.totalorder %s9, 5
    %p129 = pnand %p127, %p128
    %p130 = pneg %p129
    // Predicated region
    $region9: #{vgg_forward.8} parent=5 // pred_check
      _
    $region10: #{vgg_forward.8} parent=5 // pred_check_branch
      %132 = sbr.rel (%p129) target = $region12
    $region11: #{vgg_forward.8} parent=5 // pred_region
      %s133 = ssub.s32 %s9, 1
      // Predicated region
      $region13: #{vgg_forward.8} parent=11 // pred_check
        %p134 = pneg %p70
      $region14: #{vgg_forward.8} parent=11 // pred_check_branch
        %136 = sbr.rel (%p134) target = $region16
      $region15: #{vgg_forward.8} parent=11 // pred_region
        _
      $region16: #{vgg_forward.8} parent=11 // pred_fallthru
        _
      // Predicated region
      $region17: #{vgg_forward.8} parent=11 // pred_check
        %p137 = pneg %p91
      $region18: #{vgg_forward.8} parent=11 // pred_check_branch
        %139 = sbr.rel (%p137) target = $region20
      $region19: #{vgg_forward.8} parent=11 // pred_region
        _
      $region20: #{vgg_forward.8} parent=11 // pred_fallthru
        _
    $region12: #{vgg_forward.8} parent=5 // pred_fallthru
      _
    %p140 = scmp.lt.s32.totalorder %s9, 4
    // Predicated region
    $region21: #{vgg_forward.8} parent=5 // pred_check
      %p141 = pneg %p140
    $region22: #{vgg_forward.8} parent=5 // pred_check_branch
      %143 = sbr.rel (%p141) target = $region24
    $region23: #{vgg_forward.8} parent=5 // pred_region
      // Predicated region
      $region25: #{vgg_forward.8} parent=23 // pred_check
        %p144 = pneg %p43
      $region26: #{vgg_forward.8} parent=23 // pred_check_branch
        %146 = sbr.rel (%p144) target = $region28
      $region27: #{vgg_forward.8} parent=23 // pred_region
        %s147 = smul.u32 8, %s17
        %p148 = scmp.lt.s32.totalorder %s16, 1
        %s149 = scalar_select %p148, %s16, 1
        %p150 = scmp.lt.s32.totalorder %s147, 15
        %s151 = scalar_select %p150, %s147, 15
        %s152 = smul.addr %s151, 2
        %s153 = smul.addr %s149, 32
        %s154 = sadd.s32 %s152, %s153
        %s155 = smul.addr %s154, 4
        %s156 = scalar_lea.vmem %s0, %s155
        %s157 = smul.u32 8, %s17
      $region28: #{vgg_forward.8} parent=23 // pred_fallthru
        _
    $region24: #{vgg_forward.8} parent=5 // pred_fallthru
      _
    %p158 = scmp.le.s32.totalorder 1, %s9
    %p159 = scmp.lt.s32.totalorder %s9, 5
    %p160 = pnand %p158, %p159
    %p161 = pneg %p160
    // Predicated region
    $region29: #{vgg_forward.8} parent=5 // pred_check
      _
    $region30: #{vgg_forward.8} parent=5 // pred_check_branch
      %163 = sbr.rel (%p160) target = $region32
    $region31: #{vgg_forward.8} parent=5 // pred_region
      %s164 = ssub.s32 %s9, 1
      %s165 = smul.u32 8, %s19
      %p166 = scmp.lt.s32.totalorder %s18, 1
      %s167 = scalar_select %p166, %s18, 1
      %p168 = scmp.lt.s32.totalorder %s165, 15
      %s169 = scalar_select %p168, %s165, 15
      %s170 = smul.addr %s169, 2
      %s171 = smul.addr %s167, 32
      %s172 = sadd.s32 %s170, %s171
      %s173 = smul.addr %s172, 4
      %s174 = scalar_lea.vmem %s0, %s173
      %p175 = pneg %p49
      %p176 = pneg %p46
      %p177 = pneg %p70
      %p178 = pneg %p67
      %p179 = pneg %p91
      %p180 = pneg %p88
      %p181 = pneg %p119
      %p182 = pneg %p116
      %s183 = smul.u32 8, %s19
      %p184 = scmp.lt.s32.totalorder %s18, 1
      %s185 = scalar_select %p184, %s18, 1
      %p186 = scmp.lt.s32.totalorder %s183, 15
      %s187 = scalar_select %p186, %s183, 15
      %s188 = smul.addr %s187, 2
      %s189 = smul.addr %s185, 32
      %s190 = sadd.s32 %s188, %s189
      %s191 = smul.addr %s190, 4
      %s192 = scalar_lea.vmem %s3, %s191
      %s193 = smul.u32 8, %s19
      %p194 = scmp.lt.s32.totalorder %s18, 1
      %s195 = scalar_select %p194, %s18, 1
      %p196 = scmp.lt.s32.totalorder %s193, 15
      %s197 = scalar_select %p196, %s193, 15
      %s198 = smul.addr %s197, 2
      %s199 = smul.addr %s195, 32
      %s200 = sadd.s32 %s198, %s199
      %s201 = smul.addr %s200, 4
      %s202 = scalar_lea.vmem %s0, %s201
      %s203 = smul.u32 8, %s19
      %s204 = smul.u32 8, %s19
      %p205 = scmp.lt.s32.totalorder %s18, 1
      %s206 = scalar_select %p205, %s18, 1
      %p207 = scmp.lt.s32.totalorder %s204, 15
      %s208 = scalar_select %p207, %s204, 15
      %s209 = smul.addr %s208, 2
      %s210 = smul.addr %s206, 32
      %s211 = sadd.s32 %s209, %s210
      %s212 = smul.addr %s211, 4
      %s213 = scalar_lea.vmem %s3, %s212
      %s214 = smul.u32 8, %s19
      %v216 = vld [vmem:[%s202] sm:$0xf]
      %v217 = vld [vmem:[%s202 + $0x4] sm:$0xf]
      %v218 = vld [vmem:[%s202 + $0x8] sm:$0xf]
      %v219 = vld [vmem:[%s202 + $0xc] sm:$0xf]
      %v220 = vld [vmem:[%s202 + $0x10] sm:$0xf]
      %v221 = vld [vmem:[%s202 + $0x14] sm:$0xf]
      %v222 = vld [vmem:[%s202 + $0x18] sm:$0xf]
      %v223 = vld [vmem:[%s202 + $0x1c] sm:$0xf]
      %v224 = vld [vmem:[%s202 + $0x20] sm:$0xf]
      %v225 = vld [vmem:[%s202 + $0x24] sm:$0xf]
      %v226 = vld [vmem:[%s202 + $0x28] sm:$0xf]
      %v227 = vld [vmem:[%s202 + $0x2c] sm:$0xf]
      %v228 = vld [vmem:[%s202 + $0x30] sm:$0xf]
      %v229 = vld [vmem:[%s202 + $0x34] sm:$0xf]
      %v230 = vld [vmem:[%s202 + $0x38] sm:$0xf]
      %v231 = vld [vmem:[%s202 + $0x3c] sm:$0xf]
      %v232 = vld [vmem:[%s1] sm:$0xf]
      %v233 = vld [vmem:[%s1 + $0x4] sm:$0xf]
      %v234 = vld [vmem:[%s1 + $0x8] sm:$0xf]
      %v235 = vld [vmem:[%s1 + $0xc] sm:$0xf]
      %v236 = vld [vmem:[%s1 + $0x10] sm:$0xf]
      %v237 = vld [vmem:[%s1 + $0x14] sm:$0xf]
      %v238 = vld [vmem:[%s1 + $0x18] sm:$0xf]
      %v239 = vld [vmem:[%s1 + $0x1c] sm:$0xf]
      %v240 = vld [vmem:[%s1 + $0x20] sm:$0xf]
      %v241 = vld [vmem:[%s1 + $0x24] sm:$0xf]
      %v242 = vld [vmem:[%s1 + $0x28] sm:$0xf]
      %v243 = vld [vmem:[%s1 + $0x2c] sm:$0xf]
      %v244 = vld [vmem:[%s1 + $0x30] sm:$0xf]
      %v245 = vld [vmem:[%s1 + $0x34] sm:$0xf]
      %v246 = vld [vmem:[%s1 + $0x38] sm:$0xf]
      %v247 = vld [vmem:[%s1 + $0x3c] sm:$0xf]
      %v248 = vld [vmem:[%s2] sm:$0x1]
      %v250 = vlaneseq
      %v251 = vshrl.u32 %v250, 7
      %v252 = vsub.s32 0, %v251
      %v253 = vrot.slane %v248, %v252
      %v271 = vunpack.c.l.b16 %v216
      %v272 = vunpack.c.l.b16 %v217
      %v273 = vunpack.c.l.b16 %v218
      %v274 = vunpack.c.l.b16 %v219
      %v275 = vunpack.c.l.b16 %v220
      %v276 = vunpack.c.l.b16 %v221
      %v277 = vunpack.c.l.b16 %v222
      %v278 = vunpack.c.l.b16 %v223
      %v279 = vunpack.c.l.b16 %v224
      %v280 = vunpack.c.l.b16 %v225
      %v281 = vunpack.c.l.b16 %v226
      %v282 = vunpack.c.l.b16 %v227
      %v283 = vunpack.c.l.b16 %v228
      %v284 = vunpack.c.l.b16 %v229
      %v285 = vunpack.c.l.b16 %v230
      %v286 = vunpack.c.l.b16 %v231
      %v287 = vpack.c.b16 %v272, %v271
      %v288 = vpack.c.b16 %v274, %v273
      %v289 = vpack.c.b16 %v276, %v275
      %v290 = vpack.c.b16 %v278, %v277
      %v291 = vpack.c.b16 %v280, %v279
      %v292 = vpack.c.b16 %v282, %v281
      %v293 = vpack.c.b16 %v284, %v283
      %v294 = vpack.c.b16 %v286, %v285
      %v319 = vunpack.c.l.b16 %v232
      %v320 = vunpack.c.l.b16 %v233
      %v321 = vunpack.c.l.b16 %v234
      %v322 = vunpack.c.l.b16 %v235
      %v323 = vunpack.c.l.b16 %v236
      %v324 = vunpack.c.l.b16 %v237
      %v325 = vunpack.c.l.b16 %v238
      %v326 = vunpack.c.l.b16 %v239
      %v327 = vunpack.c.l.b16 %v240
      %v328 = vunpack.c.l.b16 %v241
      %v329 = vunpack.c.l.b16 %v242
      %v330 = vunpack.c.l.b16 %v243
      %v331 = vunpack.c.l.b16 %v244
      %v332 = vunpack.c.l.b16 %v245
      %v333 = vunpack.c.l.b16 %v246
      %v334 = vunpack.c.l.b16 %v247
      %v335 = vpack.c.b16 %v320, %v319
      %v336 = vpack.c.b16 %v322, %v321
      %v337 = vpack.c.b16 %v324, %v323
      %v338 = vpack.c.b16 %v326, %v325
      %v339 = vpack.c.b16 %v328, %v327
      %v340 = vpack.c.b16 %v330, %v329
      %v341 = vpack.c.b16 %v332, %v331
      %v342 = vpack.c.b16 %v334, %v333
      %351 = vmatprep.subr.bf16.mxu0 0
      %352 = vmatpush1.bf16.msra.mxu0 %v335
      %353 = vmatprep.subr.bf16.mxu0 0
      %354 = vmatpush1.bf16.msra.mxu0 %v336
      %355 = vmatprep.subr.bf16.mxu0 0
      %356 = vmatpush1.bf16.msra.mxu0 %v337
      %357 = vmatprep.subr.bf16.mxu0 0
      %358 = vmatpush1.bf16.msra.mxu0 %v338
      %359 = vmatprep.subr.bf16.mxu0 0
      %360 = vmatpush1.bf16.msra.mxu0 %v339
      %361 = vmatprep.subr.bf16.mxu0 0
      %362 = vmatpush1.bf16.msra.mxu0 %v340
      %363 = vmatprep.subr.bf16.mxu0 0
      %364 = vmatpush1.bf16.msra.mxu0 %v341
      %365 = vmatprep.subr.bf16.mxu0 0
      %366 = vmatpush1.bf16.msra.mxu0 %v342
      %367 = vmatprep.subr.bf16.mxu0 0
      %368 = vmatpush1.bf16.msra.mxu0 0
      %369 = vmatprep.subr.bf16.mxu0 0
      %370 = vmatpush1.bf16.msra.mxu0 0
      %371 = vmatprep.subr.bf16.mxu0 0
      %372 = vmatpush1.bf16.msra.mxu0 0
      %373 = vmatprep.subr.bf16.mxu0 0
      %374 = vmatpush1.bf16.msra.mxu0 0
      %375 = vmatprep.subr.bf16.mxu0 0
      %376 = vmatpush1.bf16.msra.mxu0 0
      %377 = vmatprep.subr.bf16.mxu0 0
      %378 = vmatpush1.bf16.msra.mxu0 0
      %379 = vmatprep.subr.bf16.mxu0 0
      %380 = vmatpush1.bf16.msra.mxu0 0
      %381 = vmatprep.subr.bf16.mxu0 0
      %382 = vmatpush1.bf16.msra.mxu0 0
      %383 = vmatprep.mubr.bf16.mxu0 0
      %384 = vmatmul.mubr.bf16.gmra.mrb[0].mxu0 %v287
      %v385 = vpop.f32.mrb[0].mxu0
      %v386 = vadd.f32 %v253, %v385
      %v387 = vpop.f32.mrb[0].mxu0
      %v388 = vpop.f32.mrb[0].mxu0
      %v389 = vadd.f32 %v253, %v388
      %v390 = vpop.f32.mrb[0].mxu0
      %391 = vmatprep.mubr.bf16.mxu0 0
      %392 = vmatmul.mubr.bf16.gmra.mrb[0].mxu0 %v288
      %v393 = vpop.f32.mrb[0].mxu0
      %v394 = vadd.f32 %v253, %v393
      %v395 = vpop.f32.mrb[0].mxu0
      %v396 = vpop.f32.mrb[0].mxu0
      %v397 = vadd.f32 %v253, %v396
      %v398 = vpop.f32.mrb[0].mxu0
      %399 = vmatprep.mubr.bf16.mxu0 0
      %400 = vmatmul.mubr.bf16.gmra.mrb[0].mxu0 %v289
      %v401 = vpop.f32.mrb[0].mxu0
      %v402 = vadd.f32 %v253, %v401
      %v403 = vpop.f32.mrb[0].mxu0
      %v404 = vpop.f32.mrb[0].mxu0
      %v405 = vadd.f32 %v253, %v404
      %v406 = vpop.f32.mrb[0].mxu0
      %407 = vmatprep.mubr.bf16.mxu0 0
      %408 = vmatmul.mubr.bf16.gmra.mrb[0].mxu0 %v290
      %v409 = vpop.f32.mrb[0].mxu0
      %v410 = vadd.f32 %v253, %v409
      %v411 = vpop.f32.mrb[0].mxu0
      %v412 = vpop.f32.mrb[0].mxu0
      %v413 = vadd.f32 %v253, %v412
      %v414 = vpop.f32.mrb[0].mxu0
      %415 = vmatprep.mubr.bf16.mxu0 0
      %416 = vmatmul.mubr.bf16.gmra.mrb[0].mxu0 %v291
      %v417 = vpop.f32.mrb[0].mxu0
      %v418 = vadd.f32 %v253, %v417
      %v419 = vpop.f32.mrb[0].mxu0
      %v420 = vpop.f32.mrb[0].mxu0
      %v421 = vadd.f32 %v253, %v420
      %v422 = vpop.f32.mrb[0].mxu0
      %423 = vmatprep.mubr.bf16.mxu0 0
      %424 = vmatmul.mubr.bf16.gmra.mrb[0].mxu0 %v292
      %v425 = vpop.f32.mrb[0].mxu0
      %v426 = vadd.f32 %v253, %v425
      %v427 = vpop.f32.mrb[0].mxu0
      %v428 = vpop.f32.mrb[0].mxu0
      %v429 = vadd.f32 %v253, %v428
      %v430 = vpop.f32.mrb[0].mxu0
      %431 = vmatprep.mubr.bf16.mxu0 0
      %432 = vmatmul.mubr.bf16.gmra.mrb[0].mxu0 %v293
      %v433 = vpop.f32.mrb[0].mxu0
      %v434 = vadd.f32 %v253, %v433
      %v435 = vpop.f32.mrb[0].mxu0
      %v436 = vpop.f32.mrb[0].mxu0
      %v437 = vadd.f32 %v253, %v436
      %v438 = vpop.f32.mrb[0].mxu0
      %439 = vmatprep.mubr.bf16.mxu0 0
      %440 = vmatmul.mubr.bf16.gmra.mrb[0].mxu0 %v294
      %v441 = vpop.f32.mrb[0].mxu0
      %v442 = vadd.f32 %v253, %v441
      %v443 = vpop.f32.mrb[0].mxu0
      %v444 = vpop.f32.mrb[0].mxu0
      %v445 = vadd.f32 %v253, %v444
      %v446 = vpop.f32.mrb[0].mxu0
      %447 = vdwg.mxu0
      %v448 = vmax.f32 %v386, 0.0
      %v449 = vmax.f32 %v389, 0.0
      %v450 = vmax.f32 %v394, 0.0
      %v451 = vmax.f32 %v397, 0.0
      %v452 = vmax.f32 %v402, 0.0
      %v453 = vmax.f32 %v405, 0.0
      %v454 = vmax.f32 %v410, 0.0
      %v455 = vmax.f32 %v413, 0.0
      %v456 = vmax.f32 %v418, 0.0
      %v457 = vmax.f32 %v421, 0.0
      %v458 = vmax.f32 %v426, 0.0
      %v459 = vmax.f32 %v429, 0.0
      %v460 = vmax.f32 %v434, 0.0
      %v461 = vmax.f32 %v437, 0.0
      %v462 = vmax.f32 %v442, 0.0
      %v463 = vmax.f32 %v445, 0.0
      %v464 = vpack.c.bf16 %v449, %v448
      %v465 = vpack.c.bf16 %v451, %v450
      %v466 = vpack.c.bf16 %v453, %v452
      %v467 = vpack.c.bf16 %v455, %v454
      %v468 = vpack.c.bf16 %v457, %v456
      %v469 = vpack.c.bf16 %v459, %v458
      %v470 = vpack.c.bf16 %v461, %v460
      %v471 = vpack.c.bf16 %v463, %v462
      %v480 = vunpack.c.l.b16 %v464
      %v481 = vunpack.c.h.b16 %v464
      %v482 = vunpack.c.l.b16 %v465
      %v483 = vunpack.c.h.b16 %v465
      %v484 = vunpack.c.l.b16 %v466
      %v485 = vunpack.c.h.b16 %v466
      %v486 = vunpack.c.l.b16 %v467
      %v487 = vunpack.c.h.b16 %v467
      %v488 = vunpack.c.l.b16 %v468
      %v489 = vunpack.c.h.b16 %v468
      %v490 = vunpack.c.l.b16 %v469
      %v491 = vunpack.c.h.b16 %v469
      %v492 = vunpack.c.l.b16 %v470
      %v493 = vunpack.c.h.b16 %v470
      %v494 = vunpack.c.l.b16 %v471
      %v495 = vunpack.c.h.b16 %v471
      %v496 = vpack.c.b16 %v480, %v480
      %v497 = vpack.c.b16 %v481, %v481
      %v498 = vpack.c.b16 %v482, %v482
      %v499 = vpack.c.b16 %v483, %v483
      %v500 = vpack.c.b16 %v484, %v484
      %v501 = vpack.c.b16 %v485, %v485
      %v502 = vpack.c.b16 %v486, %v486
      %v503 = vpack.c.b16 %v487, %v487
      %v504 = vpack.c.b16 %v488, %v488
      %v505 = vpack.c.b16 %v489, %v489
      %v506 = vpack.c.b16 %v490, %v490
      %v507 = vpack.c.b16 %v491, %v491
      %v508 = vpack.c.b16 %v492, %v492
      %v509 = vpack.c.b16 %v493, %v493
      %v510 = vpack.c.b16 %v494, %v494
      %v511 = vpack.c.b16 %v495, %v495
      %528 = vst [vmem:[%s213] sm:$0xf] %v496
      %529 = vst [vmem:[%s213 + $0x4] sm:$0xf] %v497
      %530 = vst [vmem:[%s213 + $0x8] sm:$0xf] %v498
      %531 = vst [vmem:[%s213 + $0xc] sm:$0xf] %v499
      %532 = vst [vmem:[%s213 + $0x10] sm:$0xf] %v500
      %533 = vst [vmem:[%s213 + $0x14] sm:$0xf] %v501
      %534 = vst [vmem:[%s213 + $0x18] sm:$0xf] %v502
      %535 = vst [vmem:[%s213 + $0x1c] sm:$0xf] %v503
      %536 = vst [vmem:[%s213 + $0x20] sm:$0xf] %v504
      %537 = vst [vmem:[%s213 + $0x24] sm:$0xf] %v505
      %538 = vst [vmem:[%s213 + $0x28] sm:$0xf] %v506
      %539 = vst [vmem:[%s213 + $0x2c] sm:$0xf] %v507
      %540 = vst [vmem:[%s213 + $0x30] sm:$0xf] %v508
      %541 = vst [vmem:[%s213 + $0x34] sm:$0xf] %v509
      %542 = vst [vmem:[%s213 + $0x38] sm:$0xf] %v510
      %543 = vst [vmem:[%s213 + $0x3c] sm:$0xf] %v511
      %s544 = smul.u32 8, %s19
      %p545 = scmp.lt.s32.totalorder %s18, 1
      %s546 = scalar_select %p545, %s18, 1
      %p547 = scmp.lt.s32.totalorder %s544, 15
      %s548 = scalar_select %p547, %s544, 15
      %s549 = smul.addr %s548, 2
      %s550 = smul.addr %s546, 32
      %s551 = sadd.s32 %s549, %s550
      %s552 = smul.addr %s551, 4
      %s553 = scalar_lea.vmem %s3, %s552
      // Predicated region
      $region33: #{vgg_forward.8} parent=31 // pred_check
        %p554 = pneg %p116
      $region34: #{vgg_forward.8} parent=31 // pred_check_branch
        %556 = sbr.rel (%p554) target = $region36
      $region35: #{vgg_forward.8} parent=31 // pred_region
        %s557 = smul.u32 8, %s19
      $region36: #{vgg_forward.8} parent=31 // pred_fallthru
        _
    $region32: #{vgg_forward.8} parent=5 // pred_fallthru
      _
    %p558 = scmp.le.s32.totalorder 2, %s9
    // Predicated region
    $region37: #{vgg_forward.8} parent=5 // pred_check
      %p559 = pneg %p558
    $region38: #{vgg_forward.8} parent=5 // pred_check_branch
      %561 = sbr.rel (%p559) target = $region40
    $region39: #{vgg_forward.8} parent=5 // pred_region
      %s562 = ssub.s32 %s9, 2
      // Predicated region
      $region41: #{vgg_forward.8} parent=39 // pred_check
        %p563 = pneg %p122
      $region42: #{vgg_forward.8} parent=39 // pred_check_branch
        %565 = sbr.rel (%p563) target = $region44
      $region43: #{vgg_forward.8} parent=39 // pred_region
        %s566 = smul.u32 8, %s21
        %p567 = scmp.lt.s32.totalorder %s20, 1
        %s568 = scalar_select %p567, %s20, 1
        %p569 = scmp.lt.s32.totalorder %s566, 15
        %s570 = scalar_select %p569, %s566, 15
        %s571 = smul.addr %s570, 2
        %s572 = smul.addr %s568, 32
        %s573 = sadd.s32 %s571, %s572
        %s574 = smul.addr %s573, 4
        %s575 = scalar_lea.vmem %s3, %s574
      $region44: #{vgg_forward.8} parent=39 // pred_fallthru
        _
    $region40: #{vgg_forward.8} parent=5 // pred_fallthru
      _
  $region6: #{vgg_forward.8} parent=0 // loop_footer
    %s13 = sadd.s32 1, %s9
  $region7: #{vgg_forward.8} parent=0 // loop_footer_branch
    %8 = sbr.rel target = $region3
  $region8: #{vgg_forward.8} parent=0 // loop_exit
    _

// kernel: vgg_forward.9
$region0: #{vgg_forward.9}
  #allocation0 [shape = 'u32[]', space=smem, size = 0x4, offset = 0x4, fixed_abs, tag = 'smem constant byte address 0x4 - core index']
  #allocation1 [shape = 'u32[144,128]{1,0:T(1,128)}', space=vmem, size = 0x12000, scoped, tag = 'internal scratch']
  %s0 = inlined_call_operand.vmem [shape: bf16[2,8,2,8,256], index: 0, kind: input, shape index: {}]
  %s1 = inlined_call_operand.vmem [shape: bf16[2,8,8,128], index: 1, kind: output, shape index: {}]
  %s2 = sld [smem:[#allocation0]]
  $region37: #{vgg_forward.9} parent=0
    _
  %s4 = ssub.s32 1, %s2
  %s5 = scalar_select 0, %s4, %s2
  loop: start=0, step=1, limit=4
  $region2: #{vgg_forward.9} parent=0 // loop_pre_header
    _
  $region3: #{vgg_forward.9} parent=0 // loop_header
    %s7 = sphi 0, %s11
    %p8 = scmp.ge.s32.totalorder %s7, 4
    %s14 = sphi 0, %s26
    %s15 = sphi 0, %s22
    %s16 = sphi 0, %s14
    %s17 = sphi 0, %s15
    %s18 = sphi 0, %s16
    %s19 = sphi 0, %s17
    %s31 = sphi 0, %s33
    %s34 = sphi 0, %s31
    %s35 = sphi 0, %s34
    %s51 = sphi 0, %s35
    %s59 = sphi 0, %s61
    %s62 = sphi 0, %s59
    %s63 = sphi 0, %s62
    %s79 = sphi 0, %s63
  $region4: #{vgg_forward.9} parent=0 // loop_header_branch
    %10 = sbr.rel (%p8) target = $region8
  $region5: #{vgg_forward.9} parent=0 // loop_body
    %s12 = ssub.s32 %s7, 1
    %s13 = ssub.s32 %s7, 2
    %s20 = sadd.s32 1, %s15
    %p21 = scmp.ge.s32.totalorder %s20, 1
    %s22 = scalar_select %p21, 0, %s20
    %s23 = sadd.s32 1, %s14
    %s24 = scalar_select %p21, %s23, %s14
    %p25 = scmp.ge.s32.totalorder %s24, 2
    %s26 = scalar_select %p25, 0, %s24
    %s27 = ssub.s32 %s14, %s26
    %s28 = ssub.s32 %s15, %s22
    %s29 = sor.u32 %s27, %s28
    %p30 = scmp.eq.s32.totalorder %s29, 0
    %s32 = sadd.s32 %s31, 1
    %s33 = scalar_select %p30, %s31, %s32
    %p36 = pneg %p30
    %p37 = scmp.eq.s32.totalorder %s7, 1
    %p38 = por %p36, %p37
    %p39 = scmp.ne.s32.totalorder %s31, %s34
    %p40 = scmp.eq.s32.totalorder %s7, 0
    %p41 = por %p39, %p40
    %p42 = scmp.ne.s32.totalorder %s31, %s34
    %p43 = scmp.eq.s32.totalorder %s12, 1
    %p44 = por %p42, %p43
    %p45 = scmp.ne.s32.totalorder %s34, %s35
    %p46 = scmp.eq.s32.totalorder %s12, 0
    %p47 = por %p45, %p46
    %p48 = scmp.ne.s32.totalorder %s34, %s35
    %p49 = scmp.eq.s32.totalorder %s13, 1
    %p50 = por %p48, %p49
    %p52 = scmp.ne.s32.totalorder %s35, %s51
    %p53 = scmp.eq.s32.totalorder %s13, 0
    %p54 = por %p52, %p53
    %s55 = ssub.s32 %s14, %s26
    %s56 = ssub.s32 %s15, %s22
    %s57 = sor.u32 %s55, %s56
    %p58 = scmp.eq.s32.totalorder %s57, 0
    %s60 = sadd.s32 %s59, 1
    %s61 = scalar_select %p58, %s59, %s60
    %p64 = pneg %p58
    %p65 = scmp.eq.s32.totalorder %s7, 1
    %p66 = por %p64, %p65
    %p67 = scmp.ne.s32.totalorder %s59, %s62
    %p68 = scmp.eq.s32.totalorder %s7, 0
    %p69 = por %p67, %p68
    %p70 = scmp.ne.s32.totalorder %s59, %s62
    %p71 = scmp.eq.s32.totalorder %s12, 1
    %p72 = por %p70, %p71
    %p73 = scmp.ne.s32.totalorder %s62, %s63
    %p74 = scmp.eq.s32.totalorder %s12, 0
    %p75 = por %p73, %p74
    %p76 = scmp.ne.s32.totalorder %s62, %s63
    %p77 = scmp.eq.s32.totalorder %s13, 1
    %p78 = por %p76, %p77
    %p80 = scmp.ne.s32.totalorder %s63, %s79
    %p81 = scmp.eq.s32.totalorder %s13, 0
    %p82 = por %p80, %p81
    %p83 = scmp.le.s32.totalorder 1, %s7
    %p84 = scmp.lt.s32.totalorder %s7, 3
    %p85 = pnand %p83, %p84
    %p86 = pneg %p85
    // Predicated region
    $region9: #{vgg_forward.9} parent=5 // pred_check
      _
    $region10: #{vgg_forward.9} parent=5 // pred_check_branch
      %88 = sbr.rel (%p85) target = $region12
    $region11: #{vgg_forward.9} parent=5 // pred_region
      %s89 = ssub.s32 %s7, 1
    $region12: #{vgg_forward.9} parent=5 // pred_fallthru
      _
    %p90 = scmp.lt.s32.totalorder %s7, 2
    // Predicated region
    $region13: #{vgg_forward.9} parent=5 // pred_check
      %p91 = pneg %p90
    $region14: #{vgg_forward.9} parent=5 // pred_check_branch
      %93 = sbr.rel (%p91) target = $region16
    $region15: #{vgg_forward.9} parent=5 // pred_region
      // Predicated region
      $region17: #{vgg_forward.9} parent=15 // pred_check
        %p94 = pneg %p41
      $region18: #{vgg_forward.9} parent=15 // pred_check_branch
        %96 = sbr.rel (%p94) target = $region20
      $region19: #{vgg_forward.9} parent=15 // pred_region
        %s97 = smul.u32 8, %s15
        %p98 = scmp.lt.s32.totalorder %s14, 1
        %s99 = scalar_select %p98, %s14, 1
        %p100 = scmp.lt.s32.totalorder %s97, 7
        %s101 = scalar_select %p100, %s97, 7
        %s102 = smul.addr %s101, 4
        %s103 = smul.addr %s99, 32
        %s104 = sadd.s32 %s102, %s103
        %s105 = smul.addr %s104, 4
        %s106 = scalar_lea.vmem %s0, %s105
        %s107 = smul.u32 8, %s15
      $region20: #{vgg_forward.9} parent=15 // pred_fallthru
        _
    $region16: #{vgg_forward.9} parent=5 // pred_fallthru
      _
    %p108 = scmp.le.s32.totalorder 1, %s7
    %p109 = scmp.lt.s32.totalorder %s7, 3
    %p110 = pnand %p108, %p109
    %p111 = pneg %p110
    // Predicated region
    $region21: #{vgg_forward.9} parent=5 // pred_check
      _
    $region22: #{vgg_forward.9} parent=5 // pred_check_branch
      %113 = sbr.rel (%p110) target = $region24
    $region23: #{vgg_forward.9} parent=5 // pred_region
      %s114 = ssub.s32 %s7, 1
      %s115 = smul.u32 8, %s17
      %p116 = scmp.lt.s32.totalorder %s16, 1
      %s117 = scalar_select %p116, %s16, 1
      %p118 = scmp.lt.s32.totalorder %s115, 7
      %s119 = scalar_select %p118, %s115, 7
      %s120 = smul.addr %s119, 4
      %s121 = smul.addr %s117, 32
      %s122 = sadd.s32 %s120, %s121
      %s123 = smul.addr %s122, 4
      %s124 = scalar_lea.vmem %s0, %s123
      %p125 = pneg %p47
      %p126 = pneg %p44
      %p127 = pneg %p75
      %p128 = pneg %p72
      %s129 = smul.u32 8, %s17
      %p130 = scmp.lt.s32.totalorder %s16, 1
      %s131 = scalar_select %p130, %s16, 1
      %p132 = scmp.lt.s32.totalorder %s129, 7
      %s133 = scalar_select %p132, %s129, 7
      %s134 = smul.addr %s131, 8
      %s135 = sadd.s32 %s133, %s134
      %s136 = smul.addr %s135, 4
      %s137 = scalar_lea.vmem %s1, %s136
      %s138 = smul.u32 8, %s17
      %p139 = scmp.lt.s32.totalorder %s16, 1
      %s140 = scalar_select %p139, %s16, 1
      %p141 = scmp.lt.s32.totalorder %s138, 7
      %s142 = scalar_select %p141, %s138, 7
      %s143 = smul.addr %s142, 4
      %s144 = smul.addr %s140, 32
      %s145 = sadd.s32 %s143, %s144
      %s146 = smul.addr %s145, 4
      %s147 = scalar_lea.vmem %s0, %s146
      %s148 = smul.u32 8, %s17
      %s149 = smul.u32 8, %s17
      %p150 = scmp.lt.s32.totalorder %s16, 1
      %s151 = scalar_select %p150, %s16, 1
      %p152 = scmp.lt.s32.totalorder %s149, 7
      %s153 = scalar_select %p152, %s149, 7
      %s154 = smul.addr %s151, 8
      %s155 = sadd.s32 %s153, %s154
      %s156 = smul.addr %s155, 4
      %s157 = scalar_lea.vmem %s1, %s156
      %s158 = smul.u32 8, %s17
      %v159 = vld [vmem:[%s147] sm:$0xff]
      %v160 = vld [vmem:[%s147 + $0x10] sm:$0xff]
      %v161 = vld [vmem:[%s147 + $0x20] sm:$0xff]
      %v162 = vld [vmem:[%s147 + $0x30] sm:$0xff]
      %v163 = vld [vmem:[%s147 + $0x40] sm:$0xff]
      %v164 = vld [vmem:[%s147 + $0x50] sm:$0xff]
      %v165 = vld [vmem:[%s147 + $0x60] sm:$0xff]
      %v166 = vld [vmem:[%s147 + $0x70] sm:$0xff]
      %s167 = scalar_lea.vmem %s147, 8
      %v168 = vld [vmem:[%s167] sm:$0xff]
      %v169 = vld [vmem:[%s167 + $0x10] sm:$0xff]
      %v170 = vld [vmem:[%s167 + $0x20] sm:$0xff]
      %v171 = vld [vmem:[%s167 + $0x30] sm:$0xff]
      %v172 = vld [vmem:[%s167 + $0x40] sm:$0xff]
      %v173 = vld [vmem:[%s167 + $0x50] sm:$0xff]
      %v174 = vld [vmem:[%s167 + $0x60] sm:$0xff]
      %v175 = vld [vmem:[%s167 + $0x70] sm:$0xff]
      %v176 = vmax.bf16 %v159, %v168
      %v177 = vmax.bf16 %v160, %v169
      %v178 = vmax.bf16 %v161, %v170
      %v179 = vmax.bf16 %v162, %v171
      %v180 = vmax.bf16 %v163, %v172
      %v181 = vmax.bf16 %v164, %v173
      %v182 = vmax.bf16 %v165, %v174
      %v183 = vmax.bf16 %v166, %v175
      %v192 = vrot.slane %v176, 4
      %v193 = vrot.slane %v177, 4
      %v194 = vrot.slane %v178, 4
      %v195 = vrot.slane %v179, 4
      %v196 = vrot.slane %v180, 4
      %v197 = vrot.slane %v181, 4
      %v198 = vrot.slane %v182, 4
      %v199 = vrot.slane %v183, 4
      %v208 = vmax.bf16 %v176, %v192
      %v209 = vmax.bf16 %v177, %v193
      %v210 = vmax.bf16 %v178, %v194
      %v211 = vmax.bf16 %v179, %v195
      %v212 = vmax.bf16 %v180, %v196
      %v213 = vmax.bf16 %v181, %v197
      %v214 = vmax.bf16 %v182, %v198
      %v215 = vmax.bf16 %v183, %v199
      %216 = vst [vmem:[%s157] sm:$0xf] %v208
      %217 = vst [vmem:[%s157 + $0x4] sm:$0xf] %v209
      %218 = vst [vmem:[%s157 + $0x8] sm:$0xf] %v210
      %219 = vst [vmem:[%s157 + $0xc] sm:$0xf] %v211
      %220 = vst [vmem:[%s157 + $0x10] sm:$0xf] %v212
      %221 = vst [vmem:[%s157 + $0x14] sm:$0xf] %v213
      %222 = vst [vmem:[%s157 + $0x18] sm:$0xf] %v214
      %223 = vst [vmem:[%s157 + $0x1c] sm:$0xf] %v215
      %s224 = smul.u32 8, %s17
      %p225 = scmp.lt.s32.totalorder %s16, 1
      %s226 = scalar_select %p225, %s16, 1
      %p227 = scmp.lt.s32.totalorder %s224, 7
      %s228 = scalar_select %p227, %s224, 7
      %s229 = smul.addr %s226, 8
      %s230 = sadd.s32 %s228, %s229
      %s231 = smul.addr %s230, 4
      %s232 = scalar_lea.vmem %s1, %s231
      // Predicated region
      $region25: #{vgg_forward.9} parent=23 // pred_check
        %p233 = pneg %p72
      $region26: #{vgg_forward.9} parent=23 // pred_check_branch
        %235 = sbr.rel (%p233) target = $region28
      $region27: #{vgg_forward.9} parent=23 // pred_region
        %s236 = smul.u32 8, %s17
      $region28: #{vgg_forward.9} parent=23 // pred_fallthru
        _
    $region24: #{vgg_forward.9} parent=5 // pred_fallthru
      _
    %p237 = scmp.le.s32.totalorder 2, %s7
    // Predicated region
    $region29: #{vgg_forward.9} parent=5 // pred_check
      %p238 = pneg %p237
    $region30: #{vgg_forward.9} parent=5 // pred_check_branch
      %240 = sbr.rel (%p238) target = $region32
    $region31: #{vgg_forward.9} parent=5 // pred_region
      %s241 = ssub.s32 %s7, 2
      // Predicated region
      $region33: #{vgg_forward.9} parent=31 // pred_check
        %p242 = pneg %p78
      $region34: #{vgg_forward.9} parent=31 // pred_check_branch
        %244 = sbr.rel (%p242) target = $region36
      $region35: #{vgg_forward.9} parent=31 // pred_region
        %s245 = smul.u32 8, %s19
        %p246 = scmp.lt.s32.totalorder %s18, 1
        %s247 = scalar_select %p246, %s18, 1
        %p248 = scmp.lt.s32.totalorder %s245, 7
        %s249 = scalar_select %p248, %s245, 7
        %s250 = smul.addr %s247, 8
        %s251 = sadd.s32 %s249, %s250
        %s252 = smul.addr %s251, 4
        %s253 = scalar_lea.vmem %s1, %s252
      $region36: #{vgg_forward.9} parent=31 // pred_fallthru
        _
    $region32: #{vgg_forward.9} parent=5 // pred_fallthru
      _
  $region6: #{vgg_forward.9} parent=0 // loop_footer
    %s11 = sadd.s32 1, %s7
  $region7: #{vgg_forward.9} parent=0 // loop_footer_branch
    %6 = sbr.rel target = $region3
  $region8: #{vgg_forward.9} parent=0 // loop_exit
    _

// kernel: vgg_forward.10
$region0: #{vgg_forward.10}
  #allocation0 [shape = 'u32[]', space=smem, size = 0x4, offset = 0x4, fixed_abs, tag = 'smem constant byte address 0x4 - core index']
  #allocation1 [shape = 'u32[144,128]{1,0:T(1,128)}', space=vmem, size = 0x12000, scoped, tag = 'internal scratch']
  %s0 = inlined_call_operand.vmem [shape: bf16[2,8,8,128], index: 0, kind: input, shape index: {}]
  %s1 = inlined_call_operand.vmem [shape: bf16[128,128], index: 1, kind: input, shape index: {}]
  %s2 = inlined_call_operand.vmem [shape: f32[1,128], index: 2, kind: input, shape index: {}]
  %s3 = inlined_call_operand.vmem [shape: bf16[2,8,8,128], index: 3, kind: output, shape index: {}]
  %s4 = sld [smem:[#allocation0]]
  $region45: #{vgg_forward.10} parent=0
    _
  %s6 = ssub.s32 1, %s4
  %s7 = scalar_select 0, %s6, %s4
  loop: start=0, step=1, limit=4
  $region2: #{vgg_forward.10} parent=0 // loop_pre_header
    _
  $region3: #{vgg_forward.10} parent=0 // loop_header
    %s9 = sphi 0, %s13
    %p10 = scmp.ge.s32.totalorder %s9, 4
    %s16 = sphi 0, %s28
    %s17 = sphi 0, %s24
    %s18 = sphi 0, %s16
    %s19 = sphi 0, %s17
    %s20 = sphi 0, %s18
    %s21 = sphi 0, %s19
    %s33 = sphi 0, %s35
    %s36 = sphi 0, %s33
    %s37 = sphi 0, %s36
    %s53 = sphi 0, %s37
    %s57 = sphi 0, %s57
    %s59 = sphi 0, %s57
    %s60 = sphi 0, %s59
    %s74 = sphi 0, %s60
    %s78 = sphi 0, %s78
    %s80 = sphi 0, %s78
    %s81 = sphi 0, %s80
    %s95 = sphi 0, %s81
    %s103 = sphi 0, %s105
    %s106 = sphi 0, %s103
    %s107 = sphi 0, %s106
    %s123 = sphi 0, %s107
  $region4: #{vgg_forward.10} parent=0 // loop_header_branch
    %12 = sbr.rel (%p10) target = $region8
  $region5: #{vgg_forward.10} parent=0 // loop_body
    %s14 = ssub.s32 %s9, 1
    %s15 = ssub.s32 %s9, 2
    %s22 = sadd.s32 1, %s17
    %p23 = scmp.ge.s32.totalorder %s22, 1
    %s24 = scalar_select %p23, 0, %s22
    %s25 = sadd.s32 1, %s16
    %s26 = scalar_select %p23, %s25, %s16
    %p27 = scmp.ge.s32.totalorder %s26, 2
    %s28 = scalar_select %p27, 0, %s26
    %s29 = ssub.s32 %s16, %s28
    %s30 = ssub.s32 %s17, %s24
    %s31 = sor.u32 %s29, %s30
    %p32 = scmp.eq.s32.totalorder %s31, 0
    %s34 = sadd.s32 %s33, 1
    %s35 = scalar_select %p32, %s33, %s34
    %p38 = pneg %p32
    %p39 = scmp.eq.s32.totalorder %s9, 1
    %p40 = por %p38, %p39
    %p41 = scmp.ne.s32.totalorder %s33, %s36
    %p42 = scmp.eq.s32.totalorder %s9, 0
    %p43 = por %p41, %p42
    %p44 = scmp.ne.s32.totalorder %s33, %s36
    %p45 = scmp.eq.s32.totalorder %s14, 1
    %p46 = por %p44, %p45
    %p47 = scmp.ne.s32.totalorder %s36, %s37
    %p48 = scmp.eq.s32.totalorder %s14, 0
    %p49 = por %p47, %p48
    %p50 = scmp.ne.s32.totalorder %s36, %s37
    %p51 = scmp.eq.s32.totalorder %s15, 1
    %p52 = por %p50, %p51
    %p54 = scmp.ne.s32.totalorder %s37, %s53
    %p55 = scmp.eq.s32.totalorder %s15, 0
    %p56 = por %p54, %p55
    %s58 = sadd.s32 %s57, 1
    %p61 = scmp.eq.s32.totalorder %s9, 1
    %p62 = scmp.ne.s32.totalorder %s57, %s59
    %p63 = scmp.eq.s32.totalorder %s9, 0
    %p64 = por %p62, %p63
    %p65 = scmp.ne.s32.totalorder %s57, %s59
    %p66 = scmp.eq.s32.totalorder %s14, 1
    %p67 = por %p65, %p66
    %p68 = scmp.ne.s32.totalorder %s59, %s60
    %p69 = scmp.eq.s32.totalorder %s14, 0
    %p70 = por %p68, %p69
    %p71 = scmp.ne.s32.totalorder %s59, %s60
    %p72 = scmp.eq.s32.totalorder %s15, 1
    %p73 = por %p71, %p72
    %p75 = scmp.ne.s32.totalorder %s60, %s74
    %p76 = scmp.eq.s32.totalorder %s15, 0
    %p77 = por %p75, %p76
    %s79 = sadd.s32 %s78, 1
    %p82 = scmp.eq.s32.totalorder %s9, 1
    %p83 = scmp.ne.s32.totalorder %s78, %s80
    %p84 = scmp.eq.s32.totalorder %s9, 0
    %p85 = por %p83, %p84
    %p86 = scmp.ne.s32.totalorder %s78, %s80
    %p87 = scmp.eq.s32.totalorder %s14, 1
    %p88 = por %p86, %p87
    %p89 = scmp.ne.s32.totalorder %s80, %s81
    %p90 = scmp.eq.s32.totalorder %s14, 0
    %p91 = por %p89, %p90
    %p92 = scmp.ne.s32.totalorder %s80, %s81
    %p93 = scmp.eq.s32.totalorder %s15, 1
    %p94 = por %p92, %p93
    %p96 = scmp.ne.s32.totalorder %s81, %s95
    %p97 = scmp.eq.s32.totalorder %s15, 0
    %p98 = por %p96, %p97
    %s99 = ssub.s32 %s16, %s28
    %s100 = ssub.s32 %s17, %s24
    %s101 = sor.u32 %s99, %s100
    %p102 = scmp.eq.s32.totalorder %s101, 0
    %s104 = sadd.s32 %s103, 1
    %s105 = scalar_select %p102, %s103, %s104
    %p108 = pneg %p102
    %p109 = scmp.eq.s32.totalorder %s9, 1
    %p110 = por %p108, %p109
    %p111 = scmp.ne.s32.totalorder %s103, %s106
    %p112 = scmp.eq.s32.totalorder %s9, 0
    %p113 = por %p111, %p112
    %p114 = scmp.ne.s32.totalorder %s103, %s106
    %p115 = scmp.eq.s32.totalorder %s14, 1
    %p116 = por %p114, %p115
    %p117 = scmp.ne.s32.totalorder %s106, %s107
    %p118 = scmp.eq.s32.totalorder %s14, 0
    %p119 = por %p117, %p118
    %p120 = scmp.ne.s32.totalorder %s106, %s107
    %p121 = scmp.eq.s32.totalorder %s15, 1
    %p122 = por %p120, %p121
    %p124 = scmp.ne.s32.totalorder %s107, %s123
    %p125 = scmp.eq.s32.totalorder %s15, 0
    %p126 = por %p124, %p125
    %p127 = scmp.le.s32.totalorder 1, %s9
    %p128 = scmp.lt.s32.totalorder %s9, 3
    %p129 = pnand %p127, %p128
    %p130 = pneg %p129
    // Predicated region
    $region9: #{vgg_forward.10} parent=5 // pred_check
      _
    $region10: #{vgg_forward.10} parent=5 // pred_check_branch
      %132 = sbr.rel (%p129) target = $region12
    $region11: #{vgg_forward.10} parent=5 // pred_region
      %s133 = ssub.s32 %s9, 1
      // Predicated region
      $region13: #{vgg_forward.10} parent=11 // pred_check
        %p134 = pneg %p70
      $region14: #{vgg_forward.10} parent=11 // pred_check_branch
        %136 = sbr.rel (%p134) target = $region16
      $region15: #{vgg_forward.10} parent=11 // pred_region
        _
      $region16: #{vgg_forward.10} parent=11 // pred_fallthru
        _
      // Predicated region
      $region17: #{vgg_forward.10} parent=11 // pred_check
        %p137 = pneg %p91
      $region18: #{vgg_forward.10} parent=11 // pred_check_branch
        %139 = sbr.rel (%p137) target = $region20
      $region19: #{vgg_forward.10} parent=11 // pred_region
        _
      $region20: #{vgg_forward.10} parent=11 // pred_fallthru
        _
    $region12: #{vgg_forward.10} parent=5 // pred_fallthru
      _
    %p140 = scmp.lt.s32.totalorder %s9, 2
    // Predicated region
    $region21: #{vgg_forward.10} parent=5 // pred_check
      %p141 = pneg %p140
    $region22: #{vgg_forward.10} parent=5 // pred_check_branch
      %143 = sbr.rel (%p141) target = $region24
    $region23: #{vgg_forward.10} parent=5 // pred_region
      // Predicated region
      $region25: #{vgg_forward.10} parent=23 // pred_check
        %p144 = pneg %p43
      $region26: #{vgg_forward.10} parent=23 // pred_check_branch
        %146 = sbr.rel (%p144) target = $region28
      $region27: #{vgg_forward.10} parent=23 // pred_region
        %s147 = smul.u32 8, %s17
        %p148 = scmp.lt.s32.totalorder %s16, 1
        %s149 = scalar_select %p148, %s16, 1
        %p150 = scmp.lt.s32.totalorder %s147, 7
        %s151 = scalar_select %p150, %s147, 7
        %s152 = smul.addr %s149, 8
        %s153 = sadd.s32 %s151, %s152
        %s154 = smul.addr %s153, 4
        %s155 = scalar_lea.vmem %s0, %s154
        %s156 = smul.u32 8, %s17
      $region28: #{vgg_forward.10} parent=23 // pred_fallthru
        _
    $region24: #{vgg_forward.10} parent=5 // pred_fallthru
      _
    %p157 = scmp.le.s32.totalorder 1, %s9
    %p158 = scmp.lt.s32.totalorder %s9, 3
    %p159 = pnand %p157, %p158
    %p160 = pneg %p159
    // Predicated region
    $region29: #{vgg_forward.10} parent=5 // pred_check
      _
    $region30: #{vgg_forward.10} parent=5 // pred_check_branch
      %162 = sbr.rel (%p159) target = $region32
    $region31: #{vgg_forward.10} parent=5 // pred_region
      %s163 = ssub.s32 %s9, 1
      %s164 = smul.u32 8, %s19
      %p165 = scmp.lt.s32.totalorder %s18, 1
      %s166 = scalar_select %p165, %s18, 1
      %p167 = scmp.lt.s32.totalorder %s164, 7
      %s168 = scalar_select %p167, %s164, 7
      %s169 = smul.addr %s166, 8
      %s170 = sadd.s32 %s168, %s169
      %s171 = smul.addr %s170, 4
      %s172 = scalar_lea.vmem %s0, %s171
      %p173 = pneg %p49
      %p174 = pneg %p46
      %p175 = pneg %p70
      %p176 = pneg %p67
      %p177 = pneg %p91
      %p178 = pneg %p88
      %p179 = pneg %p119
      %p180 = pneg %p116
      %s181 = smul.u32 8, %s19
      %p182 = scmp.lt.s32.totalorder %s18, 1
      %s183 = scalar_select %p182, %s18, 1
      %p184 = scmp.lt.s32.totalorder %s181, 7
      %s185 = scalar_select %p184, %s181, 7
      %s186 = smul.addr %s183, 8
      %s187 = sadd.s32 %s185, %s186
      %s188 = smul.addr %s187, 4
      %s189 = scalar_lea.vmem %s3, %s188
      %s190 = smul.u32 8, %s19
      %p191 = scmp.lt.s32.totalorder %s18, 1
      %s192 = scalar_select %p191, %s18, 1
      %p193 = scmp.lt.s32.totalorder %s190, 7
      %s194 = scalar_select %p193, %s190, 7
      %s195 = smul.addr %s192, 8
      %s196 = sadd.s32 %s194, %s195
      %s197 = smul.addr %s196, 4
      %s198 = scalar_lea.vmem %s0, %s197
      %s199 = smul.u32 8, %s19
      %s200 = smul.u32 8, %s19
      %p201 = scmp.lt.s32.totalorder %s18, 1
      %s202 = scalar_select %p201, %s18, 1
      %p203 = scmp.lt.s32.totalorder %s200, 7
      %s204 = scalar_select %p203, %s200, 7
      %s205 = smul.addr %s202, 8
      %s206 = sadd.s32 %s204, %s205
      %s207 = smul.addr %s206, 4
      %s208 = scalar_lea.vmem %s3, %s207
      %s209 = smul.u32 8, %s19
      %v211 = vld [vmem:[%s198] sm:$0xf]
      %v212 = vld [vmem:[%s198 + $0x4] sm:$0xf]
      %v213 = vld [vmem:[%s198 + $0x8] sm:$0xf]
      %v214 = vld [vmem:[%s198 + $0xc] sm:$0xf]
      %v215 = vld [vmem:[%s198 + $0x10] sm:$0xf]
      %v216 = vld [vmem:[%s198 + $0x14] sm:$0xf]
      %v217 = vld [vmem:[%s198 + $0x18] sm:$0xf]
      %v218 = vld [vmem:[%s198 + $0x1c] sm:$0xf]
      %v219 = vld [vmem:[%s1] sm:$0xf]
      %v220 = vld [vmem:[%s1 + $0x4] sm:$0xf]
      %v221 = vld [vmem:[%s1 + $0x8] sm:$0xf]
      %v222 = vld [vmem:[%s1 + $0xc] sm:$0xf]
      %v223 = vld [vmem:[%s1 + $0x10] sm:$0xf]
      %v224 = vld [vmem:[%s1 + $0x14] sm:$0xf]
      %v225 = vld [vmem:[%s1 + $0x18] sm:$0xf]
      %v226 = vld [vmem:[%s1 + $0x1c] sm:$0xf]
      %v227 = vld [vmem:[%s1 + $0x20] sm:$0xf]
      %v228 = vld [vmem:[%s1 + $0x24] sm:$0xf]
      %v229 = vld [vmem:[%s1 + $0x28] sm:$0xf]
      %v230 = vld [vmem:[%s1 + $0x2c] sm:$0xf]
      %v231 = vld [vmem:[%s1 + $0x30] sm:$0xf]
      %v232 = vld [vmem:[%s1 + $0x34] sm:$0xf]
      %v233 = vld [vmem:[%s1 + $0x38] sm:$0xf]
      %v234 = vld [vmem:[%s1 + $0x3c] sm:$0xf]
      %v235 = vld [vmem:[%s2] sm:$0x1]
      %v237 = vlaneseq
      %v238 = vshrl.u32 %v237, 7
      %v239 = vsub.s32 0, %v238
      %v240 = vrot.slane %v235, %v239
      %v250 = vunpack.c.l.b16 %v211
      %v251 = vunpack.c.l.b16 %v212
      %v252 = vunpack.c.l.b16 %v213
      %v253 = vunpack.c.l.b16 %v214
      %v254 = vunpack.c.l.b16 %v215
      %v255 = vunpack.c.l.b16 %v216
      %v256 = vunpack.c.l.b16 %v217
      %v257 = vunpack.c.l.b16 %v218
      %v258 = vpack.c.b16 %v251, %v250
      %v259 = vpack.c.b16 %v253, %v252
      %v260 = vpack.c.b16 %v255, %v254
      %v261 = vpack.c.b16 %v257, %v256
      %v282 = vunpack.c.l.b16 %v219
      %v283 = vunpack.c.l.b16 %v220
      %v284 = vunpack.c.l.b16 %v221
      %v285 = vunpack.c.l.b16 %v222
      %v286 = vunpack.c.l.b16 %v223
      %v287 = vunpack.c.l.b16 %v224
      %v288 = vunpack.c.l.b16 %v225
      %v289 = vunpack.c.l.b16 %v226
      %v290 = vunpack.c.l.b16 %v227
      %v291 = vunpack.c.l.b16 %v228
      %v292 = vunpack.c.l.b16 %v229
      %v293 = vunpack.c.l.b16 %v230
      %v294 = vunpack.c.l.b16 %v231
      %v295 = vunpack.c.l.b16 %v232
      %v296 = vunpack.c.l.b16 %v233
      %v297 = vunpack.c.l.b16 %v234
      %v298 = vpack.c.b16 %v283, %v282
      %v299 = vpack.c.b16 %v285, %v284
      %v300 = vpack.c.b16 %v287, %v286
      %v301 = vpack.c.b16 %v289, %v288
      %v302 = vpack.c.b16 %v291, %v290
      %v303 = vpack.c.b16 %v293, %v292
      %v304 = vpack.c.b16 %v295, %v294
      %v305 = vpack.c.b16 %v297, %v296
      %314 = vmatprep.subr.bf16.mxu0 0
      %315 = vmatpush1.bf16.msra.mxu0 %v298
      %316 = vmatprep.subr.bf16.mxu0 0
      %317 = vmatpush1.bf16.msra.mxu0 %v299
      %318 = vmatprep.subr.bf16.mxu0 0
      %319 = vmatpush1.bf16.msra.mxu0 %v300
      %320 = vmatprep.subr.bf16.mxu0 0
      %321 = vmatpush1.bf16.msra.mxu0 %v301
      %322 = vmatprep.subr.bf16.mxu0 0
      %323 = vmatpush1.bf16.msra.mxu0 %v302
      %324 = vmatprep.subr.bf16.mxu0 0
      %325 = vmatpush1.bf16.msra.mxu0 %v303
      %326 = vmatprep.subr.bf16.mxu0 0
      %327 = vmatpush1.bf16.msra.mxu0 %v304
      %328 = vmatprep.subr.bf16.mxu0 0
      %329 = vmatpush1.bf16.msra.mxu0 %v305
      %330 = vmatprep.subr.bf16.mxu0 0
      %331 = vmatpush1.bf16.msra.mxu0 0
      %332 = vmatprep.subr.bf16.mxu0 0
      %333 = vmatpush1.bf16.msra.mxu0 0
      %334 = vmatprep.subr.bf16.mxu0 0
      %335 = vmatpush1.bf16.msra.mxu0 0
      %336 = vmatprep.subr.bf16.mxu0 0
      %337 = vmatpush1.bf16.msra.mxu0 0
      %338 = vmatprep.subr.bf16.mxu0 0
      %339 = vmatpush1.bf16.msra.mxu0 0
      %340 = vmatprep.subr.bf16.mxu0 0
      %341 = vmatpush1.bf16.msra.mxu0 0
      %342 = vmatprep.subr.bf16.mxu0 0
      %343 = vmatpush1.bf16.msra.mxu0 0
      %344 = vmatprep.subr.bf16.mxu0 0
      %345 = vmatpush1.bf16.msra.mxu0 0
      %346 = vmatprep.mubr.bf16.mxu0 0
      %347 = vmatmul.mubr.bf16.gmra.mrb[0].mxu0 %v258
      %v348 = vpop.f32.mrb[0].mxu0
      %v349 = vadd.f32 %v240, %v348
      %v350 = vpop.f32.mrb[0].mxu0
      %v351 = vpop.f32.mrb[0].mxu0
      %v352 = vadd.f32 %v240, %v351
      %v353 = vpop.f32.mrb[0].mxu0
      %354 = vmatprep.mubr.bf16.mxu0 0
      %355 = vmatmul.mubr.bf16.gmra.mrb[0].mxu0 %v259
      %v356 = vpop.f32.mrb[0].mxu0
      %v357 = vadd.f32 %v240, %v356
      %v358 = vpop.f32.mrb[0].mxu0
      %v359 = vpop.f32.mrb[0].mxu0
      %v360 = vadd.f32 %v240, %v359
      %v361 = vpop.f32.mrb[0].mxu0
      %362 = vmatprep.mubr.bf16.mxu0 0
      %363 = vmatmul.mubr.bf16.gmra.mrb[0].mxu0 %v260
      %v364 = vpop.f32.mrb[0].mxu0
      %v365 = vadd.f32 %v240, %v364
      %v366 = vpop.f32.mrb[0].mxu0
      %v367 = vpop.f32.mrb[0].mxu0
      %v368 = vadd.f32 %v240, %v367
      %v369 = vpop.f32.mrb[0].mxu0
      %370 = vmatprep.mubr.bf16.mxu0 0
      %371 = vmatmul.mubr.bf16.gmra.mrb[0].mxu0 %v261
      %v372 = vpop.f32.mrb[0].mxu0
      %v373 = vadd.f32 %v240, %v372
      %v374 = vpop.f32.mrb[0].mxu0
      %v375 = vpop.f32.mrb[0].mxu0
      %v376 = vadd.f32 %v240, %v375
      %v377 = vpop.f32.mrb[0].mxu0
      %378 = vdwg.mxu0
      %v379 = vmax.f32 %v349, 0.0
      %v380 = vmax.f32 %v352, 0.0
      %v381 = vmax.f32 %v357, 0.0
      %v382 = vmax.f32 %v360, 0.0
      %v383 = vmax.f32 %v365, 0.0
      %v384 = vmax.f32 %v368, 0.0
      %v385 = vmax.f32 %v373, 0.0
      %v386 = vmax.f32 %v376, 0.0
      %v387 = vpack.c.bf16 %v379, %v379
      %v388 = vpack.c.bf16 %v380, %v380
      %v389 = vpack.c.bf16 %v381, %v381
      %v390 = vpack.c.bf16 %v382, %v382
      %v391 = vpack.c.bf16 %v383, %v383
      %v392 = vpack.c.bf16 %v384, %v384
      %v393 = vpack.c.bf16 %v385, %v385
      %v394 = vpack.c.bf16 %v386, %v386
      %395 = vst [vmem:[%s208] sm:$0xf] %v387
      %396 = vst [vmem:[%s208 + $0x4] sm:$0xf] %v388
      %397 = vst [vmem:[%s208 + $0x8] sm:$0xf] %v389
      %398 = vst [vmem:[%s208 + $0xc] sm:$0xf] %v390
      %399 = vst [vmem:[%s208 + $0x10] sm:$0xf] %v391
      %400 = vst [vmem:[%s208 + $0x14] sm:$0xf] %v392
      %401 = vst [vmem:[%s208 + $0x18] sm:$0xf] %v393
      %402 = vst [vmem:[%s208 + $0x1c] sm:$0xf] %v394
      %s403 = smul.u32 8, %s19
      %p404 = scmp.lt.s32.totalorder %s18, 1
      %s405 = scalar_select %p404, %s18, 1
      %p406 = scmp.lt.s32.totalorder %s403, 7
      %s407 = scalar_select %p406, %s403, 7
      %s408 = smul.addr %s405, 8
      %s409 = sadd.s32 %s407, %s408
      %s410 = smul.addr %s409, 4
      %s411 = scalar_lea.vmem %s3, %s410
      // Predicated region
      $region33: #{vgg_forward.10} parent=31 // pred_check
        %p412 = pneg %p116
      $region34: #{vgg_forward.10} parent=31 // pred_check_branch
        %414 = sbr.rel (%p412) target = $region36
      $region35: #{vgg_forward.10} parent=31 // pred_region
        %s415 = smul.u32 8, %s19
      $region36: #{vgg_forward.10} parent=31 // pred_fallthru
        _
    $region32: #{vgg_forward.10} parent=5 // pred_fallthru
      _
    %p416 = scmp.le.s32.totalorder 2, %s9
    // Predicated region
    $region37: #{vgg_forward.10} parent=5 // pred_check
      %p417 = pneg %p416
    $region38: #{vgg_forward.10} parent=5 // pred_check_branch
      %419 = sbr.rel (%p417) target = $region40
    $region39: #{vgg_forward.10} parent=5 // pred_region
      %s420 = ssub.s32 %s9, 2
      // Predicated region
      $region41: #{vgg_forward.10} parent=39 // pred_check
        %p421 = pneg %p122
      $region42: #{vgg_forward.10} parent=39 // pred_check_branch
        %423 = sbr.rel (%p421) target = $region44
      $region43: #{vgg_forward.10} parent=39 // pred_region
        %s424 = smul.u32 8, %s21
        %p425 = scmp.lt.s32.totalorder %s20, 1
        %s426 = scalar_select %p425, %s20, 1
        %p427 = scmp.lt.s32.totalorder %s424, 7
        %s428 = scalar_select %p427, %s424, 7
        %s429 = smul.addr %s426, 8
        %s430 = sadd.s32 %s428, %s429
        %s431 = smul.addr %s430, 4
        %s432 = scalar_lea.vmem %s3, %s431
      $region44: #{vgg_forward.10} parent=39 // pred_fallthru
        _
    $region40: #{vgg_forward.10} parent=5 // pred_fallthru
      _
  $region6: #{vgg_forward.10} parent=0 // loop_footer
    %s13 = sadd.s32 1, %s9
  $region7: #{vgg_forward.10} parent=0 // loop_footer_branch
    %8 = sbr.rel target = $region3
  $region8: #{vgg_forward.10} parent=0 // loop_exit
    _

// kernel: vgg_forward.12
$region0: #{vgg_forward.12}
  #allocation0 [shape = 'u32[]', space=smem, size = 0x4, offset = 0x4, fixed_abs, tag = 'smem constant byte address 0x4 - core index']
  #allocation1 [shape = 'u32[144,128]{1,0:T(1,128)}', space=vmem, size = 0x12000, scoped, tag = 'internal scratch']
  %s0 = inlined_call_operand.vmem [shape: bf16[2,4,2,4,256], index: 0, kind: input, shape index: {}]
  %s1 = inlined_call_operand.vmem [shape: bf16[2,4,4,128], index: 1, kind: output, shape index: {}]
  %s2 = sld [smem:[#allocation0]]
  $region37: #{vgg_forward.12} parent=0
    _
  %s4 = ssub.s32 1, %s2
  %s5 = scalar_select 0, %s4, %s2
  loop: start=0, step=1, limit=4
  $region2: #{vgg_forward.12} parent=0 // loop_pre_header
    _
  $region3: #{vgg_forward.12} parent=0 // loop_header
    %s7 = sphi 0, %s11
    %p8 = scmp.ge.s32.totalorder %s7, 4
    %s14 = sphi 0, %s26
    %s15 = sphi 0, %s22
    %s16 = sphi 0, %s14
    %s17 = sphi 0, %s15
    %s18 = sphi 0, %s16
    %s19 = sphi 0, %s17
    %s31 = sphi 0, %s33
    %s34 = sphi 0, %s31
    %s35 = sphi 0, %s34
    %s51 = sphi 0, %s35
    %s59 = sphi 0, %s61
    %s62 = sphi 0, %s59
    %s63 = sphi 0, %s62
    %s79 = sphi 0, %s63
  $region4: #{vgg_forward.12} parent=0 // loop_header_branch
    %10 = sbr.rel (%p8) target = $region8
  $region5: #{vgg_forward.12} parent=0 // loop_body
    %s12 = ssub.s32 %s7, 1
    %s13 = ssub.s32 %s7, 2
    %s20 = sadd.s32 1, %s15
    %p21 = scmp.ge.s32.totalorder %s20, 1
    %s22 = scalar_select %p21, 0, %s20
    %s23 = sadd.s32 1, %s14
    %s24 = scalar_select %p21, %s23, %s14
    %p25 = scmp.ge.s32.totalorder %s24, 2
    %s26 = scalar_select %p25, 0, %s24
    %s27 = ssub.s32 %s14, %s26
    %s28 = ssub.s32 %s15, %s22
    %s29 = sor.u32 %s27, %s28
    %p30 = scmp.eq.s32.totalorder %s29, 0
    %s32 = sadd.s32 %s31, 1
    %s33 = scalar_select %p30, %s31, %s32
    %p36 = pneg %p30
    %p37 = scmp.eq.s32.totalorder %s7, 1
    %p38 = por %p36, %p37
    %p39 = scmp.ne.s32.totalorder %s31, %s34
    %p40 = scmp.eq.s32.totalorder %s7, 0
    %p41 = por %p39, %p40
    %p42 = scmp.ne.s32.totalorder %s31, %s34
    %p43 = scmp.eq.s32.totalorder %s12, 1
    %p44 = por %p42, %p43
    %p45 = scmp.ne.s32.totalorder %s34, %s35
    %p46 = scmp.eq.s32.totalorder %s12, 0
    %p47 = por %p45, %p46
    %p48 = scmp.ne.s32.totalorder %s34, %s35
    %p49 = scmp.eq.s32.totalorder %s13, 1
    %p50 = por %p48, %p49
    %p52 = scmp.ne.s32.totalorder %s35, %s51
    %p53 = scmp.eq.s32.totalorder %s13, 0
    %p54 = por %p52, %p53
    %s55 = ssub.s32 %s14, %s26
    %s56 = ssub.s32 %s15, %s22
    %s57 = sor.u32 %s55, %s56
    %p58 = scmp.eq.s32.totalorder %s57, 0
    %s60 = sadd.s32 %s59, 1
    %s61 = scalar_select %p58, %s59, %s60
    %p64 = pneg %p58
    %p65 = scmp.eq.s32.totalorder %s7, 1
    %p66 = por %p64, %p65
    %p67 = scmp.ne.s32.totalorder %s59, %s62
    %p68 = scmp.eq.s32.totalorder %s7, 0
    %p69 = por %p67, %p68
    %p70 = scmp.ne.s32.totalorder %s59, %s62
    %p71 = scmp.eq.s32.totalorder %s12, 1
    %p72 = por %p70, %p71
    %p73 = scmp.ne.s32.totalorder %s62, %s63
    %p74 = scmp.eq.s32.totalorder %s12, 0
    %p75 = por %p73, %p74
    %p76 = scmp.ne.s32.totalorder %s62, %s63
    %p77 = scmp.eq.s32.totalorder %s13, 1
    %p78 = por %p76, %p77
    %p80 = scmp.ne.s32.totalorder %s63, %s79
    %p81 = scmp.eq.s32.totalorder %s13, 0
    %p82 = por %p80, %p81
    %p83 = scmp.le.s32.totalorder 1, %s7
    %p84 = scmp.lt.s32.totalorder %s7, 3
    %p85 = pnand %p83, %p84
    %p86 = pneg %p85
    // Predicated region
    $region9: #{vgg_forward.12} parent=5 // pred_check
      _
    $region10: #{vgg_forward.12} parent=5 // pred_check_branch
      %88 = sbr.rel (%p85) target = $region12
    $region11: #{vgg_forward.12} parent=5 // pred_region
      %s89 = ssub.s32 %s7, 1
    $region12: #{vgg_forward.12} parent=5 // pred_fallthru
      _
    %p90 = scmp.lt.s32.totalorder %s7, 2
    // Predicated region
    $region13: #{vgg_forward.12} parent=5 // pred_check
      %p91 = pneg %p90
    $region14: #{vgg_forward.12} parent=5 // pred_check_branch
      %93 = sbr.rel (%p91) target = $region16
    $region15: #{vgg_forward.12} parent=5 // pred_region
      // Predicated region
      $region17: #{vgg_forward.12} parent=15 // pred_check
        %p94 = pneg %p41
      $region18: #{vgg_forward.12} parent=15 // pred_check_branch
        %96 = sbr.rel (%p94) target = $region20
      $region19: #{vgg_forward.12} parent=15 // pred_region
        %s97 = smul.u32 4, %s15
        %p98 = scmp.lt.s32.totalorder %s14, 1
        %s99 = scalar_select %p98, %s14, 1
        %p100 = scmp.lt.s32.totalorder %s97, 3
        %s101 = scalar_select %p100, %s97, 3
        %s102 = smul.addr %s101, 4
        %s103 = smul.addr %s99, 16
        %s104 = sadd.s32 %s102, %s103
        %s105 = smul.addr %s104, 2
        %s106 = scalar_lea.vmem %s0, %s105
        %s107 = smul.u32 4, %s15
      $region20: #{vgg_forward.12} parent=15 // pred_fallthru
        _
    $region16: #{vgg_forward.12} parent=5 // pred_fallthru
      _
    %p108 = scmp.le.s32.totalorder 1, %s7
    %p109 = scmp.lt.s32.totalorder %s7, 3
    %p110 = pnand %p108, %p109
    %p111 = pneg %p110
    // Predicated region
    $region21: #{vgg_forward.12} parent=5 // pred_check
      _
    $region22: #{vgg_forward.12} parent=5 // pred_check_branch
      %113 = sbr.rel (%p110) target = $region24
    $region23: #{vgg_forward.12} parent=5 // pred_region
      %s114 = ssub.s32 %s7, 1
      %s115 = smul.u32 4, %s17
      %p116 = scmp.lt.s32.totalorder %s16, 1
      %s117 = scalar_select %p116, %s16, 1
      %p118 = scmp.lt.s32.totalorder %s115, 3
      %s119 = scalar_select %p118, %s115, 3
      %s120 = smul.addr %s119, 4
      %s121 = smul.addr %s117, 16
      %s122 = sadd.s32 %s120, %s121
      %s123 = smul.addr %s122, 2
      %s124 = scalar_lea.vmem %s0, %s123
      %p125 = pneg %p47
      %p126 = pneg %p44
      %p127 = pneg %p75
      %p128 = pneg %p72
      %s129 = smul.u32 4, %s17
      %p130 = scmp.lt.s32.totalorder %s16, 1
      %s131 = scalar_select %p130, %s16, 1
      %p132 = scmp.lt.s32.totalorder %s129, 3
      %s133 = scalar_select %p132, %s129, 3
      %s134 = smul.addr %s131, 4
      %s135 = sadd.s32 %s133, %s134
      %s136 = smul.addr %s135, 2
      %s137 = scalar_lea.vmem %s1, %s136
      %s138 = smul.u32 4, %s17
      %p139 = scmp.lt.s32.totalorder %s16, 1
      %s140 = scalar_select %p139, %s16, 1
      %p141 = scmp.lt.s32.totalorder %s138, 3
      %s142 = scalar_select %p141, %s138, 3
      %s143 = smul.addr %s142, 4
      %s144 = smul.addr %s140, 16
      %s145 = sadd.s32 %s143, %s144
      %s146 = smul.addr %s145, 2
      %s147 = scalar_lea.vmem %s0, %s146
      %s148 = smul.u32 4, %s17
      %s149 = smul.u32 4, %s17
      %p150 = scmp.lt.s32.totalorder %s16, 1
      %s151 = scalar_select %p150, %s16, 1
      %p152 = scmp.lt.s32.totalorder %s149, 3
      %s153 = scalar_select %p152, %s149, 3
      %s154 = smul.addr %s151, 4
      %s155 = sadd.s32 %s153, %s154
      %s156 = smul.addr %s155, 2
      %s157 = scalar_lea.vmem %s1, %s156
      %s158 = smul.u32 4, %s17
      %v159 = vld [vmem:[%s147] sm:$0xf]
      %v160 = vld [vmem:[%s147 + $0x8] sm:$0xf]
      %v161 = vld [vmem:[%s147 + $0x10] sm:$0xf]
      %v162 = vld [vmem:[%s147 + $0x18] sm:$0xf]
      %s163 = scalar_lea.vmem %s147, 4
      %v164 = vld [vmem:[%s163] sm:$0xf]
      %v165 = vld [vmem:[%s163 + $0x8] sm:$0xf]
      %v166 = vld [vmem:[%s163 + $0x10] sm:$0xf]
      %v167 = vld [vmem:[%s163 + $0x18] sm:$0xf]
      %v168 = vmax.bf16 %v159, %v164
      %v169 = vmax.bf16 %v160, %v165
      %v170 = vmax.bf16 %v161, %v166
      %v171 = vmax.bf16 %v162, %v167
      %v176 = vrot.slane %v168, 2
      %v177 = vrot.slane %v169, 2
      %v178 = vrot.slane %v170, 2
      %v179 = vrot.slane %v171, 2
      %v184 = vmax.bf16 %v168, %v176
      %v185 = vmax.bf16 %v169, %v177
      %v186 = vmax.bf16 %v170, %v178
      %v187 = vmax.bf16 %v171, %v179
      %188 = vst [vmem:[%s157] sm:$0x3] %v184
      %189 = vst [vmem:[%s157 + $0x2] sm:$0x3] %v185
      %190 = vst [vmem:[%s157 + $0x4] sm:$0x3] %v186
      %191 = vst [vmem:[%s157 + $0x6] sm:$0x3] %v187
      %s192 = smul.u32 4, %s17
      %p193 = scmp.lt.s32.totalorder %s16, 1
      %s194 = scalar_select %p193, %s16, 1
      %p195 = scmp.lt.s32.totalorder %s192, 3
      %s196 = scalar_select %p195, %s192, 3
      %s197 = smul.addr %s194, 4
      %s198 = sadd.s32 %s196, %s197
      %s199 = smul.addr %s198, 2
      %s200 = scalar_lea.vmem %s1, %s199
      // Predicated region
      $region25: #{vgg_forward.12} parent=23 // pred_check
        %p201 = pneg %p72
      $region26: #{vgg_forward.12} parent=23 // pred_check_branch
        %203 = sbr.rel (%p201) target = $region28
      $region27: #{vgg_forward.12} parent=23 // pred_region
        %s204 = smul.u32 4, %s17
      $region28: #{vgg_forward.12} parent=23 // pred_fallthru
        _
    $region24: #{vgg_forward.12} parent=5 // pred_fallthru
      _
    %p205 = scmp.le.s32.totalorder 2, %s7
    // Predicated region
    $region29: #{vgg_forward.12} parent=5 // pred_check
      %p206 = pneg %p205
    $region30: #{vgg_forward.12} parent=5 // pred_check_branch
      %208 = sbr.rel (%p206) target = $region32
    $region31: #{vgg_forward.12} parent=5 // pred_region
      %s209 = ssub.s32 %s7, 2
      // Predicated region
      $region33: #{vgg_forward.12} parent=31 // pred_check
        %p210 = pneg %p78
      $region34: #{vgg_forward.12} parent=31 // pred_check_branch
        %212 = sbr.rel (%p210) target = $region36
      $region35: #{vgg_forward.12} parent=31 // pred_region
        %s213 = smul.u32 4, %s19
        %p214 = scmp.lt.s32.totalorder %s18, 1
        %s215 = scalar_select %p214, %s18, 1
        %p216 = scmp.lt.s32.totalorder %s213, 3
        %s217 = scalar_select %p216, %s213, 3
        %s218 = smul.addr %s215, 4
        %s219 = sadd.s32 %s217, %s218
        %s220 = smul.addr %s219, 2
        %s221 = scalar_lea.vmem %s1, %s220
      $region36: #{vgg_forward.12} parent=31 // pred_fallthru
        _
    $region32: #{vgg_forward.12} parent=5 // pred_fallthru
      _
  $region6: #{vgg_forward.12} parent=0 // loop_footer
    %s11 = sadd.s32 1, %s7
  $region7: #{vgg_forward.12} parent=0 // loop_footer_branch
    %6 = sbr.rel target = $region3
  $region8: #{vgg_forward.12} parent=0 // loop_exit
    _

// kernel: vgg_forward.11
$region0: #{vgg_forward.11}
  #allocation0 [shape = 'u32[]', space=smem, size = 0x4, offset = 0x4, fixed_abs, tag = 'smem constant byte address 0x4 - core index']
  #allocation1 [shape = 'u32[144,128]{1,0:T(1,128)}', space=vmem, size = 0x12000, scoped, tag = 'internal scratch']
  %s0 = inlined_call_operand.vmem [shape: bf16[2,8,8,256], index: 0, kind: input, shape index: {}]
  %s1 = inlined_call_operand.vmem [shape: bf16[256,128], index: 1, kind: input, shape index: {}]
  %s2 = inlined_call_operand.vmem [shape: f32[1,128], index: 2, kind: input, shape index: {}]
  %s3 = inlined_call_operand.vmem [shape: bf16[2,8,8,128], index: 3, kind: output, shape index: {}]
  %s4 = sld [smem:[#allocation0]]
  $region45: #{vgg_forward.11} parent=0
    _
  %s6 = ssub.s32 1, %s4
  %s7 = scalar_select 0, %s6, %s4
  loop: start=0, step=1, limit=4
  $region2: #{vgg_forward.11} parent=0 // loop_pre_header
    _
  $region3: #{vgg_forward.11} parent=0 // loop_header
    %s9 = sphi 0, %s13
    %p10 = scmp.ge.s32.totalorder %s9, 4
    %s16 = sphi 0, %s28
    %s17 = sphi 0, %s24
    %s18 = sphi 0, %s16
    %s19 = sphi 0, %s17
    %s20 = sphi 0, %s18
    %s21 = sphi 0, %s19
    %s33 = sphi 0, %s35
    %s36 = sphi 0, %s33
    %s37 = sphi 0, %s36
    %s53 = sphi 0, %s37
    %s57 = sphi 0, %s57
    %s59 = sphi 0, %s57
    %s60 = sphi 0, %s59
    %s74 = sphi 0, %s60
    %s78 = sphi 0, %s78
    %s80 = sphi 0, %s78
    %s81 = sphi 0, %s80
    %s95 = sphi 0, %s81
    %s103 = sphi 0, %s105
    %s106 = sphi 0, %s103
    %s107 = sphi 0, %s106
    %s123 = sphi 0, %s107
  $region4: #{vgg_forward.11} parent=0 // loop_header_branch
    %12 = sbr.rel (%p10) target = $region8
  $region5: #{vgg_forward.11} parent=0 // loop_body
    %s14 = ssub.s32 %s9, 1
    %s15 = ssub.s32 %s9, 2
    %s22 = sadd.s32 1, %s17
    %p23 = scmp.ge.s32.totalorder %s22, 1
    %s24 = scalar_select %p23, 0, %s22
    %s25 = sadd.s32 1, %s16
    %s26 = scalar_select %p23, %s25, %s16
    %p27 = scmp.ge.s32.totalorder %s26, 2
    %s28 = scalar_select %p27, 0, %s26
    %s29 = ssub.s32 %s16, %s28
    %s30 = ssub.s32 %s17, %s24
    %s31 = sor.u32 %s29, %s30
    %p32 = scmp.eq.s32.totalorder %s31, 0
    %s34 = sadd.s32 %s33, 1
    %s35 = scalar_select %p32, %s33, %s34
    %p38 = pneg %p32
    %p39 = scmp.eq.s32.totalorder %s9, 1
    %p40 = por %p38, %p39
    %p41 = scmp.ne.s32.totalorder %s33, %s36
    %p42 = scmp.eq.s32.totalorder %s9, 0
    %p43 = por %p41, %p42
    %p44 = scmp.ne.s32.totalorder %s33, %s36
    %p45 = scmp.eq.s32.totalorder %s14, 1
    %p46 = por %p44, %p45
    %p47 = scmp.ne.s32.totalorder %s36, %s37
    %p48 = scmp.eq.s32.totalorder %s14, 0
    %p49 = por %p47, %p48
    %p50 = scmp.ne.s32.totalorder %s36, %s37
    %p51 = scmp.eq.s32.totalorder %s15, 1
    %p52 = por %p50, %p51
    %p54 = scmp.ne.s32.totalorder %s37, %s53
    %p55 = scmp.eq.s32.totalorder %s15, 0
    %p56 = por %p54, %p55
    %s58 = sadd.s32 %s57, 1
    %p61 = scmp.eq.s32.totalorder %s9, 1
    %p62 = scmp.ne.s32.totalorder %s57, %s59
    %p63 = scmp.eq.s32.totalorder %s9, 0
    %p64 = por %p62, %p63
    %p65 = scmp.ne.s32.totalorder %s57, %s59
    %p66 = scmp.eq.s32.totalorder %s14, 1
    %p67 = por %p65, %p66
    %p68 = scmp.ne.s32.totalorder %s59, %s60
    %p69 = scmp.eq.s32.totalorder %s14, 0
    %p70 = por %p68, %p69
    %p71 = scmp.ne.s32.totalorder %s59, %s60
    %p72 = scmp.eq.s32.totalorder %s15, 1
    %p73 = por %p71, %p72
    %p75 = scmp.ne.s32.totalorder %s60, %s74
    %p76 = scmp.eq.s32.totalorder %s15, 0
    %p77 = por %p75, %p76
    %s79 = sadd.s32 %s78, 1
    %p82 = scmp.eq.s32.totalorder %s9, 1
    %p83 = scmp.ne.s32.totalorder %s78, %s80
    %p84 = scmp.eq.s32.totalorder %s9, 0
    %p85 = por %p83, %p84
    %p86 = scmp.ne.s32.totalorder %s78, %s80
    %p87 = scmp.eq.s32.totalorder %s14, 1
    %p88 = por %p86, %p87
    %p89 = scmp.ne.s32.totalorder %s80, %s81
    %p90 = scmp.eq.s32.totalorder %s14, 0
    %p91 = por %p89, %p90
    %p92 = scmp.ne.s32.totalorder %s80, %s81
    %p93 = scmp.eq.s32.totalorder %s15, 1
    %p94 = por %p92, %p93
    %p96 = scmp.ne.s32.totalorder %s81, %s95
    %p97 = scmp.eq.s32.totalorder %s15, 0
    %p98 = por %p96, %p97
    %s99 = ssub.s32 %s16, %s28
    %s100 = ssub.s32 %s17, %s24
    %s101 = sor.u32 %s99, %s100
    %p102 = scmp.eq.s32.totalorder %s101, 0
    %s104 = sadd.s32 %s103, 1
    %s105 = scalar_select %p102, %s103, %s104
    %p108 = pneg %p102
    %p109 = scmp.eq.s32.totalorder %s9, 1
    %p110 = por %p108, %p109
    %p111 = scmp.ne.s32.totalorder %s103, %s106
    %p112 = scmp.eq.s32.totalorder %s9, 0
    %p113 = por %p111, %p112
    %p114 = scmp.ne.s32.totalorder %s103, %s106
    %p115 = scmp.eq.s32.totalorder %s14, 1
    %p116 = por %p114, %p115
    %p117 = scmp.ne.s32.totalorder %s106, %s107
    %p118 = scmp.eq.s32.totalorder %s14, 0
    %p119 = por %p117, %p118
    %p120 = scmp.ne.s32.totalorder %s106, %s107
    %p121 = scmp.eq.s32.totalorder %s15, 1
    %p122 = por %p120, %p121
    %p124 = scmp.ne.s32.totalorder %s107, %s123
    %p125 = scmp.eq.s32.totalorder %s15, 0
    %p126 = por %p124, %p125
    %p127 = scmp.le.s32.totalorder 1, %s9
    %p128 = scmp.lt.s32.totalorder %s9, 3
    %p129 = pnand %p127, %p128
    %p130 = pneg %p129
    // Predicated region
    $region9: #{vgg_forward.11} parent=5 // pred_check
      _
    $region10: #{vgg_forward.11} parent=5 // pred_check_branch
      %132 = sbr.rel (%p129) target = $region12
    $region11: #{vgg_forward.11} parent=5 // pred_region
      %s133 = ssub.s32 %s9, 1
      // Predicated region
      $region13: #{vgg_forward.11} parent=11 // pred_check
        %p134 = pneg %p70
      $region14: #{vgg_forward.11} parent=11 // pred_check_branch
        %136 = sbr.rel (%p134) target = $region16
      $region15: #{vgg_forward.11} parent=11 // pred_region
        _
      $region16: #{vgg_forward.11} parent=11 // pred_fallthru
        _
      // Predicated region
      $region17: #{vgg_forward.11} parent=11 // pred_check
        %p137 = pneg %p91
      $region18: #{vgg_forward.11} parent=11 // pred_check_branch
        %139 = sbr.rel (%p137) target = $region20
      $region19: #{vgg_forward.11} parent=11 // pred_region
        _
      $region20: #{vgg_forward.11} parent=11 // pred_fallthru
        _
    $region12: #{vgg_forward.11} parent=5 // pred_fallthru
      _
    %p140 = scmp.lt.s32.totalorder %s9, 2
    // Predicated region
    $region21: #{vgg_forward.11} parent=5 // pred_check
      %p141 = pneg %p140
    $region22: #{vgg_forward.11} parent=5 // pred_check_branch
      %143 = sbr.rel (%p141) target = $region24
    $region23: #{vgg_forward.11} parent=5 // pred_region
      // Predicated region
      $region25: #{vgg_forward.11} parent=23 // pred_check
        %p144 = pneg %p43
      $region26: #{vgg_forward.11} parent=23 // pred_check_branch
        %146 = sbr.rel (%p144) target = $region28
      $region27: #{vgg_forward.11} parent=23 // pred_region
        %s147 = smul.u32 8, %s17
        %p148 = scmp.lt.s32.totalorder %s16, 1
        %s149 = scalar_select %p148, %s16, 1
        %p150 = scmp.lt.s32.totalorder %s147, 7
        %s151 = scalar_select %p150, %s147, 7
        %s152 = smul.addr %s151, 2
        %s153 = smul.addr %s149, 16
        %s154 = sadd.s32 %s152, %s153
        %s155 = smul.addr %s154, 4
        %s156 = scalar_lea.vmem %s0, %s155
        %s157 = smul.u32 8, %s17
      $region28: #{vgg_forward.11} parent=23 // pred_fallthru
        _
    $region24: #{vgg_forward.11} parent=5 // pred_fallthru
      _
    %p158 = scmp.le.s32.totalorder 1, %s9
    %p159 = scmp.lt.s32.totalorder %s9, 3
    %p160 = pnand %p158, %p159
    %p161 = pneg %p160
    // Predicated region
    $region29: #{vgg_forward.11} parent=5 // pred_check
      _
    $region30: #{vgg_forward.11} parent=5 // pred_check_branch
      %163 = sbr.rel (%p160) target = $region32
    $region31: #{vgg_forward.11} parent=5 // pred_region
      %s164 = ssub.s32 %s9, 1
      %s165 = smul.u32 8, %s19
      %p166 = scmp.lt.s32.totalorder %s18, 1
      %s167 = scalar_select %p166, %s18, 1
      %p168 = scmp.lt.s32.totalorder %s165, 7
      %s169 = scalar_select %p168, %s165, 7
      %s170 = smul.addr %s169, 2
      %s171 = smul.addr %s167, 16
      %s172 = sadd.s32 %s170, %s171
      %s173 = smul.addr %s172, 4
      %s174 = scalar_lea.vmem %s0, %s173
      %p175 = pneg %p49
      %p176 = pneg %p46
      %p177 = pneg %p70
      %p178 = pneg %p67
      %p179 = pneg %p91
      %p180 = pneg %p88
      %p181 = pneg %p119
      %p182 = pneg %p116
      %s183 = smul.u32 8, %s19
      %p184 = scmp.lt.s32.totalorder %s18, 1
      %s185 = scalar_select %p184, %s18, 1
      %p186 = scmp.lt.s32.totalorder %s183, 7
      %s187 = scalar_select %p186, %s183, 7
      %s188 = smul.addr %s185, 8
      %s189 = sadd.s32 %s187, %s188
      %s190 = smul.addr %s189, 4
      %s191 = scalar_lea.vmem %s3, %s190
      %s192 = smul.u32 8, %s19
      %p193 = scmp.lt.s32.totalorder %s18, 1
      %s194 = scalar_select %p193, %s18, 1
      %p195 = scmp.lt.s32.totalorder %s192, 7
      %s196 = scalar_select %p195, %s192, 7
      %s197 = smul.addr %s196, 2
      %s198 = smul.addr %s194, 16
      %s199 = sadd.s32 %s197, %s198
      %s200 = smul.addr %s199, 4
      %s201 = scalar_lea.vmem %s0, %s200
      %s202 = smul.u32 8, %s19
      %s203 = smul.u32 8, %s19
      %p204 = scmp.lt.s32.totalorder %s18, 1
      %s205 = scalar_select %p204, %s18, 1
      %p206 = scmp.lt.s32.totalorder %s203, 7
      %s207 = scalar_select %p206, %s203, 7
      %s208 = smul.addr %s205, 8
      %s209 = sadd.s32 %s207, %s208
      %s210 = smul.addr %s209, 4
      %s211 = scalar_lea.vmem %s3, %s210
      %s212 = smul.u32 8, %s19
      %v214 = vld [vmem:[%s201] sm:$0xff]
      %v215 = vld [vmem:[%s201 + $0x8] sm:$0xff]
      %v216 = vld [vmem:[%s201 + $0x10] sm:$0xff]
      %v217 = vld [vmem:[%s201 + $0x18] sm:$0xff]
      %v218 = vld [vmem:[%s201 + $0x20] sm:$0xff]
      %v219 = vld [vmem:[%s201 + $0x28] sm:$0xff]
      %v220 = vld [vmem:[%s201 + $0x30] sm:$0xff]
      %v221 = vld [vmem:[%s201 + $0x38] sm:$0xff]
      %v222 = vld [vmem:[%s1] sm:$0xf]
      %v223 = vld [vmem:[%s1 + $0x4] sm:$0xf]
      %v224 = vld [vmem:[%s1 + $0x8] sm:$0xf]
      %v225 = vld [vmem:[%s1 + $0xc] sm:$0xf]
      %v226 = vld [vmem:[%s1 + $0x10] sm:$0xf]
      %v227 = vld [vmem:[%s1 + $0x14] sm:$0xf]
      %v228 = vld [vmem:[%s1 + $0x18] sm:$0xf]
      %v229 = vld [vmem:[%s1 + $0x1c] sm:$0xf]
      %v230 = vld [vmem:[%s1 + $0x20] sm:$0xf]
      %v231 = vld [vmem:[%s1 + $0x24] sm:$0xf]
      %v232 = vld [vmem:[%s1 + $0x28] sm:$0xf]
      %v233 = vld [vmem:[%s1 + $0x2c] sm:$0xf]
      %v234 = vld [vmem:[%s1 + $0x30] sm:$0xf]
      %v235 = vld [vmem:[%s1 + $0x34] sm:$0xf]
      %v236 = vld [vmem:[%s1 + $0x38] sm:$0xf]
      %v237 = vld [vmem:[%s1 + $0x3c] sm:$0xf]
      %v238 = vld [vmem:[%s1 + $0x40] sm:$0xf]
      %v239 = vld [vmem:[%s1 + $0x44] sm:$0xf]
      %v240 = vld [vmem:[%s1 + $0x48] sm:$0xf]
      %v241 = vld [vmem:[%s1 + $0x4c] sm:$0xf]
      %v242 = vld [vmem:[%s1 + $0x50] sm:$0xf]
      %v243 = vld [vmem:[%s1 + $0x54] sm:$0xf]
      %v244 = vld [vmem:[%s1 + $0x58] sm:$0xf]
      %v245 = vld [vmem:[%s1 + $0x5c] sm:$0xf]
      %v246 = vld [vmem:[%s1 + $0x60] sm:$0xf]
      %v247 = vld [vmem:[%s1 + $0x64] sm:$0xf]
      %v248 = vld [vmem:[%s1 + $0x68] sm:$0xf]
      %v249 = vld [vmem:[%s1 + $0x6c] sm:$0xf]
      %v250 = vld [vmem:[%s1 + $0x70] sm:$0xf]
      %v251 = vld [vmem:[%s1 + $0x74] sm:$0xf]
      %v252 = vld [vmem:[%s1 + $0x78] sm:$0xf]
      %v253 = vld [vmem:[%s1 + $0x7c] sm:$0xf]
      %v254 = vld [vmem:[%s2] sm:$0x1]
      %v256 = vlaneseq
      %v257 = vshrl.u32 %v256, 7
      %v258 = vsub.s32 0, %v257
      %v259 = vrot.slane %v254, %v258
      %v269 = vunpack.c.l.b16 %v214
      %v270 = vunpack.c.h.b16 %v214
      %v271 = vunpack.c.l.b16 %v215
      %v272 = vunpack.c.h.b16 %v215
      %v273 = vunpack.c.l.b16 %v216
      %v274 = vunpack.c.h.b16 %v216
      %v275 = vunpack.c.l.b16 %v217
      %v276 = vunpack.c.h.b16 %v217
      %v277 = vunpack.c.l.b16 %v218
      %v278 = vunpack.c.h.b16 %v218
      %v279 = vunpack.c.l.b16 %v219
      %v280 = vunpack.c.h.b16 %v219
      %v281 = vunpack.c.l.b16 %v220
      %v282 = vunpack.c.h.b16 %v220
      %v283 = vunpack.c.l.b16 %v221
      %v284 = vunpack.c.h.b16 %v221
      %v285 = vpack.c.b16 %v271, %v269
      %v286 = vpack.c.b16 %v272, %v270
      %v287 = vpack.c.b16 %v275, %v273
      %v288 = vpack.c.b16 %v276, %v274
      %v289 = vpack.c.b16 %v279, %v277
      %v290 = vpack.c.b16 %v280, %v278
      %v291 = vpack.c.b16 %v283, %v281
      %v292 = vpack.c.b16 %v284, %v282
      %v333 = vunpack.c.l.b16 %v222
      %v334 = vunpack.c.l.b16 %v223
      %v335 = vunpack.c.l.b16 %v224
      %v336 = vunpack.c.l.b16 %v225
      %v337 = vunpack.c.l.b16 %v226
      %v338 = vunpack.c.l.b16 %v227
      %v339 = vunpack.c.l.b16 %v228
      %v340 = vunpack.c.l.b16 %v229
      %v341 = vunpack.c.l.b16 %v230
      %v342 = vunpack.c.l.b16 %v231
      %v343 = vunpack.c.l.b16 %v232
      %v344 = vunpack.c.l.b16 %v233
      %v345 = vunpack.c.l.b16 %v234
      %v346 = vunpack.c.l.b16 %v235
      %v347 = vunpack.c.l.b16 %v236
      %v348 = vunpack.c.l.b16 %v237
      %v349 = vunpack.c.l.b16 %v238
      %v350 = vunpack.c.l.b16 %v239
      %v351 = vunpack.c.l.b16 %v240
      %v352 = vunpack.c.l.b16 %v241
      %v353 = vunpack.c.l.b16 %v242
      %v354 = vunpack.c.l.b16 %v243
      %v355 = vunpack.c.l.b16 %v244
      %v356 = vunpack.c.l.b16 %v245
      %v357 = vunpack.c.l.b16 %v246
      %v358 = vunpack.c.l.b16 %v247
      %v359 = vunpack.c.l.b16 %v248
      %v360 = vunpack.c.l.b16 %v249
      %v361 = vunpack.c.l.b16 %v250
      %v362 = vunpack.c.l.b16 %v251
      %v363 = vunpack.c.l.b16 %v252
      %v364 = vunpack.c.l.b16 %v253
      %v365 = vpack.c.b16 %v334, %v333
      %v366 = vpack.c.b16 %v336, %v335
      %v367 = vpack.c.b16 %v338, %v337
      %v368 = vpack.c.b16 %v340, %v339
      %v369 = vpack.c.b16 %v342, %v341
      %v370 = vpack.c.b16 %v344, %v343
      %v371 = vpack.c.b16 %v346, %v345
      %v372 = vpack.c.b16 %v348, %v347
      %v373 = vpack.c.b16 %v350, %v349
      %v374 = vpack.c.b16 %v352, %v351
      %v375 = vpack.c.b16 %v354, %v353
      %v376 = vpack.c.b16 %v356, %v355
      %v377 = vpack.c.b16 %v358, %v357
      %v378 = vpack.c.b16 %v360, %v359
      %v379 = vpack.c.b16 %v362, %v361
      %v380 = vpack.c.b16 %v364, %v363
      %397 = vmatprep.subr.bf16.mxu0 0
      %398 = vmatpush1.bf16.msra.mxu0 %v365
      %399 = vmatprep.subr.bf16.mxu0 0
      %400 = vmatpush1.bf16.msra.mxu0 %v366
      %401 = vmatprep.subr.bf16.mxu0 0
      %402 = vmatpush1.bf16.msra.mxu0 %v367
      %403 = vmatprep.subr.bf16.mxu0 0
      %404 = vmatpush1.bf16.msra.mxu0 %v368
      %405 = vmatprep.subr.bf16.mxu0 0
      %406 = vmatpush1.bf16.msra.mxu0 %v369
      %407 = vmatprep.subr.bf16.mxu0 0
      %408 = vmatpush1.bf16.msra.mxu0 %v370
      %409 = vmatprep.subr.bf16.mxu0 0
      %410 = vmatpush1.bf16.msra.mxu0 %v371
      %411 = vmatprep.subr.bf16.mxu0 0
      %412 = vmatpush1.bf16.msra.mxu0 %v372
      %413 = vmatprep.subr.bf16.mxu0 0
      %414 = vmatpush1.bf16.msra.mxu0 %v373
      %415 = vmatprep.subr.bf16.mxu0 0
      %416 = vmatpush1.bf16.msra.mxu0 %v374
      %417 = vmatprep.subr.bf16.mxu0 0
      %418 = vmatpush1.bf16.msra.mxu0 %v375
      %419 = vmatprep.subr.bf16.mxu0 0
      %420 = vmatpush1.bf16.msra.mxu0 %v376
      %421 = vmatprep.subr.bf16.mxu0 0
      %422 = vmatpush1.bf16.msra.mxu0 %v377
      %423 = vmatprep.subr.bf16.mxu0 0
      %424 = vmatpush1.bf16.msra.mxu0 %v378
      %425 = vmatprep.subr.bf16.mxu0 0
      %426 = vmatpush1.bf16.msra.mxu0 %v379
      %427 = vmatprep.subr.bf16.mxu0 0
      %428 = vmatpush1.bf16.msra.mxu0 %v380
      %429 = vmatprep.mubr.bf16.mxu0 %v286
      %430 = vmatmul.mubr.bf16.gmra.mrb[0].mxu0 %v285
      %v431 = vpop.f32.mrb[0].mxu0
      %v432 = vadd.f32 %v259, %v431
      %v433 = vpop.f32.mrb[0].mxu0
      %v434 = vpop.f32.mrb[0].mxu0
      %v435 = vadd.f32 %v259, %v434
      %v436 = vpop.f32.mrb[0].mxu0
      %437 = vmatprep.mubr.bf16.mxu0 %v288
      %438 = vmatmul.mubr.bf16.gmra.mrb[0].mxu0 %v287
      %v439 = vpop.f32.mrb[0].mxu0
      %v440 = vadd.f32 %v259, %v439
      %v441 = vpop.f32.mrb[0].mxu0
      %v442 = vpop.f32.mrb[0].mxu0
      %v443 = vadd.f32 %v259, %v442
      %v444 = vpop.f32.mrb[0].mxu0
      %445 = vmatprep.mubr.bf16.mxu0 %v290
      %446 = vmatmul.mubr.bf16.gmra.mrb[0].mxu0 %v289
      %v447 = vpop.f32.mrb[0].mxu0
      %v448 = vadd.f32 %v259, %v447
      %v449 = vpop.f32.mrb[0].mxu0
      %v450 = vpop.f32.mrb[0].mxu0
      %v451 = vadd.f32 %v259, %v450
      %v452 = vpop.f32.mrb[0].mxu0
      %453 = vmatprep.mubr.bf16.mxu0 %v292
      %454 = vmatmul.mubr.bf16.gmra.mrb[0].mxu0 %v291
      %v455 = vpop.f32.mrb[0].mxu0
      %v456 = vadd.f32 %v259, %v455
      %v457 = vpop.f32.mrb[0].mxu0
      %v458 = vpop.f32.mrb[0].mxu0
      %v459 = vadd.f32 %v259, %v458
      %v460 = vpop.f32.mrb[0].mxu0
      %461 = vdwg.mxu0
      %v462 = vmax.f32 %v432, 0.0
      %v463 = vmax.f32 %v435, 0.0
      %v464 = vmax.f32 %v440, 0.0
      %v465 = vmax.f32 %v443, 0.0
      %v466 = vmax.f32 %v448, 0.0
      %v467 = vmax.f32 %v451, 0.0
      %v468 = vmax.f32 %v456, 0.0
      %v469 = vmax.f32 %v459, 0.0
      %v470 = vpack.c.bf16 %v462, %v462
      %v471 = vpack.c.bf16 %v463, %v463
      %v472 = vpack.c.bf16 %v464, %v464
      %v473 = vpack.c.bf16 %v465, %v465
      %v474 = vpack.c.bf16 %v466, %v466
      %v475 = vpack.c.bf16 %v467, %v467
      %v476 = vpack.c.bf16 %v468, %v468
      %v477 = vpack.c.bf16 %v469, %v469
      %478 = vst [vmem:[%s211] sm:$0xf] %v470
      %479 = vst [vmem:[%s211 + $0x4] sm:$0xf] %v471
      %480 = vst [vmem:[%s211 + $0x8] sm:$0xf] %v472
      %481 = vst [vmem:[%s211 + $0xc] sm:$0xf] %v473
      %482 = vst [vmem:[%s211 + $0x10] sm:$0xf] %v474
      %483 = vst [vmem:[%s211 + $0x14] sm:$0xf] %v475
      %484 = vst [vmem:[%s211 + $0x18] sm:$0xf] %v476
      %485 = vst [vmem:[%s211 + $0x1c] sm:$0xf] %v477
      %s486 = smul.u32 8, %s19
      %p487 = scmp.lt.s32.totalorder %s18, 1
      %s488 = scalar_select %p487, %s18, 1
      %p489 = scmp.lt.s32.totalorder %s486, 7
      %s490 = scalar_select %p489, %s486, 7
      %s491 = smul.addr %s488, 8
      %s492 = sadd.s32 %s490, %s491
      %s493 = smul.addr %s492, 4
      %s494 = scalar_lea.vmem %s3, %s493
      // Predicated region
      $region33: #{vgg_forward.11} parent=31 // pred_check
        %p495 = pneg %p116
      $region34: #{vgg_forward.11} parent=31 // pred_check_branch
        %497 = sbr.rel (%p495) target = $region36
      $region35: #{vgg_forward.11} parent=31 // pred_region
        %s498 = smul.u32 8, %s19
      $region36: #{vgg_forward.11} parent=31 // pred_fallthru
        _
    $region32: #{vgg_forward.11} parent=5 // pred_fallthru
      _
    %p499 = scmp.le.s32.totalorder 2, %s9
    // Predicated region
    $region37: #{vgg_forward.11} parent=5 // pred_check
      %p500 = pneg %p499
    $region38: #{vgg_forward.11} parent=5 // pred_check_branch
      %502 = sbr.rel (%p500) target = $region40
    $region39: #{vgg_forward.11} parent=5 // pred_region
      %s503 = ssub.s32 %s9, 2
      // Predicated region
      $region41: #{vgg_forward.11} parent=39 // pred_check
        %p504 = pneg %p122
      $region42: #{vgg_forward.11} parent=39 // pred_check_branch
        %506 = sbr.rel (%p504) target = $region44
      $region43: #{vgg_forward.11} parent=39 // pred_region
        %s507 = smul.u32 8, %s21
        %p508 = scmp.lt.s32.totalorder %s20, 1
        %s509 = scalar_select %p508, %s20, 1
        %p510 = scmp.lt.s32.totalorder %s507, 7
        %s511 = scalar_select %p510, %s507, 7
        %s512 = smul.addr %s509, 8
        %s513 = sadd.s32 %s511, %s512
        %s514 = smul.addr %s513, 4
        %s515 = scalar_lea.vmem %s3, %s514
      $region44: #{vgg_forward.11} parent=39 // pred_fallthru
        _
    $region40: #{vgg_forward.11} parent=5 // pred_fallthru
      _
  $region6: #{vgg_forward.11} parent=0 // loop_footer
    %s13 = sadd.s32 1, %s9
  $region7: #{vgg_forward.11} parent=0 // loop_footer_branch
    %8 = sbr.rel target = $region3
  $region8: #{vgg_forward.11} parent=0 // loop_exit
    _

// kernel: vgg_forward.14
$region0: #{vgg_forward.14}
  #allocation0 [shape = 'u32[]', space=smem, size = 0x4, offset = 0x4, fixed_abs, tag = 'smem constant byte address 0x4 - core index']
  #allocation1 [shape = 'u32[144,128]{1,0:T(1,128)}', space=vmem, size = 0x12000, scoped, tag = 'internal scratch']
  #allocation2 [shape = 'f32[8,128]{1,0:T(8,128)}', space=vmem, size = 0x1000, scoped, tag = 'scratch operand']
  %s0 = inlined_call_operand.vmem [shape: bf16[8,128], index: 0, kind: input, shape index: {}]
  %s1 = inlined_call_operand.vmem [shape: bf16[128,128], index: 1, kind: input, shape index: {}]
  %s2 = inlined_call_operand.vmem [shape: f32[1,128], index: 2, kind: input, shape index: {}]
  %s3 = inlined_call_operand.vmem [shape: bf16[8,128], index: 3, kind: output, shape index: {}]
  %s4 = sld [smem:[#allocation0]]
  $region34: #{vgg_forward.14} parent=0
    _
  %s6 = ssub.s32 1, %s4
  %s7 = scalar_select 0, %s6, %s4
  // Predicated region
  $region2: #{vgg_forward.14} parent=0 // pred_check
    _
  $region3: #{vgg_forward.14} parent=0 // pred_check_branch
    %9 = sbr.rel (0) target = $region5
  $region4: #{vgg_forward.14} parent=0 // pred_region
    _
  $region5: #{vgg_forward.14} parent=0 // pred_fallthru
    _
  // Predicated region
  $region6: #{vgg_forward.14} parent=0 // pred_check
    _
  $region7: #{vgg_forward.14} parent=0 // pred_check_branch
    %11 = sbr.rel (0) target = $region9
  $region8: #{vgg_forward.14} parent=0 // pred_region
    _
  $region9: #{vgg_forward.14} parent=0 // pred_fallthru
    _
  // Predicated region
  $region10: #{vgg_forward.14} parent=0 // pred_check
    _
  $region11: #{vgg_forward.14} parent=0 // pred_check_branch
    %13 = sbr.rel (0) target = $region13
  $region12: #{vgg_forward.14} parent=0 // pred_region
    _
  $region13: #{vgg_forward.14} parent=0 // pred_fallthru
    _
  %v15 = vld [vmem:[%s0] sm:$0xf]
  %v16 = vld [vmem:[%s1] sm:$0xf]
  %v17 = vld [vmem:[%s1 + $0x4] sm:$0xf]
  %v18 = vld [vmem:[%s1 + $0x8] sm:$0xf]
  %v19 = vld [vmem:[%s1 + $0xc] sm:$0xf]
  %v20 = vld [vmem:[%s1 + $0x10] sm:$0xf]
  %v21 = vld [vmem:[%s1 + $0x14] sm:$0xf]
  %v22 = vld [vmem:[%s1 + $0x18] sm:$0xf]
  %v23 = vld [vmem:[%s1 + $0x1c] sm:$0xf]
  %v24 = vld [vmem:[%s1 + $0x20] sm:$0xf]
  %v25 = vld [vmem:[%s1 + $0x24] sm:$0xf]
  %v26 = vld [vmem:[%s1 + $0x28] sm:$0xf]
  %v27 = vld [vmem:[%s1 + $0x2c] sm:$0xf]
  %v28 = vld [vmem:[%s1 + $0x30] sm:$0xf]
  %v29 = vld [vmem:[%s1 + $0x34] sm:$0xf]
  %v30 = vld [vmem:[%s1 + $0x38] sm:$0xf]
  %v31 = vld [vmem:[%s1 + $0x3c] sm:$0xf]
  %v48 = vunpack.c.l.b16 %v16
  %v49 = vunpack.c.l.b16 %v17
  %v50 = vunpack.c.l.b16 %v18
  %v51 = vunpack.c.l.b16 %v19
  %v52 = vunpack.c.l.b16 %v20
  %v53 = vunpack.c.l.b16 %v21
  %v54 = vunpack.c.l.b16 %v22
  %v55 = vunpack.c.l.b16 %v23
  %v56 = vunpack.c.l.b16 %v24
  %v57 = vunpack.c.l.b16 %v25
  %v58 = vunpack.c.l.b16 %v26
  %v59 = vunpack.c.l.b16 %v27
  %v60 = vunpack.c.l.b16 %v28
  %v61 = vunpack.c.l.b16 %v29
  %v62 = vunpack.c.l.b16 %v30
  %v63 = vunpack.c.l.b16 %v31
  %v64 = vpack.c.b16 %v49, %v48
  %v65 = vpack.c.b16 %v51, %v50
  %v66 = vpack.c.b16 %v53, %v52
  %v67 = vpack.c.b16 %v55, %v54
  %v68 = vpack.c.b16 %v57, %v56
  %v69 = vpack.c.b16 %v59, %v58
  %v70 = vpack.c.b16 %v61, %v60
  %v71 = vpack.c.b16 %v63, %v62
  %80 = vmatprep.subr.bf16.mxu0 0
  %81 = vmatpush1.bf16.msra.mxu0 %v64
  %82 = vmatprep.subr.bf16.mxu0 0
  %83 = vmatpush1.bf16.msra.mxu0 %v65
  %84 = vmatprep.subr.bf16.mxu0 0
  %85 = vmatpush1.bf16.msra.mxu0 %v66
  %86 = vmatprep.subr.bf16.mxu0 0
  %87 = vmatpush1.bf16.msra.mxu0 %v67
  %88 = vmatprep.subr.bf16.mxu0 0
  %89 = vmatpush1.bf16.msra.mxu0 %v68
  %90 = vmatprep.subr.bf16.mxu0 0
  %91 = vmatpush1.bf16.msra.mxu0 %v69
  %92 = vmatprep.subr.bf16.mxu0 0
  %93 = vmatpush1.bf16.msra.mxu0 %v70
  %94 = vmatprep.subr.bf16.mxu0 0
  %95 = vmatpush1.bf16.msra.mxu0 %v71
  %96 = vmatprep.subr.bf16.mxu0 0
  %97 = vmatpush1.bf16.msra.mxu0 0
  %98 = vmatprep.subr.bf16.mxu0 0
  %99 = vmatpush1.bf16.msra.mxu0 0
  %100 = vmatprep.subr.bf16.mxu0 0
  %101 = vmatpush1.bf16.msra.mxu0 0
  %102 = vmatprep.subr.bf16.mxu0 0
  %103 = vmatpush1.bf16.msra.mxu0 0
  %104 = vmatprep.subr.bf16.mxu0 0
  %105 = vmatpush1.bf16.msra.mxu0 0
  %106 = vmatprep.subr.bf16.mxu0 0
  %107 = vmatpush1.bf16.msra.mxu0 0
  %108 = vmatprep.subr.bf16.mxu0 0
  %109 = vmatpush1.bf16.msra.mxu0 0
  %110 = vmatprep.subr.bf16.mxu0 0
  %111 = vmatpush1.bf16.msra.mxu0 0
  %112 = vmatprep.mubr.bf16.mxu0 0
  %113 = vmatmul.mubr.bf16.gmra.mrb[0].mxu0 %v15
  %v114 = vpop.f32.mrb[0].mxu0
  %v115 = vadd.f32 0.0, %v114
  %v116 = vpop.f32.mrb[0].mxu0
  %v117 = vpop.f32.mrb[0].mxu0
  %v118 = vpop.f32.mrb[0].mxu0
  %119 = vdwg.mxu0
  %p120 = scmp.eq.s32.totalorder 0, 0
  // Predicated region
  $region14: #{vgg_forward.14} parent=0 // pred_check
    %p121 = pneg %p120
  $region15: #{vgg_forward.14} parent=0 // pred_check_branch
    %123 = sbr.rel (%p121) target = $region17
  $region16: #{vgg_forward.14} parent=0 // pred_region
    %124 = vst [vmem:[#allocation2] sm:$0xff] %v115
  $region17: #{vgg_forward.14} parent=0 // pred_fallthru
    _
  %p125 = scmp.gt.s32.totalorder 0, 0
  // Predicated region
  $region18: #{vgg_forward.14} parent=0 // pred_check
    %p126 = pneg %p125
  $region19: #{vgg_forward.14} parent=0 // pred_check_branch
    %128 = sbr.rel (%p126) target = $region21
  $region20: #{vgg_forward.14} parent=0 // pred_region
    %v129 = vld [vmem:[#allocation2] sm:$0xff]
    %v130 = vadd.f32 %v129, %v115
    %131 = vst [vmem:[#allocation2] sm:$0xff] %v130
  $region21: #{vgg_forward.14} parent=0 // pred_fallthru
    _
  // Predicated region
  $region22: #{vgg_forward.14} parent=0 // pred_check
    %p132 = pneg %p120
  $region23: #{vgg_forward.14} parent=0 // pred_check_branch
    %134 = sbr.rel (%p132) target = $region25
  $region24: #{vgg_forward.14} parent=0 // pred_region
    %v135 = vld [vmem:[#allocation2] sm:$0xff]
    %v136 = vld [vmem:[%s2] sm:$0x1]
    %v138 = vlaneseq
    %v139 = vshrl.u32 %v138, 7
    %v140 = vsub.s32 0, %v139
    %v141 = vrot.slane %v136, %v140
    %v143 = vadd.f32 %v135, %v141
    %v144 = vmax.f32 %v143, 0.0
    %v145 = vpack.c.bf16 %v144, %v144
    %146 = vst [vmem:[%s3] sm:$0xf] %v145
  $region25: #{vgg_forward.14} parent=0 // pred_fallthru
    _
  // Predicated region
  $region26: #{vgg_forward.14} parent=0 // pred_check
    _
  $region27: #{vgg_forward.14} parent=0 // pred_check_branch
    %148 = sbr.rel (0) target = $region29
  $region28: #{vgg_forward.14} parent=0 // pred_region
    _
  $region29: #{vgg_forward.14} parent=0 // pred_fallthru
    _
  // Predicated region
  $region30: #{vgg_forward.14} parent=0 // pred_check
    _
  $region31: #{vgg_forward.14} parent=0 // pred_check_branch
    %150 = sbr.rel (0) target = $region33
  $region32: #{vgg_forward.14} parent=0 // pred_region
    _
  $region33: #{vgg_forward.14} parent=0 // pred_fallthru
    _

// kernel: vgg_forward.15
$region0: #{vgg_forward.15}
  #allocation0 [shape = 'u32[]', space=smem, size = 0x4, offset = 0x4, fixed_abs, tag = 'smem constant byte address 0x4 - core index']
  #allocation1 [shape = 'u32[144,128]{1,0:T(1,128)}', space=vmem, size = 0x12000, scoped, tag = 'internal scratch']
  #allocation2 [shape = 'f32[8,128]{1,0:T(8,128)}', space=vmem, size = 0x1000, scoped, tag = 'scratch operand']
  %s0 = inlined_call_operand.vmem [shape: bf16[8,128], index: 0, kind: input, shape index: {}]
  %s1 = inlined_call_operand.vmem [shape: bf16[128,128], index: 1, kind: input, shape index: {}]
  %s2 = inlined_call_operand.vmem [shape: f32[1,128], index: 2, kind: input, shape index: {}]
  %s3 = inlined_call_operand.vmem [shape: f32[8,128], index: 3, kind: output, shape index: {}]
  %s4 = sld [smem:[#allocation0]]
  $region34: #{vgg_forward.15} parent=0
    _
  %s6 = ssub.s32 1, %s4
  %s7 = scalar_select 0, %s6, %s4
  // Predicated region
  $region2: #{vgg_forward.15} parent=0 // pred_check
    _
  $region3: #{vgg_forward.15} parent=0 // pred_check_branch
    %9 = sbr.rel (0) target = $region5
  $region4: #{vgg_forward.15} parent=0 // pred_region
    _
  $region5: #{vgg_forward.15} parent=0 // pred_fallthru
    _
  // Predicated region
  $region6: #{vgg_forward.15} parent=0 // pred_check
    _
  $region7: #{vgg_forward.15} parent=0 // pred_check_branch
    %11 = sbr.rel (0) target = $region9
  $region8: #{vgg_forward.15} parent=0 // pred_region
    _
  $region9: #{vgg_forward.15} parent=0 // pred_fallthru
    _
  // Predicated region
  $region10: #{vgg_forward.15} parent=0 // pred_check
    _
  $region11: #{vgg_forward.15} parent=0 // pred_check_branch
    %13 = sbr.rel (0) target = $region13
  $region12: #{vgg_forward.15} parent=0 // pred_region
    _
  $region13: #{vgg_forward.15} parent=0 // pred_fallthru
    _
  %v15 = vld [vmem:[%s0] sm:$0xf]
  %v16 = vld [vmem:[%s1] sm:$0xf]
  %v17 = vld [vmem:[%s1 + $0x4] sm:$0xf]
  %v18 = vld [vmem:[%s1 + $0x8] sm:$0xf]
  %v19 = vld [vmem:[%s1 + $0xc] sm:$0xf]
  %v20 = vld [vmem:[%s1 + $0x10] sm:$0xf]
  %v21 = vld [vmem:[%s1 + $0x14] sm:$0xf]
  %v22 = vld [vmem:[%s1 + $0x18] sm:$0xf]
  %v23 = vld [vmem:[%s1 + $0x1c] sm:$0xf]
  %v24 = vld [vmem:[%s1 + $0x20] sm:$0xf]
  %v25 = vld [vmem:[%s1 + $0x24] sm:$0xf]
  %v26 = vld [vmem:[%s1 + $0x28] sm:$0xf]
  %v27 = vld [vmem:[%s1 + $0x2c] sm:$0xf]
  %v28 = vld [vmem:[%s1 + $0x30] sm:$0xf]
  %v29 = vld [vmem:[%s1 + $0x34] sm:$0xf]
  %v30 = vld [vmem:[%s1 + $0x38] sm:$0xf]
  %v31 = vld [vmem:[%s1 + $0x3c] sm:$0xf]
  %v48 = vunpack.c.l.b16 %v16
  %v49 = vunpack.c.l.b16 %v17
  %v50 = vunpack.c.l.b16 %v18
  %v51 = vunpack.c.l.b16 %v19
  %v52 = vunpack.c.l.b16 %v20
  %v53 = vunpack.c.l.b16 %v21
  %v54 = vunpack.c.l.b16 %v22
  %v55 = vunpack.c.l.b16 %v23
  %v56 = vunpack.c.l.b16 %v24
  %v57 = vunpack.c.l.b16 %v25
  %v58 = vunpack.c.l.b16 %v26
  %v59 = vunpack.c.l.b16 %v27
  %v60 = vunpack.c.l.b16 %v28
  %v61 = vunpack.c.l.b16 %v29
  %v62 = vunpack.c.l.b16 %v30
  %v63 = vunpack.c.l.b16 %v31
  %v64 = vpack.c.b16 %v49, %v48
  %v65 = vpack.c.b16 %v51, %v50
  %v66 = vpack.c.b16 %v53, %v52
  %v67 = vpack.c.b16 %v55, %v54
  %v68 = vpack.c.b16 %v57, %v56
  %v69 = vpack.c.b16 %v59, %v58
  %v70 = vpack.c.b16 %v61, %v60
  %v71 = vpack.c.b16 %v63, %v62
  %80 = vmatprep.subr.bf16.mxu0 0
  %81 = vmatpush1.bf16.msra.mxu0 %v64
  %82 = vmatprep.subr.bf16.mxu0 0
  %83 = vmatpush1.bf16.msra.mxu0 %v65
  %84 = vmatprep.subr.bf16.mxu0 0
  %85 = vmatpush1.bf16.msra.mxu0 %v66
  %86 = vmatprep.subr.bf16.mxu0 0
  %87 = vmatpush1.bf16.msra.mxu0 %v67
  %88 = vmatprep.subr.bf16.mxu0 0
  %89 = vmatpush1.bf16.msra.mxu0 %v68
  %90 = vmatprep.subr.bf16.mxu0 0
  %91 = vmatpush1.bf16.msra.mxu0 %v69
  %92 = vmatprep.subr.bf16.mxu0 0
  %93 = vmatpush1.bf16.msra.mxu0 %v70
  %94 = vmatprep.subr.bf16.mxu0 0
  %95 = vmatpush1.bf16.msra.mxu0 %v71
  %96 = vmatprep.subr.bf16.mxu0 0
  %97 = vmatpush1.bf16.msra.mxu0 0
  %98 = vmatprep.subr.bf16.mxu0 0
  %99 = vmatpush1.bf16.msra.mxu0 0
  %100 = vmatprep.subr.bf16.mxu0 0
  %101 = vmatpush1.bf16.msra.mxu0 0
  %102 = vmatprep.subr.bf16.mxu0 0
  %103 = vmatpush1.bf16.msra.mxu0 0
  %104 = vmatprep.subr.bf16.mxu0 0
  %105 = vmatpush1.bf16.msra.mxu0 0
  %106 = vmatprep.subr.bf16.mxu0 0
  %107 = vmatpush1.bf16.msra.mxu0 0
  %108 = vmatprep.subr.bf16.mxu0 0
  %109 = vmatpush1.bf16.msra.mxu0 0
  %110 = vmatprep.subr.bf16.mxu0 0
  %111 = vmatpush1.bf16.msra.mxu0 0
  %112 = vmatprep.mubr.bf16.mxu0 0
  %113 = vmatmul.mubr.bf16.gmra.mrb[0].mxu0 %v15
  %v114 = vpop.f32.mrb[0].mxu0
  %v115 = vadd.f32 0.0, %v114
  %v116 = vpop.f32.mrb[0].mxu0
  %v117 = vpop.f32.mrb[0].mxu0
  %v118 = vpop.f32.mrb[0].mxu0
  %119 = vdwg.mxu0
  %p120 = scmp.eq.s32.totalorder 0, 0
  // Predicated region
  $region14: #{vgg_forward.15} parent=0 // pred_check
    %p121 = pneg %p120
  $region15: #{vgg_forward.15} parent=0 // pred_check_branch
    %123 = sbr.rel (%p121) target = $region17
  $region16: #{vgg_forward.15} parent=0 // pred_region
    %124 = vst [vmem:[#allocation2] sm:$0xff] %v115
  $region17: #{vgg_forward.15} parent=0 // pred_fallthru
    _
  %p125 = scmp.gt.s32.totalorder 0, 0
  // Predicated region
  $region18: #{vgg_forward.15} parent=0 // pred_check
    %p126 = pneg %p125
  $region19: #{vgg_forward.15} parent=0 // pred_check_branch
    %128 = sbr.rel (%p126) target = $region21
  $region20: #{vgg_forward.15} parent=0 // pred_region
    %v129 = vld [vmem:[#allocation2] sm:$0xff]
    %v130 = vadd.f32 %v129, %v115
    %131 = vst [vmem:[#allocation2] sm:$0xff] %v130
  $region21: #{vgg_forward.15} parent=0 // pred_fallthru
    _
  // Predicated region
  $region22: #{vgg_forward.15} parent=0 // pred_check
    %p132 = pneg %p120
  $region23: #{vgg_forward.15} parent=0 // pred_check_branch
    %134 = sbr.rel (%p132) target = $region25
  $region24: #{vgg_forward.15} parent=0 // pred_region
    %v135 = vld [vmem:[#allocation2] sm:$0xff]
    %v136 = vld [vmem:[%s2] sm:$0x1]
    %v138 = vlaneseq
    %v139 = vshrl.u32 %v138, 7
    %v140 = vsub.s32 0, %v139
    %v141 = vrot.slane %v136, %v140
    %v143 = vadd.f32 %v135, %v141
    %144 = vst [vmem:[%s3] sm:$0xff] %v143
  $region25: #{vgg_forward.15} parent=0 // pred_fallthru
    _
  // Predicated region
  $region26: #{vgg_forward.15} parent=0 // pred_check
    _
  $region27: #{vgg_forward.15} parent=0 // pred_check_branch
    %146 = sbr.rel (0) target = $region29
  $region28: #{vgg_forward.15} parent=0 // pred_region
    _
  $region29: #{vgg_forward.15} parent=0 // pred_fallthru
    _
  // Predicated region
  $region30: #{vgg_forward.15} parent=0 // pred_check
    _
  $region31: #{vgg_forward.15} parent=0 // pred_check_branch
    %148 = sbr.rel (0) target = $region33
  $region32: #{vgg_forward.15} parent=0 // pred_region
    _
  $region33: #{vgg_forward.15} parent=0 // pred_fallthru
    _

// kernel: vgg_forward.13
$region0: #{vgg_forward.13}
  #allocation0 [shape = 'u32[]', space=smem, size = 0x4, offset = 0x4, fixed_abs, tag = 'smem constant byte address 0x4 - core index']
  #allocation1 [shape = 'u32[144,128]{1,0:T(1,128)}', space=vmem, size = 0x12000, scoped, tag = 'internal scratch']
  #allocation2 [shape = 'f32[8,128]{1,0:T(8,128)}', space=vmem, size = 0x1000, scoped, tag = 'scratch operand']
  %s0 = inlined_call_operand.vmem [shape: bf16[8,2048], index: 0, kind: input, shape index: {}]
  %s1 = inlined_call_operand.vmem [shape: bf16[2048,128], index: 1, kind: input, shape index: {}]
  %s2 = inlined_call_operand.vmem [shape: f32[1,128], index: 2, kind: input, shape index: {}]
  %s3 = inlined_call_operand.vmem [shape: bf16[8,128], index: 3, kind: output, shape index: {}]
  %s4 = sld [smem:[#allocation0]]
  $region57: #{vgg_forward.13} parent=0
    _
  %s6 = ssub.s32 1, %s4
  %s7 = scalar_select 0, %s6, %s4
  loop: start=0, step=1, limit=4
  $region2: #{vgg_forward.13} parent=0 // loop_pre_header
    _
  $region3: #{vgg_forward.13} parent=0 // loop_header
    %s9 = sphi 0, %s13
    %p10 = scmp.ge.s32.totalorder %s9, 4
    %s16 = sphi 0, %s35
    %s17 = sphi 0, %s31
    %s18 = sphi 0, %s27
    %s19 = sphi 0, %s16
    %s20 = sphi 0, %s17
    %s21 = sphi 0, %s18
    %s22 = sphi 0, %s19
    %s23 = sphi 0, %s20
    %s24 = sphi 0, %s21
    %s40 = sphi 0, %s42
    %s43 = sphi 0, %s40
    %s44 = sphi 0, %s43
    %s60 = sphi 0, %s44
    %s68 = sphi 0, %s70
    %s71 = sphi 0, %s68
    %s72 = sphi 0, %s71
    %s88 = sphi 0, %s72
    %s94 = sphi 0, %s96
    %s97 = sphi 0, %s94
    %s98 = sphi 0, %s97
    %s114 = sphi 0, %s98
    %s122 = sphi 0, %s124
    %s125 = sphi 0, %s122
    %s126 = sphi 0, %s125
    %s142 = sphi 0, %s126
  $region4: #{vgg_forward.13} parent=0 // loop_header_branch
    %12 = sbr.rel (%p10) target = $region8
  $region5: #{vgg_forward.13} parent=0 // loop_body
    %s14 = ssub.s32 %s9, 1
    %s15 = ssub.s32 %s9, 2
    %s25 = sadd.s32 1, %s18
    %p26 = scmp.ge.s32.totalorder %s25, 2
    %s27 = scalar_select %p26, 0, %s25
    %s28 = sadd.s32 1, %s17
    %s29 = scalar_select %p26, %s28, %s17
    %p30 = scmp.ge.s32.totalorder %s29, 1
    %s31 = scalar_select %p30, 0, %s29
    %s32 = sadd.s32 1, %s16
    %s33 = scalar_select %p30, %s32, %s16
    %p34 = scmp.ge.s32.totalorder %s33, 1
    %s35 = scalar_select %p34, 0, %s33
    %s36 = ssub.s32 %s16, %s35
    %s37 = ssub.s32 %s18, %s27
    %s38 = sor.u32 %s36, %s37
    %p39 = scmp.eq.s32.totalorder %s38, 0
    %s41 = sadd.s32 %s40, 1
    %s42 = scalar_select %p39, %s40, %s41
    %p45 = pneg %p39
    %p46 = scmp.eq.s32.totalorder %s9, 1
    %p47 = por %p45, %p46
    %p48 = scmp.ne.s32.totalorder %s40, %s43
    %p49 = scmp.eq.s32.totalorder %s9, 0
    %p50 = por %p48, %p49
    %p51 = scmp.ne.s32.totalorder %s40, %s43
    %p52 = scmp.eq.s32.totalorder %s14, 1
    %p53 = por %p51, %p52
    %p54 = scmp.ne.s32.totalorder %s43, %s44
    %p55 = scmp.eq.s32.totalorder %s14, 0
    %p56 = por %p54, %p55
    %p57 = scmp.ne.s32.totalorder %s43, %s44
    %p58 = scmp.eq.s32.totalorder %s15, 1
    %p59 = por %p57, %p58
    %p61 = scmp.ne.s32.totalorder %s44, %s60
    %p62 = scmp.eq.s32.totalorder %s15, 0
    %p63 = por %p61, %p62
    %s64 = ssub.s32 %s18, %s27
    %s65 = ssub.s32 %s17, %s31
    %s66 = sor.u32 %s64, %s65
    %p67 = scmp.eq.s32.totalorder %s66, 0
    %s69 = sadd.s32 %s68, 1
    %s70 = scalar_select %p67, %s68, %s69
    %p73 = pneg %p67
    %p74 = scmp.eq.s32.totalorder %s9, 1
    %p75 = por %p73, %p74
    %p76 = scmp.ne.s32.totalorder %s68, %s71
    %p77 = scmp.eq.s32.totalorder %s9, 0
    %p78 = por %p76, %p77
    %p79 = scmp.ne.s32.totalorder %s68, %s71
    %p80 = scmp.eq.s32.totalorder %s14, 1
    %p81 = por %p79, %p80
    %p82 = scmp.ne.s32.totalorder %s71, %s72
    %p83 = scmp.eq.s32.totalorder %s14, 0
    %p84 = por %p82, %p83
    %p85 = scmp.ne.s32.totalorder %s71, %s72
    %p86 = scmp.eq.s32.totalorder %s15, 1
    %p87 = por %p85, %p86
    %p89 = scmp.ne.s32.totalorder %s72, %s88
    %p90 = scmp.eq.s32.totalorder %s15, 0
    %p91 = por %p89, %p90
    %s92 = ssub.s32 %s17, %s31
    %p93 = scmp.eq.s32.totalorder %s92, 0
    %s95 = sadd.s32 %s94, 1
    %s96 = scalar_select %p93, %s94, %s95
    %p99 = pneg %p93
    %p100 = scmp.eq.s32.totalorder %s9, 1
    %p101 = por %p99, %p100
    %p102 = scmp.ne.s32.totalorder %s94, %s97
    %p103 = scmp.eq.s32.totalorder %s9, 0
    %p104 = por %p102, %p103
    %p105 = scmp.ne.s32.totalorder %s94, %s97
    %p106 = scmp.eq.s32.totalorder %s14, 1
    %p107 = por %p105, %p106
    %p108 = scmp.ne.s32.totalorder %s97, %s98
    %p109 = scmp.eq.s32.totalorder %s14, 0
    %p110 = por %p108, %p109
    %p111 = scmp.ne.s32.totalorder %s97, %s98
    %p112 = scmp.eq.s32.totalorder %s15, 1
    %p113 = por %p111, %p112
    %p115 = scmp.ne.s32.totalorder %s98, %s114
    %p116 = scmp.eq.s32.totalorder %s15, 0
    %p117 = por %p115, %p116
    %s118 = ssub.s32 %s16, %s35
    %s119 = ssub.s32 %s17, %s31
    %s120 = sor.u32 %s118, %s119
    %p121 = scmp.eq.s32.totalorder %s120, 0
    %s123 = sadd.s32 %s122, 1
    %s124 = scalar_select %p121, %s122, %s123
    %p127 = pneg %p121
    %p128 = scmp.eq.s32.totalorder %s9, 1
    %p129 = por %p127, %p128
    %p130 = scmp.ne.s32.totalorder %s122, %s125
    %p131 = scmp.eq.s32.totalorder %s9, 0
    %p132 = por %p130, %p131
    %p133 = scmp.ne.s32.totalorder %s122, %s125
    %p134 = scmp.eq.s32.totalorder %s14, 1
    %p135 = por %p133, %p134
    %p136 = scmp.ne.s32.totalorder %s125, %s126
    %p137 = scmp.eq.s32.totalorder %s14, 0
    %p138 = por %p136, %p137
    %p139 = scmp.ne.s32.totalorder %s125, %s126
    %p140 = scmp.eq.s32.totalorder %s15, 1
    %p141 = por %p139, %p140
    %p143 = scmp.ne.s32.totalorder %s126, %s142
    %p144 = scmp.eq.s32.totalorder %s15, 0
    %p145 = por %p143, %p144
    %p146 = scmp.le.s32.totalorder 1, %s9
    %p147 = scmp.lt.s32.totalorder %s9, 3
    %p148 = pnand %p146, %p147
    %p149 = pneg %p148
    // Predicated region
    $region9: #{vgg_forward.13} parent=5 // pred_check
      _
    $region10: #{vgg_forward.13} parent=5 // pred_check_branch
      %151 = sbr.rel (%p148) target = $region12
    $region11: #{vgg_forward.13} parent=5 // pred_region
      %s152 = ssub.s32 %s9, 1
      // Predicated region
      $region13: #{vgg_forward.13} parent=11 // pred_check
        %p153 = pneg %p110
      $region14: #{vgg_forward.13} parent=11 // pred_check_branch
        %155 = sbr.rel (%p153) target = $region16
      $region15: #{vgg_forward.13} parent=11 // pred_region
        %p156 = scmp.lt.s32.totalorder %s20, 0
        %s157 = scalar_select %p156, %s20, 0
        %s158 = scalar_lea.vmem %s2, %s157
      $region16: #{vgg_forward.13} parent=11 // pred_fallthru
        _
    $region12: #{vgg_forward.13} parent=5 // pred_fallthru
      _
    %p159 = scmp.lt.s32.totalorder %s9, 2
    // Predicated region
    $region17: #{vgg_forward.13} parent=5 // pred_check
      %p160 = pneg %p159
    $region18: #{vgg_forward.13} parent=5 // pred_check_branch
      %162 = sbr.rel (%p160) target = $region20
    $region19: #{vgg_forward.13} parent=5 // pred_region
      // Predicated region
      $region21: #{vgg_forward.13} parent=19 // pred_check
        %p163 = pneg %p50
      $region22: #{vgg_forward.13} parent=19 // pred_check_branch
        %165 = sbr.rel (%p163) target = $region24
      $region23: #{vgg_forward.13} parent=19 // pred_region
        %s166 = smul.u32 8, %s18
        %p167 = scmp.lt.s32.totalorder %s16, 0
        %s168 = scalar_select %p167, %s16, 0
        %p169 = scmp.lt.s32.totalorder %s166, 15
        %s170 = scalar_select %p169, %s166, 15
        %s171 = smul.addr %s168, 16
        %s172 = sadd.s32 %s170, %s171
        %s173 = smul.addr %s172, 4
        %s174 = scalar_lea.vmem %s0, %s173
        %s175 = smul.u32 8, %s18
      $region24: #{vgg_forward.13} parent=19 // pred_fallthru
        _
      // Predicated region
      $region25: #{vgg_forward.13} parent=19 // pred_check
        %p176 = pneg %p78
      $region26: #{vgg_forward.13} parent=19 // pred_check_branch
        %178 = sbr.rel (%p176) target = $region28
      $region27: #{vgg_forward.13} parent=19 // pred_region
        %s179 = smul.u32 128, %s18
        %p180 = scmp.lt.s32.totalorder %s179, 255
        %s181 = scalar_select %p180, %s179, 255
        %p182 = scmp.lt.s32.totalorder %s17, 0
        %s183 = scalar_select %p182, %s17, 0
        %s184 = sadd.s32 %s183, %s181
        %s185 = smul.addr %s184, 4
        %s186 = scalar_lea.vmem %s1, %s185
        %s187 = smul.u32 128, %s18
      $region28: #{vgg_forward.13} parent=19 // pred_fallthru
        _
    $region20: #{vgg_forward.13} parent=5 // pred_fallthru
      _
    %p188 = scmp.le.s32.totalorder 1, %s9
    %p189 = scmp.lt.s32.totalorder %s9, 3
    %p190 = pnand %p188, %p189
    %p191 = pneg %p190
    // Predicated region
    $region29: #{vgg_forward.13} parent=5 // pred_check
      _
    $region30: #{vgg_forward.13} parent=5 // pred_check_branch
      %193 = sbr.rel (%p190) target = $region32
    $region31: #{vgg_forward.13} parent=5 // pred_region
      %s194 = ssub.s32 %s9, 1
      %s195 = smul.u32 8, %s21
      %p196 = scmp.lt.s32.totalorder %s19, 0
      %s197 = scalar_select %p196, %s19, 0
      %p198 = scmp.lt.s32.totalorder %s195, 15
      %s199 = scalar_select %p198, %s195, 15
      %s200 = smul.addr %s197, 16
      %s201 = sadd.s32 %s199, %s200
      %s202 = smul.addr %s201, 4
      %s203 = scalar_lea.vmem %s0, %s202
      %p204 = pneg %p56
      %p205 = pneg %p53
      %s206 = smul.u32 128, %s21
      %p207 = scmp.lt.s32.totalorder %s206, 255
      %s208 = scalar_select %p207, %s206, 255
      %p209 = scmp.lt.s32.totalorder %s20, 0
      %s210 = scalar_select %p209, %s20, 0
      %s211 = sadd.s32 %s210, %s208
      %s212 = smul.addr %s211, 4
      %s213 = scalar_lea.vmem %s1, %s212
      %p214 = pneg %p84
      %p215 = pneg %p81
      %p216 = scmp.lt.s32.totalorder %s20, 0
      %s217 = scalar_select %p216, %s20, 0
      %s218 = scalar_lea.vmem %s2, %s217
      %p219 = pneg %p110
      %p220 = pneg %p107
      %p221 = pneg %p138
      %p222 = pneg %p135
      %p223 = scmp.lt.s32.totalorder %s19, 0
      %s224 = scalar_select %p223, %s19, 0
      %p225 = scmp.lt.s32.totalorder %s20, 0
      %s226 = scalar_select %p225, %s20, 0
      %s227 = sadd.s32 %s226, %s224
      %s228 = smul.addr %s227, 4
      %s229 = scalar_lea.vmem %s3, %s228
      %s230 = smul.u32 8, %s21
      %p231 = scmp.lt.s32.totalorder %s19, 0
      %s232 = scalar_select %p231, %s19, 0
      %p233 = scmp.lt.s32.totalorder %s230, 15
      %s234 = scalar_select %p233, %s230, 15
      %s235 = smul.addr %s232, 16
      %s236 = sadd.s32 %s234, %s235
      %s237 = smul.addr %s236, 4
      %s238 = scalar_lea.vmem %s0, %s237
      %s239 = smul.u32 8, %s21
      %s240 = smul.u32 128, %s21
      %p241 = scmp.lt.s32.totalorder %s240, 255
      %s242 = scalar_select %p241, %s240, 255
      %p243 = scmp.lt.s32.totalorder %s20, 0
      %s244 = scalar_select %p243, %s20, 0
      %s245 = sadd.s32 %s244, %s242
      %s246 = smul.addr %s245, 4
      %s247 = scalar_lea.vmem %s1, %s246
      %s248 = smul.u32 128, %s21
      %p249 = scmp.lt.s32.totalorder %s20, 0
      %s250 = scalar_select %p249, %s20, 0
      %s251 = scalar_lea.vmem %s2, %s250
      %p252 = scmp.lt.s32.totalorder %s19, 0
      %s253 = scalar_select %p252, %s19, 0
      %p254 = scmp.lt.s32.totalorder %s20, 0
      %s255 = scalar_select %p254, %s20, 0
      %s256 = sadd.s32 %s255, %s253
      %s257 = smul.addr %s256, 4
      %s258 = scalar_lea.vmem %s3, %s257
      %v260 = vld [vmem:[%s238] sm:$0xff]
      %v261 = vld [vmem:[%s238 + $0x8] sm:$0xff]
      %v262 = vld [vmem:[%s238 + $0x10] sm:$0xff]
      %v263 = vld [vmem:[%s238 + $0x18] sm:$0xff]
      %v264 = vld [vmem:[%s247] sm:$0xf]
      %v265 = vld [vmem:[%s247 + $0x4] sm:$0xf]
      %v266 = vld [vmem:[%s247 + $0x8] sm:$0xf]
      %v267 = vld [vmem:[%s247 + $0xc] sm:$0xf]
      %v268 = vld [vmem:[%s247 + $0x10] sm:$0xf]
      %v269 = vld [vmem:[%s247 + $0x14] sm:$0xf]
      %v270 = vld [vmem:[%s247 + $0x18] sm:$0xf]
      %v271 = vld [vmem:[%s247 + $0x1c] sm:$0xf]
      %v272 = vld [vmem:[%s247 + $0x20] sm:$0xf]
      %v273 = vld [vmem:[%s247 + $0x24] sm:$0xf]
      %v274 = vld [vmem:[%s247 + $0x28] sm:$0xf]
      %v275 = vld [vmem:[%s247 + $0x2c] sm:$0xf]
      %v276 = vld [vmem:[%s247 + $0x30] sm:$0xf]
      %v277 = vld [vmem:[%s247 + $0x34] sm:$0xf]
      %v278 = vld [vmem:[%s247 + $0x38] sm:$0xf]
      %v279 = vld [vmem:[%s247 + $0x3c] sm:$0xf]
      %v280 = vld [vmem:[%s247 + $0x40] sm:$0xf]
      %v281 = vld [vmem:[%s247 + $0x44] sm:$0xf]
      %v282 = vld [vmem:[%s247 + $0x48] sm:$0xf]
      %v283 = vld [vmem:[%s247 + $0x4c] sm:$0xf]
      %v284 = vld [vmem:[%s247 + $0x50] sm:$0xf]
      %v285 = vld [vmem:[%s247 + $0x54] sm:$0xf]
      %v286 = vld [vmem:[%s247 + $0x58] sm:$0xf]
      %v287 = vld [vmem:[%s247 + $0x5c] sm:$0xf]
      %v288 = vld [vmem:[%s247 + $0x60] sm:$0xf]
      %v289 = vld [vmem:[%s247 + $0x64] sm:$0xf]
      %v290 = vld [vmem:[%s247 + $0x68] sm:$0xf]
      %v291 = vld [vmem:[%s247 + $0x6c] sm:$0xf]
      %v292 = vld [vmem:[%s247 + $0x70] sm:$0xf]
      %v293 = vld [vmem:[%s247 + $0x74] sm:$0xf]
      %v294 = vld [vmem:[%s247 + $0x78] sm:$0xf]
      %v295 = vld [vmem:[%s247 + $0x7c] sm:$0xf]
      %v296 = vld [vmem:[%s247 + $0x80] sm:$0xf]
      %v297 = vld [vmem:[%s247 + $0x84] sm:$0xf]
      %v298 = vld [vmem:[%s247 + $0x88] sm:$0xf]
      %v299 = vld [vmem:[%s247 + $0x8c] sm:$0xf]
      %v300 = vld [vmem:[%s247 + $0x90] sm:$0xf]
      %v301 = vld [vmem:[%s247 + $0x94] sm:$0xf]
      %v302 = vld [vmem:[%s247 + $0x98] sm:$0xf]
      %v303 = vld [vmem:[%s247 + $0x9c] sm:$0xf]
      %v304 = vld [vmem:[%s247 + $0xa0] sm:$0xf]
      %v305 = vld [vmem:[%s247 + $0xa4] sm:$0xf]
      %v306 = vld [vmem:[%s247 + $0xa8] sm:$0xf]
      %v307 = vld [vmem:[%s247 + $0xac] sm:$0xf]
      %v308 = vld [vmem:[%s247 + $0xb0] sm:$0xf]
      %v309 = vld [vmem:[%s247 + $0xb4] sm:$0xf]
      %v310 = vld [vmem:[%s247 + $0xb8] sm:$0xf]
      %v311 = vld [vmem:[%s247 + $0xbc] sm:$0xf]
      %v312 = vld [vmem:[%s247 + $0xc0] sm:$0xf]
      %v313 = vld [vmem:[%s247 + $0xc4] sm:$0xf]
      %v314 = vld [vmem:[%s247 + $0xc8] sm:$0xf]
      %v315 = vld [vmem:[%s247 + $0xcc] sm:$0xf]
      %v316 = vld [vmem:[%s247 + $0xd0] sm:$0xf]
      %v317 = vld [vmem:[%s247 + $0xd4] sm:$0xf]
      %v318 = vld [vmem:[%s247 + $0xd8] sm:$0xf]
      %v319 = vld [vmem:[%s247 + $0xdc] sm:$0xf]
      %v320 = vld [vmem:[%s247 + $0xe0] sm:$0xf]
      %v321 = vld [vmem:[%s247 + $0xe4] sm:$0xf]
      %v322 = vld [vmem:[%s247 + $0xe8] sm:$0xf]
      %v323 = vld [vmem:[%s247 + $0xec] sm:$0xf]
      %v324 = vld [vmem:[%s247 + $0xf0] sm:$0xf]
      %v325 = vld [vmem:[%s247 + $0xf4] sm:$0xf]
      %v326 = vld [vmem:[%s247 + $0xf8] sm:$0xf]
      %v327 = vld [vmem:[%s247 + $0xfc] sm:$0xf]
      %v328 = vld [vmem:[%s247 + $0x100] sm:$0xf]
      %v329 = vld [vmem:[%s247 + $0x104] sm:$0xf]
      %v330 = vld [vmem:[%s247 + $0x108] sm:$0xf]
      %v331 = vld [vmem:[%s247 + $0x10c] sm:$0xf]
      %v332 = vld [vmem:[%s247 + $0x110] sm:$0xf]
      %v333 = vld [vmem:[%s247 + $0x114] sm:$0xf]
      %v334 = vld [vmem:[%s247 + $0x118] sm:$0xf]
      %v335 = vld [vmem:[%s247 + $0x11c] sm:$0xf]
      %v336 = vld [vmem:[%s247 + $0x120] sm:$0xf]
      %v337 = vld [vmem:[%s247 + $0x124] sm:$0xf]
      %v338 = vld [vmem:[%s247 + $0x128] sm:$0xf]
      %v339 = vld [vmem:[%s247 + $0x12c] sm:$0xf]
      %v340 = vld [vmem:[%s247 + $0x130] sm:$0xf]
      %v341 = vld [vmem:[%s247 + $0x134] sm:$0xf]
      %v342 = vld [vmem:[%s247 + $0x138] sm:$0xf]
      %v343 = vld [vmem:[%s247 + $0x13c] sm:$0xf]
      %v344 = vld [vmem:[%s247 + $0x140] sm:$0xf]
      %v345 = vld [vmem:[%s247 + $0x144] sm:$0xf]
      %v346 = vld [vmem:[%s247 + $0x148] sm:$0xf]
      %v347 = vld [vmem:[%s247 + $0x14c] sm:$0xf]
      %v348 = vld [vmem:[%s247 + $0x150] sm:$0xf]
      %v349 = vld [vmem:[%s247 + $0x154] sm:$0xf]
      %v350 = vld [vmem:[%s247 + $0x158] sm:$0xf]
      %v351 = vld [vmem:[%s247 + $0x15c] sm:$0xf]
      %v352 = vld [vmem:[%s247 + $0x160] sm:$0xf]
      %v353 = vld [vmem:[%s247 + $0x164] sm:$0xf]
      %v354 = vld [vmem:[%s247 + $0x168] sm:$0xf]
      %v355 = vld [vmem:[%s247 + $0x16c] sm:$0xf]
      %v356 = vld [vmem:[%s247 + $0x170] sm:$0xf]
      %v357 = vld [vmem:[%s247 + $0x174] sm:$0xf]
      %v358 = vld [vmem:[%s247 + $0x178] sm:$0xf]
      %v359 = vld [vmem:[%s247 + $0x17c] sm:$0xf]
      %v360 = vld [vmem:[%s247 + $0x180] sm:$0xf]
      %v361 = vld [vmem:[%s247 + $0x184] sm:$0xf]
      %v362 = vld [vmem:[%s247 + $0x188] sm:$0xf]
      %v363 = vld [vmem:[%s247 + $0x18c] sm:$0xf]
      %v364 = vld [vmem:[%s247 + $0x190] sm:$0xf]
      %v365 = vld [vmem:[%s247 + $0x194] sm:$0xf]
      %v366 = vld [vmem:[%s247 + $0x198] sm:$0xf]
      %v367 = vld [vmem:[%s247 + $0x19c] sm:$0xf]
      %v368 = vld [vmem:[%s247 + $0x1a0] sm:$0xf]
      %v369 = vld [vmem:[%s247 + $0x1a4] sm:$0xf]
      %v370 = vld [vmem:[%s247 + $0x1a8] sm:$0xf]
      %v371 = vld [vmem:[%s247 + $0x1ac] sm:$0xf]
      %v372 = vld [vmem:[%s247 + $0x1b0] sm:$0xf]
      %v373 = vld [vmem:[%s247 + $0x1b4] sm:$0xf]
      %v374 = vld [vmem:[%s247 + $0x1b8] sm:$0xf]
      %v375 = vld [vmem:[%s247 + $0x1bc] sm:$0xf]
      %v376 = vld [vmem:[%s247 + $0x1c0] sm:$0xf]
      %v377 = vld [vmem:[%s247 + $0x1c4] sm:$0xf]
      %v378 = vld [vmem:[%s247 + $0x1c8] sm:$0xf]
      %v379 = vld [vmem:[%s247 + $0x1cc] sm:$0xf]
      %v380 = vld [vmem:[%s247 + $0x1d0] sm:$0xf]
      %v381 = vld [vmem:[%s247 + $0x1d4] sm:$0xf]
      %v382 = vld [vmem:[%s247 + $0x1d8] sm:$0xf]
      %v383 = vld [vmem:[%s247 + $0x1dc] sm:$0xf]
      %v384 = vld [vmem:[%s247 + $0x1e0] sm:$0xf]
      %v385 = vld [vmem:[%s247 + $0x1e4] sm:$0xf]
      %v386 = vld [vmem:[%s247 + $0x1e8] sm:$0xf]
      %v387 = vld [vmem:[%s247 + $0x1ec] sm:$0xf]
      %v388 = vld [vmem:[%s247 + $0x1f0] sm:$0xf]
      %v389 = vld [vmem:[%s247 + $0x1f4] sm:$0xf]
      %v390 = vld [vmem:[%s247 + $0x1f8] sm:$0xf]
      %v391 = vld [vmem:[%s247 + $0x1fc] sm:$0xf]
      %v396 = vunpack.c.l.b16 %v260
      %v397 = vunpack.c.h.b16 %v260
      %v398 = vunpack.c.l.b16 %v261
      %v399 = vunpack.c.h.b16 %v261
      %v400 = vunpack.c.l.b16 %v262
      %v401 = vunpack.c.h.b16 %v262
      %v402 = vunpack.c.l.b16 %v263
      %v403 = vunpack.c.h.b16 %v263
      %v404 = vpack.c.b16 %v396, %v396
      %v405 = vpack.c.b16 %v397, %v397
      %v406 = vpack.c.b16 %v398, %v398
      %v407 = vpack.c.b16 %v399, %v399
      %v408 = vpack.c.b16 %v400, %v400
      %v409 = vpack.c.b16 %v401, %v401
      %v410 = vpack.c.b16 %v402, %v402
      %v411 = vpack.c.b16 %v403, %v403
      %v548 = vunpack.c.l.b16 %v264
      %v549 = vunpack.c.l.b16 %v265
      %v550 = vunpack.c.l.b16 %v266
      %v551 = vunpack.c.l.b16 %v267
      %v552 = vunpack.c.l.b16 %v268
      %v553 = vunpack.c.l.b16 %v269
      %v554 = vunpack.c.l.b16 %v270
      %v555 = vunpack.c.l.b16 %v271
      %v556 = vunpack.c.l.b16 %v272
      %v557 = vunpack.c.l.b16 %v273
      %v558 = vunpack.c.l.b16 %v274
      %v559 = vunpack.c.l.b16 %v275
      %v560 = vunpack.c.l.b16 %v276
      %v561 = vunpack.c.l.b16 %v277
      %v562 = vunpack.c.l.b16 %v278
      %v563 = vunpack.c.l.b16 %v279
      %v564 = vunpack.c.l.b16 %v280
      %v565 = vunpack.c.l.b16 %v281
      %v566 = vunpack.c.l.b16 %v282
      %v567 = vunpack.c.l.b16 %v283
      %v568 = vunpack.c.l.b16 %v284
      %v569 = vunpack.c.l.b16 %v285
      %v570 = vunpack.c.l.b16 %v286
      %v571 = vunpack.c.l.b16 %v287
      %v572 = vunpack.c.l.b16 %v288
      %v573 = vunpack.c.l.b16 %v289
      %v574 = vunpack.c.l.b16 %v290
      %v575 = vunpack.c.l.b16 %v291
      %v576 = vunpack.c.l.b16 %v292
      %v577 = vunpack.c.l.b16 %v293
      %v578 = vunpack.c.l.b16 %v294
      %v579 = vunpack.c.l.b16 %v295
      %v580 = vunpack.c.l.b16 %v296
      %v581 = vunpack.c.l.b16 %v297
      %v582 = vunpack.c.l.b16 %v298
      %v583 = vunpack.c.l.b16 %v299
      %v584 = vunpack.c.l.b16 %v300
      %v585 = vunpack.c.l.b16 %v301
      %v586 = vunpack.c.l.b16 %v302
      %v587 = vunpack.c.l.b16 %v303
      %v588 = vunpack.c.l.b16 %v304
      %v589 = vunpack.c.l.b16 %v305
      %v590 = vunpack.c.l.b16 %v306
      %v591 = vunpack.c.l.b16 %v307
      %v592 = vunpack.c.l.b16 %v308
      %v593 = vunpack.c.l.b16 %v309
      %v594 = vunpack.c.l.b16 %v310
      %v595 = vunpack.c.l.b16 %v311
      %v596 = vunpack.c.l.b16 %v312
      %v597 = vunpack.c.l.b16 %v313
      %v598 = vunpack.c.l.b16 %v314
      %v599 = vunpack.c.l.b16 %v315
      %v600 = vunpack.c.l.b16 %v316
      %v601 = vunpack.c.l.b16 %v317
      %v602 = vunpack.c.l.b16 %v318
      %v603 = vunpack.c.l.b16 %v319
      %v604 = vunpack.c.l.b16 %v320
      %v605 = vunpack.c.l.b16 %v321
      %v606 = vunpack.c.l.b16 %v322
      %v607 = vunpack.c.l.b16 %v323
      %v608 = vunpack.c.l.b16 %v324
      %v609 = vunpack.c.l.b16 %v325
      %v610 = vunpack.c.l.b16 %v326
      %v611 = vunpack.c.l.b16 %v327
      %v612 = vunpack.c.l.b16 %v328
      %v613 = vunpack.c.l.b16 %v329
      %v614 = vunpack.c.l.b16 %v330
      %v615 = vunpack.c.l.b16 %v331
      %v616 = vunpack.c.l.b16 %v332
      %v617 = vunpack.c.l.b16 %v333
      %v618 = vunpack.c.l.b16 %v334
      %v619 = vunpack.c.l.b16 %v335
      %v620 = vunpack.c.l.b16 %v336
      %v621 = vunpack.c.l.b16 %v337
      %v622 = vunpack.c.l.b16 %v338
      %v623 = vunpack.c.l.b16 %v339
      %v624 = vunpack.c.l.b16 %v340
      %v625 = vunpack.c.l.b16 %v341
      %v626 = vunpack.c.l.b16 %v342
      %v627 = vunpack.c.l.b16 %v343
      %v628 = vunpack.c.l.b16 %v344
      %v629 = vunpack.c.l.b16 %v345
      %v630 = vunpack.c.l.b16 %v346
      %v631 = vunpack.c.l.b16 %v347
      %v632 = vunpack.c.l.b16 %v348
      %v633 = vunpack.c.l.b16 %v349
      %v634 = vunpack.c.l.b16 %v350
      %v635 = vunpack.c.l.b16 %v351
      %v636 = vunpack.c.l.b16 %v352
      %v637 = vunpack.c.l.b16 %v353
      %v638 = vunpack.c.l.b16 %v354
      %v639 = vunpack.c.l.b16 %v355
      %v640 = vunpack.c.l.b16 %v356
      %v641 = vunpack.c.l.b16 %v357
      %v642 = vunpack.c.l.b16 %v358
      %v643 = vunpack.c.l.b16 %v359
      %v644 = vunpack.c.l.b16 %v360
      %v645 = vunpack.c.l.b16 %v361
      %v646 = vunpack.c.l.b16 %v362
      %v647 = vunpack.c.l.b16 %v363
      %v648 = vunpack.c.l.b16 %v364
      %v649 = vunpack.c.l.b16 %v365
      %v650 = vunpack.c.l.b16 %v366
      %v651 = vunpack.c.l.b16 %v367
      %v652 = vunpack.c.l.b16 %v368
      %v653 = vunpack.c.l.b16 %v369
      %v654 = vunpack.c.l.b16 %v370
      %v655 = vunpack.c.l.b16 %v371
      %v656 = vunpack.c.l.b16 %v372
      %v657 = vunpack.c.l.b16 %v373
      %v658 = vunpack.c.l.b16 %v374
      %v659 = vunpack.c.l.b16 %v375
      %v660 = vunpack.c.l.b16 %v376
      %v661 = vunpack.c.l.b16 %v377
      %v662 = vunpack.c.l.b16 %v378
      %v663 = vunpack.c.l.b16 %v379
      %v664 = vunpack.c.l.b16 %v380
      %v665 = vunpack.c.l.b16 %v381
      %v666 = vunpack.c.l.b16 %v382
      %v667 = vunpack.c.l.b16 %v383
      %v668 = vunpack.c.l.b16 %v384
      %v669 = vunpack.c.l.b16 %v385
      %v670 = vunpack.c.l.b16 %v386
      %v671 = vunpack.c.l.b16 %v387
      %v672 = vunpack.c.l.b16 %v388
      %v673 = vunpack.c.l.b16 %v389
      %v674 = vunpack.c.l.b16 %v390
      %v675 = vunpack.c.l.b16 %v391
      %v676 = vpack.c.b16 %v549, %v548
      %v677 = vpack.c.b16 %v551, %v550
      %v678 = vpack.c.b16 %v553, %v552
      %v679 = vpack.c.b16 %v555, %v554
      %v680 = vpack.c.b16 %v557, %v556
      %v681 = vpack.c.b16 %v559, %v558
      %v682 = vpack.c.b16 %v561, %v560
      %v683 = vpack.c.b16 %v563, %v562
      %v684 = vpack.c.b16 %v565, %v564
      %v685 = vpack.c.b16 %v567, %v566
      %v686 = vpack.c.b16 %v569, %v568
      %v687 = vpack.c.b16 %v571, %v570
      %v688 = vpack.c.b16 %v573, %v572
      %v689 = vpack.c.b16 %v575, %v574
      %v690 = vpack.c.b16 %v577, %v576
      %v691 = vpack.c.b16 %v579, %v578
      %v692 = vpack.c.b16 %v581, %v580
      %v693 = vpack.c.b16 %v583, %v582
      %v694 = vpack.c.b16 %v585, %v584
      %v695 = vpack.c.b16 %v587, %v586
      %v696 = vpack.c.b16 %v589, %v588
      %v697 = vpack.c.b16 %v591, %v590
      %v698 = vpack.c.b16 %v593, %v592
      %v699 = vpack.c.b16 %v595, %v594
      %v700 = vpack.c.b16 %v597, %v596
      %v701 = vpack.c.b16 %v599, %v598
      %v702 = vpack.c.b16 %v601, %v600
      %v703 = vpack.c.b16 %v603, %v602
      %v704 = vpack.c.b16 %v605, %v604
      %v705 = vpack.c.b16 %v607, %v606
      %v706 = vpack.c.b16 %v609, %v608
      %v707 = vpack.c.b16 %v611, %v610
      %v708 = vpack.c.b16 %v613, %v612
      %v709 = vpack.c.b16 %v615, %v614
      %v710 = vpack.c.b16 %v617, %v616
      %v711 = vpack.c.b16 %v619, %v618
      %v712 = vpack.c.b16 %v621, %v620
      %v713 = vpack.c.b16 %v623, %v622
      %v714 = vpack.c.b16 %v625, %v624
      %v715 = vpack.c.b16 %v627, %v626
      %v716 = vpack.c.b16 %v629, %v628
      %v717 = vpack.c.b16 %v631, %v630
      %v718 = vpack.c.b16 %v633, %v632
      %v719 = vpack.c.b16 %v635, %v634
      %v720 = vpack.c.b16 %v637, %v636
      %v721 = vpack.c.b16 %v639, %v638
      %v722 = vpack.c.b16 %v641, %v640
      %v723 = vpack.c.b16 %v643, %v642
      %v724 = vpack.c.b16 %v645, %v644
      %v725 = vpack.c.b16 %v647, %v646
      %v726 = vpack.c.b16 %v649, %v648
      %v727 = vpack.c.b16 %v651, %v650
      %v728 = vpack.c.b16 %v653, %v652
      %v729 = vpack.c.b16 %v655, %v654
      %v730 = vpack.c.b16 %v657, %v656
      %v731 = vpack.c.b16 %v659, %v658
      %v732 = vpack.c.b16 %v661, %v660
      %v733 = vpack.c.b16 %v663, %v662
      %v734 = vpack.c.b16 %v665, %v664
      %v735 = vpack.c.b16 %v667, %v666
      %v736 = vpack.c.b16 %v669, %v668
      %v737 = vpack.c.b16 %v671, %v670
      %v738 = vpack.c.b16 %v673, %v672
      %v739 = vpack.c.b16 %v675, %v674
      %804 = vmatprep.subr.bf16.mxu0 0
      %805 = vmatpush1.bf16.msra.mxu0 %v676
      %806 = vmatprep.subr.bf16.mxu0 0
      %807 = vmatpush1.bf16.msra.mxu0 %v677
      %808 = vmatprep.subr.bf16.mxu0 0
      %809 = vmatpush1.bf16.msra.mxu0 %v678
      %810 = vmatprep.subr.bf16.mxu0 0
      %811 = vmatpush1.bf16.msra.mxu0 %v679
      %812 = vmatprep.subr.bf16.mxu0 0
      %813 = vmatpush1.bf16.msra.mxu0 %v680
      %814 = vmatprep.subr.bf16.mxu0 0
      %815 = vmatpush1.bf16.msra.mxu0 %v681
      %816 = vmatprep.subr.bf16.mxu0 0
      %817 = vmatpush1.bf16.msra.mxu0 %v682
      %818 = vmatprep.subr.bf16.mxu0 0
      %819 = vmatpush1.bf16.msra.mxu0 %v683
      %820 = vmatprep.subr.bf16.mxu0 0
      %821 = vmatpush1.bf16.msra.mxu0 %v684
      %822 = vmatprep.subr.bf16.mxu0 0
      %823 = vmatpush1.bf16.msra.mxu0 %v685
      %824 = vmatprep.subr.bf16.mxu0 0
      %825 = vmatpush1.bf16.msra.mxu0 %v686
      %826 = vmatprep.subr.bf16.mxu0 0
      %827 = vmatpush1.bf16.msra.mxu0 %v687
      %828 = vmatprep.subr.bf16.mxu0 0
      %829 = vmatpush1.bf16.msra.mxu0 %v688
      %830 = vmatprep.subr.bf16.mxu0 0
      %831 = vmatpush1.bf16.msra.mxu0 %v689
      %832 = vmatprep.subr.bf16.mxu0 0
      %833 = vmatpush1.bf16.msra.mxu0 %v690
      %834 = vmatprep.subr.bf16.mxu0 0
      %835 = vmatpush1.bf16.msra.mxu0 %v691
      %836 = vmatprep.mubr.bf16.mxu0 %v405
      %837 = vmatmul.mubr.bf16.gmra.mrb[0].mxu0 %v404
      %v838 = vpop.f32.mrb[0].mxu0
      %v839 = vadd.f32 0.0, %v838
      %v840 = vpop.f32.mrb[0].mxu0
      %v841 = vpop.f32.mrb[0].mxu0
      %v842 = vpop.f32.mrb[0].mxu0
      %843 = vdwg.mxu0
      %844 = vmatprep.subr.bf16.mxu0 0
      %845 = vmatpush1.bf16.msra.mxu0 %v692
      %846 = vmatprep.subr.bf16.mxu0 0
      %847 = vmatpush1.bf16.msra.mxu0 %v693
      %848 = vmatprep.subr.bf16.mxu0 0
      %849 = vmatpush1.bf16.msra.mxu0 %v694
      %850 = vmatprep.subr.bf16.mxu0 0
      %851 = vmatpush1.bf16.msra.mxu0 %v695
      %852 = vmatprep.subr.bf16.mxu0 0
      %853 = vmatpush1.bf16.msra.mxu0 %v696
      %854 = vmatprep.subr.bf16.mxu0 0
      %855 = vmatpush1.bf16.msra.mxu0 %v697
      %856 = vmatprep.subr.bf16.mxu0 0
      %857 = vmatpush1.bf16.msra.mxu0 %v698
      %858 = vmatprep.subr.bf16.mxu0 0
      %859 = vmatpush1.bf16.msra.mxu0 %v699
      %860 = vmatprep.subr.bf16.mxu0 0
      %861 = vmatpush1.bf16.msra.mxu0 %v700
      %862 = vmatprep.subr.bf16.mxu0 0
      %863 = vmatpush1.bf16.msra.mxu0 %v701
      %864 = vmatprep.subr.bf16.mxu0 0
      %865 = vmatpush1.bf16.msra.mxu0 %v702
      %866 = vmatprep.subr.bf16.mxu0 0
      %867 = vmatpush1.bf16.msra.mxu0 %v703
      %868 = vmatprep.subr.bf16.mxu0 0
      %869 = vmatpush1.bf16.msra.mxu0 %v704
      %870 = vmatprep.subr.bf16.mxu0 0
      %871 = vmatpush1.bf16.msra.mxu0 %v705
      %872 = vmatprep.subr.bf16.mxu0 0
      %873 = vmatpush1.bf16.msra.mxu0 %v706
      %874 = vmatprep.subr.bf16.mxu0 0
      %875 = vmatpush1.bf16.msra.mxu0 %v707
      %876 = vmatprep.mubr.bf16.mxu0 %v407
      %877 = vmatmul.mubr.bf16.gmra.mrb[0].mxu0 %v406
      %v878 = vpop.f32.mrb[0].mxu0
      %v879 = vadd.f32 %v839, %v878
      %v880 = vpop.f32.mrb[0].mxu0
      %v881 = vpop.f32.mrb[0].mxu0
      %v882 = vpop.f32.mrb[0].mxu0
      %883 = vdwg.mxu0
      %884 = vmatprep.subr.bf16.mxu0 0
      %885 = vmatpush1.bf16.msra.mxu0 %v708
      %886 = vmatprep.subr.bf16.mxu0 0
      %887 = vmatpush1.bf16.msra.mxu0 %v709
      %888 = vmatprep.subr.bf16.mxu0 0
      %889 = vmatpush1.bf16.msra.mxu0 %v710
      %890 = vmatprep.subr.bf16.mxu0 0
      %891 = vmatpush1.bf16.msra.mxu0 %v711
      %892 = vmatprep.subr.bf16.mxu0 0
      %893 = vmatpush1.bf16.msra.mxu0 %v712
      %894 = vmatprep.subr.bf16.mxu0 0
      %895 = vmatpush1.bf16.msra.mxu0 %v713
      %896 = vmatprep.subr.bf16.mxu0 0
      %897 = vmatpush1.bf16.msra.mxu0 %v714
      %898 = vmatprep.subr.bf16.mxu0 0
      %899 = vmatpush1.bf16.msra.mxu0 %v715
      %900 = vmatprep.subr.bf16.mxu0 0
      %901 = vmatpush1.bf16.msra.mxu0 %v716
      %902 = vmatprep.subr.bf16.mxu0 0
      %903 = vmatpush1.bf16.msra.mxu0 %v717
      %904 = vmatprep.subr.bf16.mxu0 0
      %905 = vmatpush1.bf16.msra.mxu0 %v718
      %906 = vmatprep.subr.bf16.mxu0 0
      %907 = vmatpush1.bf16.msra.mxu0 %v719
      %908 = vmatprep.subr.bf16.mxu0 0
      %909 = vmatpush1.bf16.msra.mxu0 %v720
      %910 = vmatprep.subr.bf16.mxu0 0
      %911 = vmatpush1.bf16.msra.mxu0 %v721
      %912 = vmatprep.subr.bf16.mxu0 0
      %913 = vmatpush1.bf16.msra.mxu0 %v722
      %914 = vmatprep.subr.bf16.mxu0 0
      %915 = vmatpush1.bf16.msra.mxu0 %v723
      %916 = vmatprep.mubr.bf16.mxu0 %v409
      %917 = vmatmul.mubr.bf16.gmra.mrb[0].mxu0 %v408
      %v918 = vpop.f32.mrb[0].mxu0
      %v919 = vadd.f32 %v879, %v918
      %v920 = vpop.f32.mrb[0].mxu0
      %v921 = vpop.f32.mrb[0].mxu0
      %v922 = vpop.f32.mrb[0].mxu0
      %923 = vdwg.mxu0
      %924 = vmatprep.subr.bf16.mxu0 0
      %925 = vmatpush1.bf16.msra.mxu0 %v724
      %926 = vmatprep.subr.bf16.mxu0 0
      %927 = vmatpush1.bf16.msra.mxu0 %v725
      %928 = vmatprep.subr.bf16.mxu0 0
      %929 = vmatpush1.bf16.msra.mxu0 %v726
      %930 = vmatprep.subr.bf16.mxu0 0
      %931 = vmatpush1.bf16.msra.mxu0 %v727
      %932 = vmatprep.subr.bf16.mxu0 0
      %933 = vmatpush1.bf16.msra.mxu0 %v728
      %934 = vmatprep.subr.bf16.mxu0 0
      %935 = vmatpush1.bf16.msra.mxu0 %v729
      %936 = vmatprep.subr.bf16.mxu0 0
      %937 = vmatpush1.bf16.msra.mxu0 %v730
      %938 = vmatprep.subr.bf16.mxu0 0
      %939 = vmatpush1.bf16.msra.mxu0 %v731
      %940 = vmatprep.subr.bf16.mxu0 0
      %941 = vmatpush1.bf16.msra.mxu0 %v732
      %942 = vmatprep.subr.bf16.mxu0 0
      %943 = vmatpush1.bf16.msra.mxu0 %v733
      %944 = vmatprep.subr.bf16.mxu0 0
      %945 = vmatpush1.bf16.msra.mxu0 %v734
      %946 = vmatprep.subr.bf16.mxu0 0
      %947 = vmatpush1.bf16.msra.mxu0 %v735
      %948 = vmatprep.subr.bf16.mxu0 0
      %949 = vmatpush1.bf16.msra.mxu0 %v736
      %950 = vmatprep.subr.bf16.mxu0 0
      %951 = vmatpush1.bf16.msra.mxu0 %v737
      %952 = vmatprep.subr.bf16.mxu0 0
      %953 = vmatpush1.bf16.msra.mxu0 %v738
      %954 = vmatprep.subr.bf16.mxu0 0
      %955 = vmatpush1.bf16.msra.mxu0 %v739
      %956 = vmatprep.mubr.bf16.mxu0 %v411
      %957 = vmatmul.mubr.bf16.gmra.mrb[0].mxu0 %v410
      %v958 = vpop.f32.mrb[0].mxu0
      %v959 = vadd.f32 %v919, %v958
      %v960 = vpop.f32.mrb[0].mxu0
      %v961 = vpop.f32.mrb[0].mxu0
      %v962 = vpop.f32.mrb[0].mxu0
      %963 = vdwg.mxu0
      %p964 = scmp.eq.s32.totalorder %s21, 0
      // Predicated region
      $region33: #{vgg_forward.13} parent=31 // pred_check
        %p965 = pneg %p964
      $region34: #{vgg_forward.13} parent=31 // pred_check_branch
        %967 = sbr.rel (%p965) target = $region36
      $region35: #{vgg_forward.13} parent=31 // pred_region
        %968 = vst [vmem:[#allocation2] sm:$0xff] %v959
      $region36: #{vgg_forward.13} parent=31 // pred_fallthru
        _
      %p969 = scmp.gt.s32.totalorder %s21, 0
      // Predicated region
      $region37: #{vgg_forward.13} parent=31 // pred_check
        %p970 = pneg %p969
      $region38: #{vgg_forward.13} parent=31 // pred_check_branch
        %972 = sbr.rel (%p970) target = $region40
      $region39: #{vgg_forward.13} parent=31 // pred_region
        %v973 = vld [vmem:[#allocation2] sm:$0xff]
        %v974 = vadd.f32 %v973, %v959
        %975 = vst [vmem:[#allocation2] sm:$0xff] %v974
      $region40: #{vgg_forward.13} parent=31 // pred_fallthru
        _
      %p976 = scmp.eq.s32.totalorder %s21, 1
      // Predicated region
      $region41: #{vgg_forward.13} parent=31 // pred_check
        %p977 = pneg %p976
      $region42: #{vgg_forward.13} parent=31 // pred_check_branch
        %979 = sbr.rel (%p977) target = $region44
      $region43: #{vgg_forward.13} parent=31 // pred_region
        %v980 = vld [vmem:[#allocation2] sm:$0xff]
        %v981 = vld [vmem:[%s251] sm:$0x1]
        %v983 = vlaneseq
        %v984 = vshrl.u32 %v983, 7
        %v985 = vsub.s32 0, %v984
        %v986 = vrot.slane %v981, %v985
        %v988 = vadd.f32 %v980, %v986
        %v989 = vmax.f32 %v988, 0.0
        %v990 = vpack.c.bf16 %v989, %v989
        %991 = vst [vmem:[%s258] sm:$0xf] %v990
      $region44: #{vgg_forward.13} parent=31 // pred_fallthru
        _
      %p992 = scmp.lt.s32.totalorder %s19, 0
      %s993 = scalar_select %p992, %s19, 0
      %p994 = scmp.lt.s32.totalorder %s20, 0
      %s995 = scalar_select %p994, %s20, 0
      %s996 = sadd.s32 %s995, %s993
      %s997 = smul.addr %s996, 4
      %s998 = scalar_lea.vmem %s3, %s997
      // Predicated region
      $region45: #{vgg_forward.13} parent=31 // pred_check
        %p999 = pneg %p135
      $region46: #{vgg_forward.13} parent=31 // pred_check_branch
        %1001 = sbr.rel (%p999) target = $region48
      $region47: #{vgg_forward.13} parent=31 // pred_region
        _
      $region48: #{vgg_forward.13} parent=31 // pred_fallthru
        _
      // Predicated region
      $region49: #{vgg_forward.13} parent=31 // pred_check
        %p1002 = pneg %p135
      $region50: #{vgg_forward.13} parent=31 // pred_check_branch
        %1004 = sbr.rel (%p1002) target = $region52
      $region51: #{vgg_forward.13} parent=31 // pred_region
        %p1005 = scmp.lt.s32.totalorder %s19, 0
        %s1006 = scalar_select %p1005, %s19, 0
        %p1007 = scmp.lt.s32.totalorder %s20, 0
        %s1008 = scalar_select %p1007, %s20, 0
        %s1009 = sadd.s32 %s1008, %s1006
        %s1010 = smul.addr %s1009, 4
        %s1011 = scalar_lea.vmem %s3, %s1010
      $region52: #{vgg_forward.13} parent=31 // pred_fallthru
        _
    $region32: #{vgg_forward.13} parent=5 // pred_fallthru
      _
    %p1012 = scmp.le.s32.totalorder 2, %s9
    // Predicated region
    $region53: #{vgg_forward.13} parent=5 // pred_check
      %p1013 = pneg %p1012
    $region54: #{vgg_forward.13} parent=5 // pred_check_branch
      %1015 = sbr.rel (%p1013) target = $region56
    $region55: #{vgg_forward.13} parent=5 // pred_region
      %s1016 = ssub.s32 %s9, 2
    $region56: #{vgg_forward.13} parent=5 // pred_fallthru
      _
  $region6: #{vgg_forward.13} parent=0 // loop_footer
    %s13 = sadd.s32 1, %s9
  $region7: #{vgg_forward.13} parent=0 // loop_footer_branch
    %8 = sbr.rel target = $region3
  $region8: #{vgg_forward.13} parent=0 // loop_exit
    _

</llo_original>
